<compile_context>
chip_gen: v7x
topology: tpu7x:2x2x1
jax: 0.10.0
libtpu: 0.0.40
codegen_flags: <defaults>
</compile_context>

<pallas_src>
import functools

import jax
import jax.numpy as jnp
from jax.experimental import pallas as pl
from jax.experimental.pallas import tpu as pltpu


# -----------------------------------------------------------------------------
# Small helpers.
# -----------------------------------------------------------------------------
def _round_up(x, m):
    return ((x + m - 1) // m) * m


def _sigmoid(x):
    # Exact: sigmoid(x) == 0.5 * tanh(0.5 * x) + 0.5.
    # tanh is a single EUP push; avoids exp + reciprocal on the serial path.
    return 0.5 * jnp.tanh(0.5 * x) + 0.5


def _lstm_cell(gates, c_prev, hp):
    """PyTorch gate order i, f, g, o; each gate occupies a 128-aligned block."""
    i_g = _sigmoid(gates[:, 0 * hp:1 * hp])
    f_g = _sigmoid(gates[:, 1 * hp:2 * hp])
    g_g = jnp.tanh(gates[:, 2 * hp:3 * hp])
    o_g = _sigmoid(gates[:, 3 * hp:4 * hp])
    c_new = f_g * c_prev + i_g * g_g
    h_new = o_g * jnp.tanh(c_new)
    return h_new, c_new


# -----------------------------------------------------------------------------
# Fused forward kernel: char LSTM -> word LSTM -> hidden2tag + log_softmax.
# -----------------------------------------------------------------------------
def _fused_tagger_kernel(sent_ref, words_ref,          # SMEM int32 indices
                         char_tab_ref, word_tab_ref,   # folded x@W_ih+b tables
                         whh_c_ref, wih_wc_ref, whh_w_ref,
                         wtag_ref, btag_ref,
                         out_ref,
                         *, num_chars, seq_len, s_pad, hp_c, hp_w):
    f32 = jnp.float32

    # ---- char LSTM, batched over the words of the sentence ------------------
    whh_c = whh_c_ref[...]
    h_c = jnp.zeros((s_pad, hp_c), f32)
    c_c = jnp.zeros((s_pad, hp_c), f32)
    pad_rows_c = (jnp.zeros((s_pad - seq_len, 4 * hp_c), f32)
                  if s_pad > seq_len else None)
    # Scaling guard: at seq_len/word_len beyond ~16-32, switch these static
    # loops to lax.fori_loop(..., unroll=k) with the gathered rows staged in a
    # VMEM scratch to bound live ranges / vreg pressure.
    for t in range(num_chars):  # static trip count -> fully unrolled
        # Gather pre-projected rows (x @ W_ih + b folded at prep time): no
        # in-kernel input-projection matmul, rows are lane-dense (4*hp_c).
        rows = [char_tab_ref[pl.ds(words_ref[w, t], 1), :]
                for w in range(seq_len)]
        if pad_rows_c is not None:
            rows.append(pad_rows_c)      # padded word rows stay exactly zero
        xproj_t = jnp.concatenate(rows, axis=0)                  # (s_pad, 4hp_c)
        gates = xproj_t + jnp.dot(h_c.astype(whh_c.dtype), whh_c,
                                  preferred_element_type=f32)
        h_c, c_c = _lstm_cell(gates, c_c, hp_c)

    # ---- word LSTM (batch = 1 over the sentence) -----------------------------
    # char-hidden part of the input projection: one hoisted MXU matmul,
    # off the serial chain (no in-kernel concat needed).
    xc = jnp.dot(h_c.astype(wih_wc_ref.dtype), wih_wc_ref[...],
                 preferred_element_type=f32)                     # (s_pad, 4hp_w)
    whh_w = whh_w_ref[...]
    h_w = jnp.zeros((1, hp_w), f32)
    c_w = jnp.zeros((1, hp_w), f32)
    h_list = []
    for t in range(seq_len):    # static trip count -> fully unrolled
        x_t = word_tab_ref[pl.ds(sent_ref[t], 1), :] + xc[t:t + 1, :]
        gates = x_t + jnp.dot(h_w.astype(whh_w.dtype), whh_w,
                              preferred_element_type=f32)
        h_w, c_w = _lstm_cell(gates, c_w, hp_w)
        h_list.append(h_w)               # stays in vregs; no per-step VMEM store
    if s_pad > seq_len:
        h_list.append(jnp.zeros((s_pad - seq_len, hp_w), f32))
    lstm_out = jnp.concatenate(h_list, axis=0)                   # (s_pad, hp_w)

    # ---- hidden2tag + log_softmax (padded tag lanes carry bias -1e30) --------
    logits = (jnp.dot(lstm_out.astype(wtag_ref.dtype), wtag_ref[...],
                      preferred_element_type=f32) + btag_ref[...])
    m = jnp.max(logits, axis=-1, keepdims=True)
    shifted = logits - m
    lse = jnp.log(jnp.sum(jnp.exp(shifted), axis=-1, keepdims=True))
    out_ref[...] = shifted - lse        # (s_pad, nt_p): one unmasked vst tile


# -----------------------------------------------------------------------------
# One-time parameter preprocessing: transpose, gate padding, bias folding,
# input-projection folding into the embedding tables, bf16 casts.
# -----------------------------------------------------------------------------
def _pack_gate_cols(w_t, h, hp):
    """w_t: (D, 4h) with gate blocks i,f,g,o along columns -> (D, 4hp)."""
    blocks = [jnp.pad(w_t[:, g * h:(g + 1) * h], ((0, 0), (0, hp - h)))
              for g in range(4)]
    return jnp.concatenate(blocks, axis=1)


def _pack_gate_bias(b, h, hp):
    blocks = [jnp.pad(b[g * h:(g + 1) * h], (0, hp - h)) for g in range(4)]
    return jnp.concatenate(blocks).reshape(1, 4 * hp)


def prepare_params(params, *, lane=128, sublane=8):
    wdtype = jnp.bfloat16
    hi = jax.lax.Precision.HIGHEST
    hc = params["char_lstm_w_hh"].shape[1]
    hw = params["lstm_w_hh"].shape[1]
    we = params["word_embedding"].shape[1]
    n_tags = params["hidden2tag_w"].shape[0]
    char_vocab = params["char_embedding"].shape[0]
    word_vocab = params["word_embedding"].shape[0]
    hp_c = _round_up(hc, lane)
    hp_w = _round_up(hw, lane)
    nt_p = _round_up(n_tags, lane)

    # --- char LSTM: fold input projection + bias into the char table ---------
    wih_c = _pack_gate_cols(params["char_lstm_w_ih"].T, hc, hp_c)      # (Ce,4hp_c)
    b_c = _pack_gate_bias(params["char_lstm_b_ih"] + params["char_lstm_b_hh"],
                          hc, hp_c)
    char_tab = jnp.dot(params["char_embedding"].astype(jnp.float32), wih_c,
                       precision=hi) + b_c                             # (Cv,4hp_c)
    char_tab = jnp.pad(
        char_tab, ((0, _round_up(char_vocab, sublane) - char_vocab), (0, 0)))

    whh_c = jnp.pad(_pack_gate_cols(params["char_lstm_w_hh"].T, hc, hp_c),
                    ((0, hp_c - hc), (0, 0))).astype(wdtype)

    # --- word LSTM: fold embedding @ W_ih[:We] + bias into the word table ----
    wih_word_t = params["lstm_w_ih"].T                                 # (We+Hc,4Hw)
    wih_we = _pack_gate_cols(wih_word_t[:we], hw, hp_w)
    b_w = _pack_gate_bias(params["lstm_b_ih"] + params["lstm_b_hh"], hw, hp_w)
    word_tab = jnp.dot(params["word_embedding"].astype(jnp.float32), wih_we,
                       precision=hi) + b_w                             # (Wv,4hp_w)
    word_tab = jnp.pad(
        word_tab, ((0, _round_up(word_vocab, sublane) - word_vocab), (0, 0)))

    wih_wc = jnp.pad(_pack_gate_cols(wih_word_t[we:we + hc], hw, hp_w),
                     ((0, hp_c - hc), (0, 0))).astype(wdtype)
    whh_w = jnp.pad(_pack_gate_cols(params["lstm_w_hh"].T, hw, hp_w),
                    ((0, hp_w - hw), (0, 0))).astype(wdtype)

    # --- hidden2tag (padded tag lanes get bias -1e30 so exp() underflows) ----
    wtag = jnp.pad(params["hidden2tag_w"].T,
                   ((0, hp_w - hw), (0, nt_p - n_tags))).astype(wdtype)
    btag = jnp.concatenate(
        [params["hidden2tag_b"].astype(jnp.float32),
         jnp.full((nt_p - n_tags,), -1e30, jnp.float32)]).reshape(1, nt_p)

    return {
        "char_tab": char_tab.astype(jnp.float32),
        "word_tab": word_tab.astype(jnp.float32),
        "whh_c": whh_c, "wih_wc": wih_wc, "whh_w": whh_w,
        "wtag": wtag, "btag": btag,
        "hp_c": hp_c, "hp_w": hp_w, "nt_p": nt_p, "n_tags": n_tags,
    }


# -----------------------------------------------------------------------------
# Full DualLSTMTagger forward (one fused pallas_call, gathers done in-kernel).
# -----------------------------------------------------------------------------
def dual_lstm_tagger_forward(prep, sentence, words):
    """
    sentence: (S,) int32 word indices.
    words:    (S, L) int32 char indices (fixed-length char sequence per word).
    Returns (S, tag_vocab_size) log-probabilities.
    """
    seq_len = int(sentence.shape[0])
    num_chars = int(words.shape[1])
    s_pad = max(8, _round_up(seq_len, 8))     # sublane-align word batch / output
    hp_c, hp_w = prep["hp_c"], prep["hp_w"]
    nt_p, n_tags = prep["nt_p"], prep["n_tags"]

    kernel = functools.partial(
        _fused_tagger_kernel,
        num_chars=num_chars, seq_len=seq_len, s_pad=s_pad, hp_c=hp_c, hp_w=hp_w)

    smem = pl.BlockSpec(memory_space=pltpu.MemorySpace.SMEM)
    vmem = pl.BlockSpec(memory_space=pltpu.MemorySpace.VMEM)
    # NOTE: when serving many sentences (esp. on v7x's 2 TensorCores), add a
    # leading batch grid axis with dimension_semantics=("parallel", ...).
    out_pad = pl.pallas_call(
        kernel,
        out_shape=jax.ShapeDtypeStruct((s_pad, nt_p), jnp.float32),
        in_specs=[smem, smem] + [vmem] * 7,
        out_specs=vmem,
    )(sentence.astype(jnp.int32), words.astype(jnp.int32),
      prep["char_tab"], prep["word_tab"],
      prep["whh_c"], prep["wih_wc"], prep["whh_w"],
      prep["wtag"], prep["btag"])
    return out_pad[:seq_len, :n_tags]


# -----------------------------------------------------------------------------
# Deterministic parameter construction (shapes follow the nn.Module __init__).
# -----------------------------------------------------------------------------
def make_params(key, word_embedding_dim, word_hidden_dim, char_embedding_dim,
                char_hidden_dim, word_vocab_size, char_vocab_size, tag_vocab_size):
    keys = jax.random.split(key, 12)
    u = lambda k, shape, s: jax.random.uniform(
        k, shape, jnp.float32, minval=-s, maxval=s)
    word_lstm_in = word_embedding_dim + char_hidden_dim
    s_char = 1.0 / jnp.sqrt(char_hidden_dim)
    s_word = 1.0 / jnp.sqrt(word_hidden_dim)
    return {
        "word_embedding": jax.random.normal(
            keys[0], (word_vocab_size, word_embedding_dim), jnp.float32),
        "char_embedding": jax.random.normal(
            keys[1], (char_vocab_size, char_embedding_dim), jnp.float32),
        # char LSTM (PyTorch layout: (4H, D) / (4H, H) / (4H,))
        "char_lstm_w_ih": u(keys[2], (4 * char_hidden_dim, char_embedding_dim), s_char),
        "char_lstm_w_hh": u(keys[3], (4 * char_hidden_dim, char_hidden_dim), s_char),
        "char_lstm_b_ih": u(keys[4], (4 * char_hidden_dim,), s_char),
        "char_lstm_b_hh": u(keys[5], (4 * char_hidden_dim,), s_char),
        # word LSTM
        "lstm_w_ih": u(keys[6], (4 * word_hidden_dim, word_lstm_in), s_word),
        "lstm_w_hh": u(keys[7], (4 * word_hidden_dim, word_hidden_dim), s_word),
        "lstm_b_ih": u(keys[8], (4 * word_hidden_dim,), s_word),
        "lstm_b_hh": u(keys[9], (4 * word_hidden_dim,), s_word),
        # hidden2tag Linear
        "hidden2tag_w": u(keys[10], (tag_vocab_size, word_hidden_dim), s_word),
        "hidden2tag_b": u(keys[11], (tag_vocab_size,), s_word),
    }


# Pure-JAX (f32) reference of the PyTorch module, for a correctness check.
def reference_forward(params, sentence, words):
    def lstm(x_seq, w_ih, w_hh, b_ih, b_hh):
        hdim = w_hh.shape[1]

        def step(carry, x):
            h, c = carry
            gates = x @ w_ih.T + h @ w_hh.T + b_ih + b_hh
            i, f, g, o = jnp.split(gates, 4)
            i, f, o = jax.nn.sigmoid(i), jax.nn.sigmoid(f), jax.nn.sigmoid(o)
            g = jnp.tanh(g)
            c = f * c + i * g
            h = o * jnp.tanh(c)
            return (h, c), h

        init = (jnp.zeros(hdim, jnp.float32), jnp.zeros(hdim, jnp.float32))
        (h, _), hs = jax.lax.scan(step, init, x_seq)
        return hs, h

    embeds = params["word_embedding"][sentence]
    char_hidden = []
    for w in range(words.shape[0]):
        ce = params["char_embedding"][words[w]]
        _, h = lstm(ce, params["char_lstm_w_ih"], params["char_lstm_w_hh"],
                    params["char_lstm_b_ih"], params["char_lstm_b_hh"])
        char_hidden.append(h)
    combined = jnp.concatenate([embeds, jnp.stack(char_hidden)], axis=1)
    hs, _ = lstm(combined, params["lstm_w_ih"], params["lstm_w_hh"],
                 params["lstm_b_ih"], params["lstm_b_hh"])
    logits = hs @ params["hidden2tag_w"].T + params["hidden2tag_b"]
    return jax.nn.log_softmax(logits, axis=1)


if __name__ == "__main__":
    # Small, module-consistent sizes.
    word_embedding_dim = 16
    word_hidden_dim = 32
    char_embedding_dim = 8
    char_hidden_dim = 16
    word_vocab_size = 24
    char_vocab_size = 30
    tag_vocab_size = 10
    seq_len = 6        # number of words in the sentence
    word_len = 5       # chars per word (fixed length for the synthetic batch)
    # TODO(synk): variable-length words (PyTorch loops over python lists) would
    # need per-word length masking; fixed word_len is used for the synthetic input.

    key = jax.random.PRNGKey(0)
    kp, ks, kw = jax.random.split(key, 3)
    params = make_params(kp, word_embedding_dim, word_hidden_dim,
                         char_embedding_dim, char_hidden_dim,
                         word_vocab_size, char_vocab_size, tag_vocab_size)
    prep = prepare_params(params)   # one-time weight prep (fold/pad/transpose/bf16)

    sentence = jax.random.randint(ks, (seq_len,), 0, word_vocab_size, jnp.int32)
    words = jax.random.randint(kw, (seq_len, word_len), 0, char_vocab_size, jnp.int32)

    fwd = jax.jit(functools.partial(dual_lstm_tagger_forward, prep))
    tag_scores = jax.block_until_ready(fwd(sentence, words))

    assert tag_scores.shape == (seq_len, tag_vocab_size)
    assert bool(jnp.all(jnp.isfinite(tag_scores)))
    # log_softmax rows must sum to ~1 in probability space.
    assert bool(jnp.allclose(jnp.sum(jnp.exp(tag_scores), axis=1), 1.0, atol=1e-4))
    # Parity vs. f32 reference (bf16 weight/activation casts -> loose tolerance).
    ref = reference_forward(params, sentence, words)
    assert bool(jnp.allclose(tag_scores, ref, atol=5e-2)), (
        float(jnp.max(jnp.abs(tag_scores - ref))))
    print("KERNEL_OK")
</pallas_src>

<mosaic_0001>
module attributes {stable_mosaic.version = 11 : i64} {
  func.func @_fused_tagger_kernel(%arg0: memref<6xi32, #tpu.memory_space<smem>>, %arg1: memref<6x5xi32, #tpu.memory_space<smem>>, %arg2: memref<32x512xf32, #tpu.memory_space<vmem>>, %arg3: memref<24x512xf32, #tpu.memory_space<vmem>>, %arg4: memref<128x512xbf16, #tpu.memory_space<vmem>>, %arg5: memref<128x512xbf16, #tpu.memory_space<vmem>>, %arg6: memref<128x512xbf16, #tpu.memory_space<vmem>>, %arg7: memref<128x128xbf16, #tpu.memory_space<vmem>>, %arg8: memref<1x128xf32, #tpu.memory_space<vmem>>, %arg9: memref<8x128xf32, #tpu.memory_space<vmem>>) attributes {dimension_semantics = [], scalar_prefetch = 0 : i64, scratch_operands = 0 : i64, tpu.core_type = #tpu.core_type<tc>} {
    %c0 = arith.constant 0 : index
    %c0_0 = arith.constant 0 : index
    %0 = vector.load %arg4[%c0, %c0_0] : memref<128x512xbf16, #tpu.memory_space<vmem>>, vector<128x512xbf16>
    %cst = arith.constant 0.000000e+00 : f32
    %1 = vector.broadcast %cst : f32 to vector<8x128xf32>
    %cst_1 = arith.constant 0.000000e+00 : f32
    %2 = vector.broadcast %cst_1 : f32 to vector<8x128xf32>
    %cst_2 = arith.constant 0.000000e+00 : f32
    %3 = vector.broadcast %cst_2 : f32 to vector<2x512xf32>
    %c0_3 = arith.constant 0 : index
    %c0_4 = arith.constant 0 : index
    %4 = memref.load %arg1[%c0_3, %c0_4] : memref<6x5xi32, #tpu.memory_space<smem>>
    %5 = arith.index_cast %4 : i32 to index
    %c0_5 = arith.constant 0 : index
    %6 = vector.load %arg2[%5, %c0_5] : memref<32x512xf32, #tpu.memory_space<vmem>>, vector<1x512xf32>
    %c1 = arith.constant 1 : index
    %c0_6 = arith.constant 0 : index
    %7 = memref.load %arg1[%c1, %c0_6] : memref<6x5xi32, #tpu.memory_space<smem>>
    %8 = arith.index_cast %7 : i32 to index
    %c0_7 = arith.constant 0 : index
    %9 = vector.load %arg2[%8, %c0_7] : memref<32x512xf32, #tpu.memory_space<vmem>>, vector<1x512xf32>
    %c2 = arith.constant 2 : index
    %c0_8 = arith.constant 0 : index
    %10 = memref.load %arg1[%c2, %c0_8] : memref<6x5xi32, #tpu.memory_space<smem>>
    %11 = arith.index_cast %10 : i32 to index
    %c0_9 = arith.constant 0 : index
    %12 = vector.load %arg2[%11, %c0_9] : memref<32x512xf32, #tpu.memory_space<vmem>>, vector<1x512xf32>
    %c3 = arith.constant 3 : index
    %c0_10 = arith.constant 0 : index
    %13 = memref.load %arg1[%c3, %c0_10] : memref<6x5xi32, #tpu.memory_space<smem>>
    %14 = arith.index_cast %13 : i32 to index
    %c0_11 = arith.constant 0 : index
    %15 = vector.load %arg2[%14, %c0_11] : memref<32x512xf32, #tpu.memory_space<vmem>>, vector<1x512xf32>
    %c4 = arith.constant 4 : index
    %c0_12 = arith.constant 0 : index
    %16 = memref.load %arg1[%c4, %c0_12] : memref<6x5xi32, #tpu.memory_space<smem>>
    %17 = arith.index_cast %16 : i32 to index
    %c0_13 = arith.constant 0 : index
    %18 = vector.load %arg2[%17, %c0_13] : memref<32x512xf32, #tpu.memory_space<vmem>>, vector<1x512xf32>
    %c5 = arith.constant 5 : index
    %c0_14 = arith.constant 0 : index
    %19 = memref.load %arg1[%c5, %c0_14] : memref<6x5xi32, #tpu.memory_space<smem>>
    %20 = arith.index_cast %19 : i32 to index
    %c0_15 = arith.constant 0 : index
    %21 = vector.load %arg2[%20, %c0_15] : memref<32x512xf32, #tpu.memory_space<vmem>>, vector<1x512xf32>
    %22 = tpu.concatenate %6, %9, %12, %15, %18, %21, %3 in 0 : vector<1x512xf32>, vector<1x512xf32>, vector<1x512xf32>, vector<1x512xf32>, vector<1x512xf32>, vector<1x512xf32>, vector<2x512xf32> -> vector<8x512xf32>
    %23 = arith.truncf %1 : vector<8x128xf32> to vector<8x128xbf16>
    %cst_16 = arith.constant dense<0.000000e+00> : vector<8x512xf32>
    %24 = tpu.matmul %23, %0, %cst_16 {dimension_numbers = #tpu.dot_dimension_numbers<[1], [0], [0], [1], [0, 0, 1, 1], [], []>} : vector<8x128xbf16>, vector<128x512xbf16>, vector<8x512xf32> -> vector<8x512xf32>
    %25 = arith.addf %22, %24 : vector<8x512xf32>
    %26 = vector.extract_strided_slice %25 {offsets = [0, 0], sizes = [8, 128], strides = [1, 1]} : vector<8x512xf32> to vector<8x128xf32>
    %cst_17 = arith.constant 5.000000e-01 : f32
    %27 = vector.broadcast %cst_17 : f32 to vector<8x128xf32>
    %28 = arith.mulf %27, %26 : vector<8x128xf32>
    %29 = math.tanh %28 : vector<8x128xf32>
    %cst_18 = arith.constant 5.000000e-01 : f32
    %30 = vector.broadcast %cst_18 : f32 to vector<8x128xf32>
    %31 = arith.mulf %30, %29 : vector<8x128xf32>
    %cst_19 = arith.constant 5.000000e-01 : f32
    %32 = vector.broadcast %cst_19 : f32 to vector<8x128xf32>
    %33 = arith.addf %31, %32 : vector<8x128xf32>
    %34 = vector.extract_strided_slice %25 {offsets = [0, 128], sizes = [8, 128], strides = [1, 1]} : vector<8x512xf32> to vector<8x128xf32>
    %cst_20 = arith.constant 5.000000e-01 : f32
    %35 = vector.broadcast %cst_20 : f32 to vector<8x128xf32>
    %36 = arith.mulf %35, %34 : vector<8x128xf32>
    %37 = math.tanh %36 : vector<8x128xf32>
    %cst_21 = arith.constant 5.000000e-01 : f32
    %38 = vector.broadcast %cst_21 : f32 to vector<8x128xf32>
    %39 = arith.mulf %38, %37 : vector<8x128xf32>
    %cst_22 = arith.constant 5.000000e-01 : f32
    %40 = vector.broadcast %cst_22 : f32 to vector<8x128xf32>
    %41 = arith.addf %39, %40 : vector<8x128xf32>
    %42 = vector.extract_strided_slice %25 {offsets = [0, 256], sizes = [8, 128], strides = [1, 1]} : vector<8x512xf32> to vector<8x128xf32>
    %43 = math.tanh %42 : vector<8x128xf32>
    %44 = vector.extract_strided_slice %25 {offsets = [0, 384], sizes = [8, 128], strides = [1, 1]} : vector<8x512xf32> to vector<8x128xf32>
    %cst_23 = arith.constant 5.000000e-01 : f32
    %45 = vector.broadcast %cst_23 : f32 to vector<8x128xf32>
    %46 = arith.mulf %45, %44 : vector<8x128xf32>
    %47 = math.tanh %46 : vector<8x128xf32>
    %cst_24 = arith.constant 5.000000e-01 : f32
    %48 = vector.broadcast %cst_24 : f32 to vector<8x128xf32>
    %49 = arith.mulf %48, %47 : vector<8x128xf32>
    %cst_25 = arith.constant 5.000000e-01 : f32
    %50 = vector.broadcast %cst_25 : f32 to vector<8x128xf32>
    %51 = arith.addf %49, %50 : vector<8x128xf32>
    %52 = arith.mulf %41, %2 : vector<8x128xf32>
    %53 = arith.mulf %33, %43 : vector<8x128xf32>
    %54 = arith.addf %52, %53 : vector<8x128xf32>
    %55 = math.tanh %54 : vector<8x128xf32>
    %56 = arith.mulf %51, %55 : vector<8x128xf32>
    %c0_26 = arith.constant 0 : index
    %c1_27 = arith.constant 1 : index
    %57 = memref.load %arg1[%c0_26, %c1_27] : memref<6x5xi32, #tpu.memory_space<smem>>
    %58 = arith.index_cast %57 : i32 to index
    %c0_28 = arith.constant 0 : index
    %59 = vector.load %arg2[%58, %c0_28] : memref<32x512xf32, #tpu.memory_space<vmem>>, vector<1x512xf32>
    %c1_29 = arith.constant 1 : index
    %c1_30 = arith.constant 1 : index
    %60 = memref.load %arg1[%c1_29, %c1_30] : memref<6x5xi32, #tpu.memory_space<smem>>
    %61 = arith.index_cast %60 : i32 to index
    %c0_31 = arith.constant 0 : index
    %62 = vector.load %arg2[%61, %c0_31] : memref<32x512xf32, #tpu.memory_space<vmem>>, vector<1x512xf32>
    %c2_32 = arith.constant 2 : index
    %c1_33 = arith.constant 1 : index
    %63 = memref.load %arg1[%c2_32, %c1_33] : memref<6x5xi32, #tpu.memory_space<smem>>
    %64 = arith.index_cast %63 : i32 to index
    %c0_34 = arith.constant 0 : index
    %65 = vector.load %arg2[%64, %c0_34] : memref<32x512xf32, #tpu.memory_space<vmem>>, vector<1x512xf32>
    %c3_35 = arith.constant 3 : index
    %c1_36 = arith.constant 1 : index
    %66 = memref.load %arg1[%c3_35, %c1_36] : memref<6x5xi32, #tpu.memory_space<smem>>
    %67 = arith.index_cast %66 : i32 to index
    %c0_37 = arith.constant 0 : index
    %68 = vector.load %arg2[%67, %c0_37] : memref<32x512xf32, #tpu.memory_space<vmem>>, vector<1x512xf32>
    %c4_38 = arith.constant 4 : index
    %c1_39 = arith.constant 1 : index
    %69 = memref.load %arg1[%c4_38, %c1_39] : memref<6x5xi32, #tpu.memory_space<smem>>
    %70 = arith.index_cast %69 : i32 to index
    %c0_40 = arith.constant 0 : index
    %71 = vector.load %arg2[%70, %c0_40] : memref<32x512xf32, #tpu.memory_space<vmem>>, vector<1x512xf32>
    %c5_41 = arith.constant 5 : index
    %c1_42 = arith.constant 1 : index
    %72 = memref.load %arg1[%c5_41, %c1_42] : memref<6x5xi32, #tpu.memory_space<smem>>
    %73 = arith.index_cast %72 : i32 to index
    %c0_43 = arith.constant 0 : index
    %74 = vector.load %arg2[%73, %c0_43] : memref<32x512xf32, #tpu.memory_space<vmem>>, vector<1x512xf32>
    %75 = tpu.concatenate %59, %62, %65, %68, %71, %74, %3 in 0 : vector<1x512xf32>, vector<1x512xf32>, vector<1x512xf32>, vector<1x512xf32>, vector<1x512xf32>, vector<1x512xf32>, vector<2x512xf32> -> vector<8x512xf32>
    %76 = arith.truncf %56 : vector<8x128xf32> to vector<8x128xbf16>
    %cst_44 = arith.constant dense<0.000000e+00> : vector<8x512xf32>
    %77 = tpu.matmul %76, %0, %cst_44 {dimension_numbers = #tpu.dot_dimension_numbers<[1], [0], [0], [1], [0, 0, 1, 1], [], []>} : vector<8x128xbf16>, vector<128x512xbf16>, vector<8x512xf32> -> vector<8x512xf32>
    %78 = arith.addf %75, %77 : vector<8x512xf32>
    %79 = vector.extract_strided_slice %78 {offsets = [0, 0], sizes = [8, 128], strides = [1, 1]} : vector<8x512xf32> to vector<8x128xf32>
    %cst_45 = arith.constant 5.000000e-01 : f32
    %80 = vector.broadcast %cst_45 : f32 to vector<8x128xf32>
    %81 = arith.mulf %80, %79 : vector<8x128xf32>
    %82 = math.tanh %81 : vector<8x128xf32>
    %cst_46 = arith.constant 5.000000e-01 : f32
    %83 = vector.broadcast %cst_46 : f32 to vector<8x128xf32>
    %84 = arith.mulf %83, %82 : vector<8x128xf32>
    %cst_47 = arith.constant 5.000000e-01 : f32
    %85 = vector.broadcast %cst_47 : f32 to vector<8x128xf32>
    %86 = arith.addf %84, %85 : vector<8x128xf32>
    %87 = vector.extract_strided_slice %78 {offsets = [0, 128], sizes = [8, 128], strides = [1, 1]} : vector<8x512xf32> to vector<8x128xf32>
    %cst_48 = arith.constant 5.000000e-01 : f32
    %88 = vector.broadcast %cst_48 : f32 to vector<8x128xf32>
    %89 = arith.mulf %88, %87 : vector<8x128xf32>
    %90 = math.tanh %89 : vector<8x128xf32>
    %cst_49 = arith.constant 5.000000e-01 : f32
    %91 = vector.broadcast %cst_49 : f32 to vector<8x128xf32>
    %92 = arith.mulf %91, %90 : vector<8x128xf32>
    %cst_50 = arith.constant 5.000000e-01 : f32
    %93 = vector.broadcast %cst_50 : f32 to vector<8x128xf32>
    %94 = arith.addf %92, %93 : vector<8x128xf32>
    %95 = vector.extract_strided_slice %78 {offsets = [0, 256], sizes = [8, 128], strides = [1, 1]} : vector<8x512xf32> to vector<8x128xf32>
    %96 = math.tanh %95 : vector<8x128xf32>
    %97 = vector.extract_strided_slice %78 {offsets = [0, 384], sizes = [8, 128], strides = [1, 1]} : vector<8x512xf32> to vector<8x128xf32>
    %cst_51 = arith.constant 5.000000e-01 : f32
    %98 = vector.broadcast %cst_51 : f32 to vector<8x128xf32>
    %99 = arith.mulf %98, %97 : vector<8x128xf32>
    %100 = math.tanh %99 : vector<8x128xf32>
    %cst_52 = arith.constant 5.000000e-01 : f32
    %101 = vector.broadcast %cst_52 : f32 to vector<8x128xf32>
    %102 = arith.mulf %101, %100 : vector<8x128xf32>
    %cst_53 = arith.constant 5.000000e-01 : f32
    %103 = vector.broadcast %cst_53 : f32 to vector<8x128xf32>
    %104 = arith.addf %102, %103 : vector<8x128xf32>
    %105 = arith.mulf %94, %54 : vector<8x128xf32>
    %106 = arith.mulf %86, %96 : vector<8x128xf32>
    %107 = arith.addf %105, %106 : vector<8x128xf32>
    %108 = math.tanh %107 : vector<8x128xf32>
    %109 = arith.mulf %104, %108 : vector<8x128xf32>
    %c0_54 = arith.constant 0 : index
    %c2_55 = arith.constant 2 : index
    %110 = memref.load %arg1[%c0_54, %c2_55] : memref<6x5xi32, #tpu.memory_space<smem>>
    %111 = arith.index_cast %110 : i32 to index
    %c0_56 = arith.constant 0 : index
    %112 = vector.load %arg2[%111, %c0_56] : memref<32x512xf32, #tpu.memory_space<vmem>>, vector<1x512xf32>
    %c1_57 = arith.constant 1 : index
    %c2_58 = arith.constant 2 : index
    %113 = memref.load %arg1[%c1_57, %c2_58] : memref<6x5xi32, #tpu.memory_space<smem>>
    %114 = arith.index_cast %113 : i32 to index
    %c0_59 = arith.constant 0 : index
    %115 = vector.load %arg2[%114, %c0_59] : memref<32x512xf32, #tpu.memory_space<vmem>>, vector<1x512xf32>
    %c2_60 = arith.constant 2 : index
    %c2_61 = arith.constant 2 : index
    %116 = memref.load %arg1[%c2_60, %c2_61] : memref<6x5xi32, #tpu.memory_space<smem>>
    %117 = arith.index_cast %116 : i32 to index
    %c0_62 = arith.constant 0 : index
    %118 = vector.load %arg2[%117, %c0_62] : memref<32x512xf32, #tpu.memory_space<vmem>>, vector<1x512xf32>
    %c3_63 = arith.constant 3 : index
    %c2_64 = arith.constant 2 : index
    %119 = memref.load %arg1[%c3_63, %c2_64] : memref<6x5xi32, #tpu.memory_space<smem>>
    %120 = arith.index_cast %119 : i32 to index
    %c0_65 = arith.constant 0 : index
    %121 = vector.load %arg2[%120, %c0_65] : memref<32x512xf32, #tpu.memory_space<vmem>>, vector<1x512xf32>
    %c4_66 = arith.constant 4 : index
    %c2_67 = arith.constant 2 : index
    %122 = memref.load %arg1[%c4_66, %c2_67] : memref<6x5xi32, #tpu.memory_space<smem>>
    %123 = arith.index_cast %122 : i32 to index
    %c0_68 = arith.constant 0 : index
    %124 = vector.load %arg2[%123, %c0_68] : memref<32x512xf32, #tpu.memory_space<vmem>>, vector<1x512xf32>
    %c5_69 = arith.constant 5 : index
    %c2_70 = arith.constant 2 : index
    %125 = memref.load %arg1[%c5_69, %c2_70] : memref<6x5xi32, #tpu.memory_space<smem>>
    %126 = arith.index_cast %125 : i32 to index
    %c0_71 = arith.constant 0 : index
    %127 = vector.load %arg2[%126, %c0_71] : memref<32x512xf32, #tpu.memory_space<vmem>>, vector<1x512xf32>
    %128 = tpu.concatenate %112, %115, %118, %121, %124, %127, %3 in 0 : vector<1x512xf32>, vector<1x512xf32>, vector<1x512xf32>, vector<1x512xf32>, vector<1x512xf32>, vector<1x512xf32>, vector<2x512xf32> -> vector<8x512xf32>
    %129 = arith.truncf %109 : vector<8x128xf32> to vector<8x128xbf16>
    %cst_72 = arith.constant dense<0.000000e+00> : vector<8x512xf32>
    %130 = tpu.matmul %129, %0, %cst_72 {dimension_numbers = #tpu.dot_dimension_numbers<[1], [0], [0], [1], [0, 0, 1, 1], [], []>} : vector<8x128xbf16>, vector<128x512xbf16>, vector<8x512xf32> -> vector<8x512xf32>
    %131 = arith.addf %128, %130 : vector<8x512xf32>
    %132 = vector.extract_strided_slice %131 {offsets = [0, 0], sizes = [8, 128], strides = [1, 1]} : vector<8x512xf32> to vector<8x128xf32>
    %cst_73 = arith.constant 5.000000e-01 : f32
    %133 = vector.broadcast %cst_73 : f32 to vector<8x128xf32>
    %134 = arith.mulf %133, %132 : vector<8x128xf32>
    %135 = math.tanh %134 : vector<8x128xf32>
    %cst_74 = arith.constant 5.000000e-01 : f32
    %136 = vector.broadcast %cst_74 : f32 to vector<8x128xf32>
    %137 = arith.mulf %136, %135 : vector<8x128xf32>
    %cst_75 = arith.constant 5.000000e-01 : f32
    %138 = vector.broadcast %cst_75 : f32 to vector<8x128xf32>
    %139 = arith.addf %137, %138 : vector<8x128xf32>
    %140 = vector.extract_strided_slice %131 {offsets = [0, 128], sizes = [8, 128], strides = [1, 1]} : vector<8x512xf32> to vector<8x128xf32>
    %cst_76 = arith.constant 5.000000e-01 : f32
    %141 = vector.broadcast %cst_76 : f32 to vector<8x128xf32>
    %142 = arith.mulf %141, %140 : vector<8x128xf32>
    %143 = math.tanh %142 : vector<8x128xf32>
    %cst_77 = arith.constant 5.000000e-01 : f32
    %144 = vector.broadcast %cst_77 : f32 to vector<8x128xf32>
    %145 = arith.mulf %144, %143 : vector<8x128xf32>
    %cst_78 = arith.constant 5.000000e-01 : f32
    %146 = vector.broadcast %cst_78 : f32 to vector<8x128xf32>
    %147 = arith.addf %145, %146 : vector<8x128xf32>
    %148 = vector.extract_strided_slice %131 {offsets = [0, 256], sizes = [8, 128], strides = [1, 1]} : vector<8x512xf32> to vector<8x128xf32>
    %149 = math.tanh %148 : vector<8x128xf32>
    %150 = vector.extract_strided_slice %131 {offsets = [0, 384], sizes = [8, 128], strides = [1, 1]} : vector<8x512xf32> to vector<8x128xf32>
    %cst_79 = arith.constant 5.000000e-01 : f32
    %151 = vector.broadcast %cst_79 : f32 to vector<8x128xf32>
    %152 = arith.mulf %151, %150 : vector<8x128xf32>
    %153 = math.tanh %152 : vector<8x128xf32>
    %cst_80 = arith.constant 5.000000e-01 : f32
    %154 = vector.broadcast %cst_80 : f32 to vector<8x128xf32>
    %155 = arith.mulf %154, %153 : vector<8x128xf32>
    %cst_81 = arith.constant 5.000000e-01 : f32
    %156 = vector.broadcast %cst_81 : f32 to vector<8x128xf32>
    %157 = arith.addf %155, %156 : vector<8x128xf32>
    %158 = arith.mulf %147, %107 : vector<8x128xf32>
    %159 = arith.mulf %139, %149 : vector<8x128xf32>
    %160 = arith.addf %158, %159 : vector<8x128xf32>
    %161 = math.tanh %160 : vector<8x128xf32>
    %162 = arith.mulf %157, %161 : vector<8x128xf32>
    %c0_82 = arith.constant 0 : index
    %c3_83 = arith.constant 3 : index
    %163 = memref.load %arg1[%c0_82, %c3_83] : memref<6x5xi32, #tpu.memory_space<smem>>
    %164 = arith.index_cast %163 : i32 to index
    %c0_84 = arith.constant 0 : index
    %165 = vector.load %arg2[%164, %c0_84] : memref<32x512xf32, #tpu.memory_space<vmem>>, vector<1x512xf32>
    %c1_85 = arith.constant 1 : index
    %c3_86 = arith.constant 3 : index
    %166 = memref.load %arg1[%c1_85, %c3_86] : memref<6x5xi32, #tpu.memory_space<smem>>
    %167 = arith.index_cast %166 : i32 to index
    %c0_87 = arith.constant 0 : index
    %168 = vector.load %arg2[%167, %c0_87] : memref<32x512xf32, #tpu.memory_space<vmem>>, vector<1x512xf32>
    %c2_88 = arith.constant 2 : index
    %c3_89 = arith.constant 3 : index
    %169 = memref.load %arg1[%c2_88, %c3_89] : memref<6x5xi32, #tpu.memory_space<smem>>
    %170 = arith.index_cast %169 : i32 to index
    %c0_90 = arith.constant 0 : index
    %171 = vector.load %arg2[%170, %c0_90] : memref<32x512xf32, #tpu.memory_space<vmem>>, vector<1x512xf32>
    %c3_91 = arith.constant 3 : index
    %c3_92 = arith.constant 3 : index
    %172 = memref.load %arg1[%c3_91, %c3_92] : memref<6x5xi32, #tpu.memory_space<smem>>
    %173 = arith.index_cast %172 : i32 to index
    %c0_93 = arith.constant 0 : index
    %174 = vector.load %arg2[%173, %c0_93] : memref<32x512xf32, #tpu.memory_space<vmem>>, vector<1x512xf32>
    %c4_94 = arith.constant 4 : index
    %c3_95 = arith.constant 3 : index
    %175 = memref.load %arg1[%c4_94, %c3_95] : memref<6x5xi32, #tpu.memory_space<smem>>
    %176 = arith.index_cast %175 : i32 to index
    %c0_96 = arith.constant 0 : index
    %177 = vector.load %arg2[%176, %c0_96] : memref<32x512xf32, #tpu.memory_space<vmem>>, vector<1x512xf32>
    %c5_97 = arith.constant 5 : index
    %c3_98 = arith.constant 3 : index
    %178 = memref.load %arg1[%c5_97, %c3_98] : memref<6x5xi32, #tpu.memory_space<smem>>
    %179 = arith.index_cast %178 : i32 to index
    %c0_99 = arith.constant 0 : index
    %180 = vector.load %arg2[%179, %c0_99] : memref<32x512xf32, #tpu.memory_space<vmem>>, vector<1x512xf32>
    %181 = tpu.concatenate %165, %168, %171, %174, %177, %180, %3 in 0 : vector<1x512xf32>, vector<1x512xf32>, vector<1x512xf32>, vector<1x512xf32>, vector<1x512xf32>, vector<1x512xf32>, vector<2x512xf32> -> vector<8x512xf32>
    %182 = arith.truncf %162 : vector<8x128xf32> to vector<8x128xbf16>
    %cst_100 = arith.constant dense<0.000000e+00> : vector<8x512xf32>
    %183 = tpu.matmul %182, %0, %cst_100 {dimension_numbers = #tpu.dot_dimension_numbers<[1], [0], [0], [1], [0, 0, 1, 1], [], []>} : vector<8x128xbf16>, vector<128x512xbf16>, vector<8x512xf32> -> vector<8x512xf32>
    %184 = arith.addf %181, %183 : vector<8x512xf32>
    %185 = vector.extract_strided_slice %184 {offsets = [0, 0], sizes = [8, 128], strides = [1, 1]} : vector<8x512xf32> to vector<8x128xf32>
    %cst_101 = arith.constant 5.000000e-01 : f32
    %186 = vector.broadcast %cst_101 : f32 to vector<8x128xf32>
    %187 = arith.mulf %186, %185 : vector<8x128xf32>
    %188 = math.tanh %187 : vector<8x128xf32>
    %cst_102 = arith.constant 5.000000e-01 : f32
    %189 = vector.broadcast %cst_102 : f32 to vector<8x128xf32>
    %190 = arith.mulf %189, %188 : vector<8x128xf32>
    %cst_103 = arith.constant 5.000000e-01 : f32
    %191 = vector.broadcast %cst_103 : f32 to vector<8x128xf32>
    %192 = arith.addf %190, %191 : vector<8x128xf32>
    %193 = vector.extract_strided_slice %184 {offsets = [0, 128], sizes = [8, 128], strides = [1, 1]} : vector<8x512xf32> to vector<8x128xf32>
    %cst_104 = arith.constant 5.000000e-01 : f32
    %194 = vector.broadcast %cst_104 : f32 to vector<8x128xf32>
    %195 = arith.mulf %194, %193 : vector<8x128xf32>
    %196 = math.tanh %195 : vector<8x128xf32>
    %cst_105 = arith.constant 5.000000e-01 : f32
    %197 = vector.broadcast %cst_105 : f32 to vector<8x128xf32>
    %198 = arith.mulf %197, %196 : vector<8x128xf32>
    %cst_106 = arith.constant 5.000000e-01 : f32
    %199 = vector.broadcast %cst_106 : f32 to vector<8x128xf32>
    %200 = arith.addf %198, %199 : vector<8x128xf32>
    %201 = vector.extract_strided_slice %184 {offsets = [0, 256], sizes = [8, 128], strides = [1, 1]} : vector<8x512xf32> to vector<8x128xf32>
    %202 = math.tanh %201 : vector<8x128xf32>
    %203 = vector.extract_strided_slice %184 {offsets = [0, 384], sizes = [8, 128], strides = [1, 1]} : vector<8x512xf32> to vector<8x128xf32>
    %cst_107 = arith.constant 5.000000e-01 : f32
    %204 = vector.broadcast %cst_107 : f32 to vector<8x128xf32>
    %205 = arith.mulf %204, %203 : vector<8x128xf32>
    %206 = math.tanh %205 : vector<8x128xf32>
    %cst_108 = arith.constant 5.000000e-01 : f32
    %207 = vector.broadcast %cst_108 : f32 to vector<8x128xf32>
    %208 = arith.mulf %207, %206 : vector<8x128xf32>
    %cst_109 = arith.constant 5.000000e-01 : f32
    %209 = vector.broadcast %cst_109 : f32 to vector<8x128xf32>
    %210 = arith.addf %208, %209 : vector<8x128xf32>
    %211 = arith.mulf %200, %160 : vector<8x128xf32>
    %212 = arith.mulf %192, %202 : vector<8x128xf32>
    %213 = arith.addf %211, %212 : vector<8x128xf32>
    %214 = math.tanh %213 : vector<8x128xf32>
    %215 = arith.mulf %210, %214 : vector<8x128xf32>
    %c0_110 = arith.constant 0 : index
    %c4_111 = arith.constant 4 : index
    %216 = memref.load %arg1[%c0_110, %c4_111] : memref<6x5xi32, #tpu.memory_space<smem>>
    %217 = arith.index_cast %216 : i32 to index
    %c0_112 = arith.constant 0 : index
    %218 = vector.load %arg2[%217, %c0_112] : memref<32x512xf32, #tpu.memory_space<vmem>>, vector<1x512xf32>
    %c1_113 = arith.constant 1 : index
    %c4_114 = arith.constant 4 : index
    %219 = memref.load %arg1[%c1_113, %c4_114] : memref<6x5xi32, #tpu.memory_space<smem>>
    %220 = arith.index_cast %219 : i32 to index
    %c0_115 = arith.constant 0 : index
    %221 = vector.load %arg2[%220, %c0_115] : memref<32x512xf32, #tpu.memory_space<vmem>>, vector<1x512xf32>
    %c2_116 = arith.constant 2 : index
    %c4_117 = arith.constant 4 : index
    %222 = memref.load %arg1[%c2_116, %c4_117] : memref<6x5xi32, #tpu.memory_space<smem>>
    %223 = arith.index_cast %222 : i32 to index
    %c0_118 = arith.constant 0 : index
    %224 = vector.load %arg2[%223, %c0_118] : memref<32x512xf32, #tpu.memory_space<vmem>>, vector<1x512xf32>
    %c3_119 = arith.constant 3 : index
    %c4_120 = arith.constant 4 : index
    %225 = memref.load %arg1[%c3_119, %c4_120] : memref<6x5xi32, #tpu.memory_space<smem>>
    %226 = arith.index_cast %225 : i32 to index
    %c0_121 = arith.constant 0 : index
    %227 = vector.load %arg2[%226, %c0_121] : memref<32x512xf32, #tpu.memory_space<vmem>>, vector<1x512xf32>
    %c4_122 = arith.constant 4 : index
    %c4_123 = arith.constant 4 : index
    %228 = memref.load %arg1[%c4_122, %c4_123] : memref<6x5xi32, #tpu.memory_space<smem>>
    %229 = arith.index_cast %228 : i32 to index
    %c0_124 = arith.constant 0 : index
    %230 = vector.load %arg2[%229, %c0_124] : memref<32x512xf32, #tpu.memory_space<vmem>>, vector<1x512xf32>
    %c5_125 = arith.constant 5 : index
    %c4_126 = arith.constant 4 : index
    %231 = memref.load %arg1[%c5_125, %c4_126] : memref<6x5xi32, #tpu.memory_space<smem>>
    %232 = arith.index_cast %231 : i32 to index
    %c0_127 = arith.constant 0 : index
    %233 = vector.load %arg2[%232, %c0_127] : memref<32x512xf32, #tpu.memory_space<vmem>>, vector<1x512xf32>
    %234 = tpu.concatenate %218, %221, %224, %227, %230, %233, %3 in 0 : vector<1x512xf32>, vector<1x512xf32>, vector<1x512xf32>, vector<1x512xf32>, vector<1x512xf32>, vector<1x512xf32>, vector<2x512xf32> -> vector<8x512xf32>
    %235 = arith.truncf %215 : vector<8x128xf32> to vector<8x128xbf16>
    %cst_128 = arith.constant dense<0.000000e+00> : vector<8x512xf32>
    %236 = tpu.matmul %235, %0, %cst_128 {dimension_numbers = #tpu.dot_dimension_numbers<[1], [0], [0], [1], [0, 0, 1, 1], [], []>} : vector<8x128xbf16>, vector<128x512xbf16>, vector<8x512xf32> -> vector<8x512xf32>
    %237 = arith.addf %234, %236 : vector<8x512xf32>
    %238 = vector.extract_strided_slice %237 {offsets = [0, 0], sizes = [8, 128], strides = [1, 1]} : vector<8x512xf32> to vector<8x128xf32>
    %cst_129 = arith.constant 5.000000e-01 : f32
    %239 = vector.broadcast %cst_129 : f32 to vector<8x128xf32>
    %240 = arith.mulf %239, %238 : vector<8x128xf32>
    %241 = math.tanh %240 : vector<8x128xf32>
    %cst_130 = arith.constant 5.000000e-01 : f32
    %242 = vector.broadcast %cst_130 : f32 to vector<8x128xf32>
    %243 = arith.mulf %242, %241 : vector<8x128xf32>
    %cst_131 = arith.constant 5.000000e-01 : f32
    %244 = vector.broadcast %cst_131 : f32 to vector<8x128xf32>
    %245 = arith.addf %243, %244 : vector<8x128xf32>
    %246 = vector.extract_strided_slice %237 {offsets = [0, 128], sizes = [8, 128], strides = [1, 1]} : vector<8x512xf32> to vector<8x128xf32>
    %cst_132 = arith.constant 5.000000e-01 : f32
    %247 = vector.broadcast %cst_132 : f32 to vector<8x128xf32>
    %248 = arith.mulf %247, %246 : vector<8x128xf32>
    %249 = math.tanh %248 : vector<8x128xf32>
    %cst_133 = arith.constant 5.000000e-01 : f32
    %250 = vector.broadcast %cst_133 : f32 to vector<8x128xf32>
    %251 = arith.mulf %250, %249 : vector<8x128xf32>
    %cst_134 = arith.constant 5.000000e-01 : f32
    %252 = vector.broadcast %cst_134 : f32 to vector<8x128xf32>
    %253 = arith.addf %251, %252 : vector<8x128xf32>
    %254 = vector.extract_strided_slice %237 {offsets = [0, 256], sizes = [8, 128], strides = [1, 1]} : vector<8x512xf32> to vector<8x128xf32>
    %255 = math.tanh %254 : vector<8x128xf32>
    %256 = vector.extract_strided_slice %237 {offsets = [0, 384], sizes = [8, 128], strides = [1, 1]} : vector<8x512xf32> to vector<8x128xf32>
    %cst_135 = arith.constant 5.000000e-01 : f32
    %257 = vector.broadcast %cst_135 : f32 to vector<8x128xf32>
    %258 = arith.mulf %257, %256 : vector<8x128xf32>
    %259 = math.tanh %258 : vector<8x128xf32>
    %cst_136 = arith.constant 5.000000e-01 : f32
    %260 = vector.broadcast %cst_136 : f32 to vector<8x128xf32>
    %261 = arith.mulf %260, %259 : vector<8x128xf32>
    %cst_137 = arith.constant 5.000000e-01 : f32
    %262 = vector.broadcast %cst_137 : f32 to vector<8x128xf32>
    %263 = arith.addf %261, %262 : vector<8x128xf32>
    %264 = arith.mulf %253, %213 : vector<8x128xf32>
    %265 = arith.mulf %245, %255 : vector<8x128xf32>
    %266 = arith.addf %264, %265 : vector<8x128xf32>
    %267 = math.tanh %266 : vector<8x128xf32>
    %268 = arith.mulf %263, %267 : vector<8x128xf32>
    %269 = arith.truncf %268 : vector<8x128xf32> to vector<8x128xbf16>
    %c0_138 = arith.constant 0 : index
    %c0_139 = arith.constant 0 : index
    %270 = vector.load %arg5[%c0_138, %c0_139] : memref<128x512xbf16, #tpu.memory_space<vmem>>, vector<128x512xbf16>
    %cst_140 = arith.constant dense<0.000000e+00> : vector<8x512xf32>
    %271 = tpu.matmul %269, %270, %cst_140 {dimension_numbers = #tpu.dot_dimension_numbers<[1], [0], [0], [1], [0, 0, 1, 1], [], []>} : vector<8x128xbf16>, vector<128x512xbf16>, vector<8x512xf32> -> vector<8x512xf32>
    %c0_141 = arith.constant 0 : index
    %c0_142 = arith.constant 0 : index
    %272 = vector.load %arg6[%c0_141, %c0_142] : memref<128x512xbf16, #tpu.memory_space<vmem>>, vector<128x512xbf16>
    %cst_143 = arith.constant 0.000000e+00 : f32
    %273 = vector.broadcast %cst_143 : f32 to vector<1x128xf32>
    %cst_144 = arith.constant 0.000000e+00 : f32
    %274 = vector.broadcast %cst_144 : f32 to vector<1x128xf32>
    %c0_145 = arith.constant 0 : index
    %275 = memref.load %arg0[%c0_145] : memref<6xi32, #tpu.memory_space<smem>>
    %276 = arith.index_cast %275 : i32 to index
    %c0_146 = arith.constant 0 : index
    %277 = vector.load %arg3[%276, %c0_146] : memref<24x512xf32, #tpu.memory_space<vmem>>, vector<1x512xf32>
    %278 = vector.extract_strided_slice %271 {offsets = [0, 0], sizes = [1, 512], strides = [1, 1]} : vector<8x512xf32> to vector<1x512xf32>
    %279 = arith.addf %277, %278 : vector<1x512xf32>
    %280 = arith.truncf %273 : vector<1x128xf32> to vector<1x128xbf16>
    %cst_147 = arith.constant dense<0.000000e+00> : vector<1x512xf32>
    %281 = tpu.matmul %280, %272, %cst_147 {dimension_numbers = #tpu.dot_dimension_numbers<[1], [0], [0], [1], [0, 0, 1, 1], [], []>} : vector<1x128xbf16>, vector<128x512xbf16>, vector<1x512xf32> -> vector<1x512xf32>
    %282 = arith.addf %279, %281 : vector<1x512xf32>
    %283 = vector.extract_strided_slice %282 {offsets = [0, 0], sizes = [1, 128], strides = [1, 1]} : vector<1x512xf32> to vector<1x128xf32>
    %cst_148 = arith.constant 5.000000e-01 : f32
    %284 = vector.broadcast %cst_148 : f32 to vector<1x128xf32>
    %285 = arith.mulf %284, %283 : vector<1x128xf32>
    %286 = math.tanh %285 : vector<1x128xf32>
    %cst_149 = arith.constant 5.000000e-01 : f32
    %287 = vector.broadcast %cst_149 : f32 to vector<1x128xf32>
    %288 = arith.mulf %287, %286 : vector<1x128xf32>
    %cst_150 = arith.constant 5.000000e-01 : f32
    %289 = vector.broadcast %cst_150 : f32 to vector<1x128xf32>
    %290 = arith.addf %288, %289 : vector<1x128xf32>
    %291 = vector.extract_strided_slice %282 {offsets = [0, 128], sizes = [1, 128], strides = [1, 1]} : vector<1x512xf32> to vector<1x128xf32>
    %cst_151 = arith.constant 5.000000e-01 : f32
    %292 = vector.broadcast %cst_151 : f32 to vector<1x128xf32>
    %293 = arith.mulf %292, %291 : vector<1x128xf32>
    %294 = math.tanh %293 : vector<1x128xf32>
    %cst_152 = arith.constant 5.000000e-01 : f32
    %295 = vector.broadcast %cst_152 : f32 to vector<1x128xf32>
    %296 = arith.mulf %295, %294 : vector<1x128xf32>
    %cst_153 = arith.constant 5.000000e-01 : f32
    %297 = vector.broadcast %cst_153 : f32 to vector<1x128xf32>
    %298 = arith.addf %296, %297 : vector<1x128xf32>
    %299 = vector.extract_strided_slice %282 {offsets = [0, 256], sizes = [1, 128], strides = [1, 1]} : vector<1x512xf32> to vector<1x128xf32>
    %300 = math.tanh %299 : vector<1x128xf32>
    %301 = vector.extract_strided_slice %282 {offsets = [0, 384], sizes = [1, 128], strides = [1, 1]} : vector<1x512xf32> to vector<1x128xf32>
    %cst_154 = arith.constant 5.000000e-01 : f32
    %302 = vector.broadcast %cst_154 : f32 to vector<1x128xf32>
    %303 = arith.mulf %302, %301 : vector<1x128xf32>
    %304 = math.tanh %303 : vector<1x128xf32>
    %cst_155 = arith.constant 5.000000e-01 : f32
    %305 = vector.broadcast %cst_155 : f32 to vector<1x128xf32>
    %306 = arith.mulf %305, %304 : vector<1x128xf32>
    %cst_156 = arith.constant 5.000000e-01 : f32
    %307 = vector.broadcast %cst_156 : f32 to vector<1x128xf32>
    %308 = arith.addf %306, %307 : vector<1x128xf32>
    %309 = arith.mulf %298, %274 : vector<1x128xf32>
    %310 = arith.mulf %290, %300 : vector<1x128xf32>
    %311 = arith.addf %309, %310 : vector<1x128xf32>
    %312 = math.tanh %311 : vector<1x128xf32>
    %313 = arith.mulf %308, %312 : vector<1x128xf32>
    %c1_157 = arith.constant 1 : index
    %314 = memref.load %arg0[%c1_157] : memref<6xi32, #tpu.memory_space<smem>>
    %315 = arith.index_cast %314 : i32 to index
    %c0_158 = arith.constant 0 : index
    %316 = vector.load %arg3[%315, %c0_158] : memref<24x512xf32, #tpu.memory_space<vmem>>, vector<1x512xf32>
    %317 = vector.extract_strided_slice %271 {offsets = [1, 0], sizes = [1, 512], strides = [1, 1]} : vector<8x512xf32> to vector<1x512xf32>
    %318 = arith.addf %316, %317 : vector<1x512xf32>
    %319 = arith.truncf %313 : vector<1x128xf32> to vector<1x128xbf16>
    %cst_159 = arith.constant dense<0.000000e+00> : vector<1x512xf32>
    %320 = tpu.matmul %319, %272, %cst_159 {dimension_numbers = #tpu.dot_dimension_numbers<[1], [0], [0], [1], [0, 0, 1, 1], [], []>} : vector<1x128xbf16>, vector<128x512xbf16>, vector<1x512xf32> -> vector<1x512xf32>
    %321 = arith.addf %318, %320 : vector<1x512xf32>
    %322 = vector.extract_strided_slice %321 {offsets = [0, 0], sizes = [1, 128], strides = [1, 1]} : vector<1x512xf32> to vector<1x128xf32>
    %cst_160 = arith.constant 5.000000e-01 : f32
    %323 = vector.broadcast %cst_160 : f32 to vector<1x128xf32>
    %324 = arith.mulf %323, %322 : vector<1x128xf32>
    %325 = math.tanh %324 : vector<1x128xf32>
    %cst_161 = arith.constant 5.000000e-01 : f32
    %326 = vector.broadcast %cst_161 : f32 to vector<1x128xf32>
    %327 = arith.mulf %326, %325 : vector<1x128xf32>
    %cst_162 = arith.constant 5.000000e-01 : f32
    %328 = vector.broadcast %cst_162 : f32 to vector<1x128xf32>
    %329 = arith.addf %327, %328 : vector<1x128xf32>
    %330 = vector.extract_strided_slice %321 {offsets = [0, 128], sizes = [1, 128], strides = [1, 1]} : vector<1x512xf32> to vector<1x128xf32>
    %cst_163 = arith.constant 5.000000e-01 : f32
    %331 = vector.broadcast %cst_163 : f32 to vector<1x128xf32>
    %332 = arith.mulf %331, %330 : vector<1x128xf32>
    %333 = math.tanh %332 : vector<1x128xf32>
    %cst_164 = arith.constant 5.000000e-01 : f32
    %334 = vector.broadcast %cst_164 : f32 to vector<1x128xf32>
    %335 = arith.mulf %334, %333 : vector<1x128xf32>
    %cst_165 = arith.constant 5.000000e-01 : f32
    %336 = vector.broadcast %cst_165 : f32 to vector<1x128xf32>
    %337 = arith.addf %335, %336 : vector<1x128xf32>
    %338 = vector.extract_strided_slice %321 {offsets = [0, 256], sizes = [1, 128], strides = [1, 1]} : vector<1x512xf32> to vector<1x128xf32>
    %339 = math.tanh %338 : vector<1x128xf32>
    %340 = vector.extract_strided_slice %321 {offsets = [0, 384], sizes = [1, 128], strides = [1, 1]} : vector<1x512xf32> to vector<1x128xf32>
    %cst_166 = arith.constant 5.000000e-01 : f32
    %341 = vector.broadcast %cst_166 : f32 to vector<1x128xf32>
    %342 = arith.mulf %341, %340 : vector<1x128xf32>
    %343 = math.tanh %342 : vector<1x128xf32>
    %cst_167 = arith.constant 5.000000e-01 : f32
    %344 = vector.broadcast %cst_167 : f32 to vector<1x128xf32>
    %345 = arith.mulf %344, %343 : vector<1x128xf32>
    %cst_168 = arith.constant 5.000000e-01 : f32
    %346 = vector.broadcast %cst_168 : f32 to vector<1x128xf32>
    %347 = arith.addf %345, %346 : vector<1x128xf32>
    %348 = arith.mulf %337, %311 : vector<1x128xf32>
    %349 = arith.mulf %329, %339 : vector<1x128xf32>
    %350 = arith.addf %348, %349 : vector<1x128xf32>
    %351 = math.tanh %350 : vector<1x128xf32>
    %352 = arith.mulf %347, %351 : vector<1x128xf32>
    %c2_169 = arith.constant 2 : index
    %353 = memref.load %arg0[%c2_169] : memref<6xi32, #tpu.memory_space<smem>>
    %354 = arith.index_cast %353 : i32 to index
    %c0_170 = arith.constant 0 : index
    %355 = vector.load %arg3[%354, %c0_170] : memref<24x512xf32, #tpu.memory_space<vmem>>, vector<1x512xf32>
    %356 = vector.extract_strided_slice %271 {offsets = [2, 0], sizes = [1, 512], strides = [1, 1]} : vector<8x512xf32> to vector<1x512xf32>
    %357 = arith.addf %355, %356 : vector<1x512xf32>
    %358 = arith.truncf %352 : vector<1x128xf32> to vector<1x128xbf16>
    %cst_171 = arith.constant dense<0.000000e+00> : vector<1x512xf32>
    %359 = tpu.matmul %358, %272, %cst_171 {dimension_numbers = #tpu.dot_dimension_numbers<[1], [0], [0], [1], [0, 0, 1, 1], [], []>} : vector<1x128xbf16>, vector<128x512xbf16>, vector<1x512xf32> -> vector<1x512xf32>
    %360 = arith.addf %357, %359 : vector<1x512xf32>
    %361 = vector.extract_strided_slice %360 {offsets = [0, 0], sizes = [1, 128], strides = [1, 1]} : vector<1x512xf32> to vector<1x128xf32>
    %cst_172 = arith.constant 5.000000e-01 : f32
    %362 = vector.broadcast %cst_172 : f32 to vector<1x128xf32>
    %363 = arith.mulf %362, %361 : vector<1x128xf32>
    %364 = math.tanh %363 : vector<1x128xf32>
    %cst_173 = arith.constant 5.000000e-01 : f32
    %365 = vector.broadcast %cst_173 : f32 to vector<1x128xf32>
    %366 = arith.mulf %365, %364 : vector<1x128xf32>
    %cst_174 = arith.constant 5.000000e-01 : f32
    %367 = vector.broadcast %cst_174 : f32 to vector<1x128xf32>
    %368 = arith.addf %366, %367 : vector<1x128xf32>
    %369 = vector.extract_strided_slice %360 {offsets = [0, 128], sizes = [1, 128], strides = [1, 1]} : vector<1x512xf32> to vector<1x128xf32>
    %cst_175 = arith.constant 5.000000e-01 : f32
    %370 = vector.broadcast %cst_175 : f32 to vector<1x128xf32>
    %371 = arith.mulf %370, %369 : vector<1x128xf32>
    %372 = math.tanh %371 : vector<1x128xf32>
    %cst_176 = arith.constant 5.000000e-01 : f32
    %373 = vector.broadcast %cst_176 : f32 to vector<1x128xf32>
    %374 = arith.mulf %373, %372 : vector<1x128xf32>
    %cst_177 = arith.constant 5.000000e-01 : f32
    %375 = vector.broadcast %cst_177 : f32 to vector<1x128xf32>
    %376 = arith.addf %374, %375 : vector<1x128xf32>
    %377 = vector.extract_strided_slice %360 {offsets = [0, 256], sizes = [1, 128], strides = [1, 1]} : vector<1x512xf32> to vector<1x128xf32>
    %378 = math.tanh %377 : vector<1x128xf32>
    %379 = vector.extract_strided_slice %360 {offsets = [0, 384], sizes = [1, 128], strides = [1, 1]} : vector<1x512xf32> to vector<1x128xf32>
    %cst_178 = arith.constant 5.000000e-01 : f32
    %380 = vector.broadcast %cst_178 : f32 to vector<1x128xf32>
    %381 = arith.mulf %380, %379 : vector<1x128xf32>
    %382 = math.tanh %381 : vector<1x128xf32>
    %cst_179 = arith.constant 5.000000e-01 : f32
    %383 = vector.broadcast %cst_179 : f32 to vector<1x128xf32>
    %384 = arith.mulf %383, %382 : vector<1x128xf32>
    %cst_180 = arith.constant 5.000000e-01 : f32
    %385 = vector.broadcast %cst_180 : f32 to vector<1x128xf32>
    %386 = arith.addf %384, %385 : vector<1x128xf32>
    %387 = arith.mulf %376, %350 : vector<1x128xf32>
    %388 = arith.mulf %368, %378 : vector<1x128xf32>
    %389 = arith.addf %387, %388 : vector<1x128xf32>
    %390 = math.tanh %389 : vector<1x128xf32>
    %391 = arith.mulf %386, %390 : vector<1x128xf32>
    %c3_181 = arith.constant 3 : index
    %392 = memref.load %arg0[%c3_181] : memref<6xi32, #tpu.memory_space<smem>>
    %393 = arith.index_cast %392 : i32 to index
    %c0_182 = arith.constant 0 : index
    %394 = vector.load %arg3[%393, %c0_182] : memref<24x512xf32, #tpu.memory_space<vmem>>, vector<1x512xf32>
    %395 = vector.extract_strided_slice %271 {offsets = [3, 0], sizes = [1, 512], strides = [1, 1]} : vector<8x512xf32> to vector<1x512xf32>
    %396 = arith.addf %394, %395 : vector<1x512xf32>
    %397 = arith.truncf %391 : vector<1x128xf32> to vector<1x128xbf16>
    %cst_183 = arith.constant dense<0.000000e+00> : vector<1x512xf32>
    %398 = tpu.matmul %397, %272, %cst_183 {dimension_numbers = #tpu.dot_dimension_numbers<[1], [0], [0], [1], [0, 0, 1, 1], [], []>} : vector<1x128xbf16>, vector<128x512xbf16>, vector<1x512xf32> -> vector<1x512xf32>
    %399 = arith.addf %396, %398 : vector<1x512xf32>
    %400 = vector.extract_strided_slice %399 {offsets = [0, 0], sizes = [1, 128], strides = [1, 1]} : vector<1x512xf32> to vector<1x128xf32>
    %cst_184 = arith.constant 5.000000e-01 : f32
    %401 = vector.broadcast %cst_184 : f32 to vector<1x128xf32>
    %402 = arith.mulf %401, %400 : vector<1x128xf32>
    %403 = math.tanh %402 : vector<1x128xf32>
    %cst_185 = arith.constant 5.000000e-01 : f32
    %404 = vector.broadcast %cst_185 : f32 to vector<1x128xf32>
    %405 = arith.mulf %404, %403 : vector<1x128xf32>
    %cst_186 = arith.constant 5.000000e-01 : f32
    %406 = vector.broadcast %cst_186 : f32 to vector<1x128xf32>
    %407 = arith.addf %405, %406 : vector<1x128xf32>
    %408 = vector.extract_strided_slice %399 {offsets = [0, 128], sizes = [1, 128], strides = [1, 1]} : vector<1x512xf32> to vector<1x128xf32>
    %cst_187 = arith.constant 5.000000e-01 : f32
    %409 = vector.broadcast %cst_187 : f32 to vector<1x128xf32>
    %410 = arith.mulf %409, %408 : vector<1x128xf32>
    %411 = math.tanh %410 : vector<1x128xf32>
    %cst_188 = arith.constant 5.000000e-01 : f32
    %412 = vector.broadcast %cst_188 : f32 to vector<1x128xf32>
    %413 = arith.mulf %412, %411 : vector<1x128xf32>
    %cst_189 = arith.constant 5.000000e-01 : f32
    %414 = vector.broadcast %cst_189 : f32 to vector<1x128xf32>
    %415 = arith.addf %413, %414 : vector<1x128xf32>
    %416 = vector.extract_strided_slice %399 {offsets = [0, 256], sizes = [1, 128], strides = [1, 1]} : vector<1x512xf32> to vector<1x128xf32>
    %417 = math.tanh %416 : vector<1x128xf32>
    %418 = vector.extract_strided_slice %399 {offsets = [0, 384], sizes = [1, 128], strides = [1, 1]} : vector<1x512xf32> to vector<1x128xf32>
    %cst_190 = arith.constant 5.000000e-01 : f32
    %419 = vector.broadcast %cst_190 : f32 to vector<1x128xf32>
    %420 = arith.mulf %419, %418 : vector<1x128xf32>
    %421 = math.tanh %420 : vector<1x128xf32>
    %cst_191 = arith.constant 5.000000e-01 : f32
    %422 = vector.broadcast %cst_191 : f32 to vector<1x128xf32>
    %423 = arith.mulf %422, %421 : vector<1x128xf32>
    %cst_192 = arith.constant 5.000000e-01 : f32
    %424 = vector.broadcast %cst_192 : f32 to vector<1x128xf32>
    %425 = arith.addf %423, %424 : vector<1x128xf32>
    %426 = arith.mulf %415, %389 : vector<1x128xf32>
    %427 = arith.mulf %407, %417 : vector<1x128xf32>
    %428 = arith.addf %426, %427 : vector<1x128xf32>
    %429 = math.tanh %428 : vector<1x128xf32>
    %430 = arith.mulf %425, %429 : vector<1x128xf32>
    %c4_193 = arith.constant 4 : index
    %431 = memref.load %arg0[%c4_193] : memref<6xi32, #tpu.memory_space<smem>>
    %432 = arith.index_cast %431 : i32 to index
    %c0_194 = arith.constant 0 : index
    %433 = vector.load %arg3[%432, %c0_194] : memref<24x512xf32, #tpu.memory_space<vmem>>, vector<1x512xf32>
    %434 = vector.extract_strided_slice %271 {offsets = [4, 0], sizes = [1, 512], strides = [1, 1]} : vector<8x512xf32> to vector<1x512xf32>
    %435 = arith.addf %433, %434 : vector<1x512xf32>
    %436 = arith.truncf %430 : vector<1x128xf32> to vector<1x128xbf16>
    %cst_195 = arith.constant dense<0.000000e+00> : vector<1x512xf32>
    %437 = tpu.matmul %436, %272, %cst_195 {dimension_numbers = #tpu.dot_dimension_numbers<[1], [0], [0], [1], [0, 0, 1, 1], [], []>} : vector<1x128xbf16>, vector<128x512xbf16>, vector<1x512xf32> -> vector<1x512xf32>
    %438 = arith.addf %435, %437 : vector<1x512xf32>
    %439 = vector.extract_strided_slice %438 {offsets = [0, 0], sizes = [1, 128], strides = [1, 1]} : vector<1x512xf32> to vector<1x128xf32>
    %cst_196 = arith.constant 5.000000e-01 : f32
    %440 = vector.broadcast %cst_196 : f32 to vector<1x128xf32>
    %441 = arith.mulf %440, %439 : vector<1x128xf32>
    %442 = math.tanh %441 : vector<1x128xf32>
    %cst_197 = arith.constant 5.000000e-01 : f32
    %443 = vector.broadcast %cst_197 : f32 to vector<1x128xf32>
    %444 = arith.mulf %443, %442 : vector<1x128xf32>
    %cst_198 = arith.constant 5.000000e-01 : f32
    %445 = vector.broadcast %cst_198 : f32 to vector<1x128xf32>
    %446 = arith.addf %444, %445 : vector<1x128xf32>
    %447 = vector.extract_strided_slice %438 {offsets = [0, 128], sizes = [1, 128], strides = [1, 1]} : vector<1x512xf32> to vector<1x128xf32>
    %cst_199 = arith.constant 5.000000e-01 : f32
    %448 = vector.broadcast %cst_199 : f32 to vector<1x128xf32>
    %449 = arith.mulf %448, %447 : vector<1x128xf32>
    %450 = math.tanh %449 : vector<1x128xf32>
    %cst_200 = arith.constant 5.000000e-01 : f32
    %451 = vector.broadcast %cst_200 : f32 to vector<1x128xf32>
    %452 = arith.mulf %451, %450 : vector<1x128xf32>
    %cst_201 = arith.constant 5.000000e-01 : f32
    %453 = vector.broadcast %cst_201 : f32 to vector<1x128xf32>
    %454 = arith.addf %452, %453 : vector<1x128xf32>
    %455 = vector.extract_strided_slice %438 {offsets = [0, 256], sizes = [1, 128], strides = [1, 1]} : vector<1x512xf32> to vector<1x128xf32>
    %456 = math.tanh %455 : vector<1x128xf32>
    %457 = vector.extract_strided_slice %438 {offsets = [0, 384], sizes = [1, 128], strides = [1, 1]} : vector<1x512xf32> to vector<1x128xf32>
    %cst_202 = arith.constant 5.000000e-01 : f32
    %458 = vector.broadcast %cst_202 : f32 to vector<1x128xf32>
    %459 = arith.mulf %458, %457 : vector<1x128xf32>
    %460 = math.tanh %459 : vector<1x128xf32>
    %cst_203 = arith.constant 5.000000e-01 : f32
    %461 = vector.broadcast %cst_203 : f32 to vector<1x128xf32>
    %462 = arith.mulf %461, %460 : vector<1x128xf32>
    %cst_204 = arith.constant 5.000000e-01 : f32
    %463 = vector.broadcast %cst_204 : f32 to vector<1x128xf32>
    %464 = arith.addf %462, %463 : vector<1x128xf32>
    %465 = arith.mulf %454, %428 : vector<1x128xf32>
    %466 = arith.mulf %446, %456 : vector<1x128xf32>
    %467 = arith.addf %465, %466 : vector<1x128xf32>
    %468 = math.tanh %467 : vector<1x128xf32>
    %469 = arith.mulf %464, %468 : vector<1x128xf32>
    %c5_205 = arith.constant 5 : index
    %470 = memref.load %arg0[%c5_205] : memref<6xi32, #tpu.memory_space<smem>>
    %471 = arith.index_cast %470 : i32 to index
    %c0_206 = arith.constant 0 : index
    %472 = vector.load %arg3[%471, %c0_206] : memref<24x512xf32, #tpu.memory_space<vmem>>, vector<1x512xf32>
    %473 = vector.extract_strided_slice %271 {offsets = [5, 0], sizes = [1, 512], strides = [1, 1]} : vector<8x512xf32> to vector<1x512xf32>
    %474 = arith.addf %472, %473 : vector<1x512xf32>
    %475 = arith.truncf %469 : vector<1x128xf32> to vector<1x128xbf16>
    %cst_207 = arith.constant dense<0.000000e+00> : vector<1x512xf32>
    %476 = tpu.matmul %475, %272, %cst_207 {dimension_numbers = #tpu.dot_dimension_numbers<[1], [0], [0], [1], [0, 0, 1, 1], [], []>} : vector<1x128xbf16>, vector<128x512xbf16>, vector<1x512xf32> -> vector<1x512xf32>
    %477 = arith.addf %474, %476 : vector<1x512xf32>
    %478 = vector.extract_strided_slice %477 {offsets = [0, 0], sizes = [1, 128], strides = [1, 1]} : vector<1x512xf32> to vector<1x128xf32>
    %cst_208 = arith.constant 5.000000e-01 : f32
    %479 = vector.broadcast %cst_208 : f32 to vector<1x128xf32>
    %480 = arith.mulf %479, %478 : vector<1x128xf32>
    %481 = math.tanh %480 : vector<1x128xf32>
    %cst_209 = arith.constant 5.000000e-01 : f32
    %482 = vector.broadcast %cst_209 : f32 to vector<1x128xf32>
    %483 = arith.mulf %482, %481 : vector<1x128xf32>
    %cst_210 = arith.constant 5.000000e-01 : f32
    %484 = vector.broadcast %cst_210 : f32 to vector<1x128xf32>
    %485 = arith.addf %483, %484 : vector<1x128xf32>
    %486 = vector.extract_strided_slice %477 {offsets = [0, 128], sizes = [1, 128], strides = [1, 1]} : vector<1x512xf32> to vector<1x128xf32>
    %cst_211 = arith.constant 5.000000e-01 : f32
    %487 = vector.broadcast %cst_211 : f32 to vector<1x128xf32>
    %488 = arith.mulf %487, %486 : vector<1x128xf32>
    %489 = math.tanh %488 : vector<1x128xf32>
    %cst_212 = arith.constant 5.000000e-01 : f32
    %490 = vector.broadcast %cst_212 : f32 to vector<1x128xf32>
    %491 = arith.mulf %490, %489 : vector<1x128xf32>
    %cst_213 = arith.constant 5.000000e-01 : f32
    %492 = vector.broadcast %cst_213 : f32 to vector<1x128xf32>
    %493 = arith.addf %491, %492 : vector<1x128xf32>
    %494 = vector.extract_strided_slice %477 {offsets = [0, 256], sizes = [1, 128], strides = [1, 1]} : vector<1x512xf32> to vector<1x128xf32>
    %495 = math.tanh %494 : vector<1x128xf32>
    %496 = vector.extract_strided_slice %477 {offsets = [0, 384], sizes = [1, 128], strides = [1, 1]} : vector<1x512xf32> to vector<1x128xf32>
    %cst_214 = arith.constant 5.000000e-01 : f32
    %497 = vector.broadcast %cst_214 : f32 to vector<1x128xf32>
    %498 = arith.mulf %497, %496 : vector<1x128xf32>
    %499 = math.tanh %498 : vector<1x128xf32>
    %cst_215 = arith.constant 5.000000e-01 : f32
    %500 = vector.broadcast %cst_215 : f32 to vector<1x128xf32>
    %501 = arith.mulf %500, %499 : vector<1x128xf32>
    %cst_216 = arith.constant 5.000000e-01 : f32
    %502 = vector.broadcast %cst_216 : f32 to vector<1x128xf32>
    %503 = arith.addf %501, %502 : vector<1x128xf32>
    %504 = arith.mulf %493, %467 : vector<1x128xf32>
    %505 = arith.mulf %485, %495 : vector<1x128xf32>
    %506 = arith.addf %504, %505 : vector<1x128xf32>
    %507 = math.tanh %506 : vector<1x128xf32>
    %508 = arith.mulf %503, %507 : vector<1x128xf32>
    %cst_217 = arith.constant 0.000000e+00 : f32
    %509 = vector.broadcast %cst_217 : f32 to vector<2x128xf32>
    %510 = tpu.concatenate %313, %352, %391, %430, %469, %508, %509 in 0 : vector<1x128xf32>, vector<1x128xf32>, vector<1x128xf32>, vector<1x128xf32>, vector<1x128xf32>, vector<1x128xf32>, vector<2x128xf32> -> vector<8x128xf32>
    %511 = arith.truncf %510 : vector<8x128xf32> to vector<8x128xbf16>
    %c0_218 = arith.constant 0 : index
    %c0_219 = arith.constant 0 : index
    %512 = vector.load %arg7[%c0_218, %c0_219] : memref<128x128xbf16, #tpu.memory_space<vmem>>, vector<128x128xbf16>
    %cst_220 = arith.constant dense<0.000000e+00> : vector<8x128xf32>
    %513 = tpu.matmul %511, %512, %cst_220 {dimension_numbers = #tpu.dot_dimension_numbers<[1], [0], [0], [1], [0, 0, 1, 1], [], []>} : vector<8x128xbf16>, vector<128x128xbf16>, vector<8x128xf32> -> vector<8x128xf32>
    %c0_221 = arith.constant 0 : index
    %c0_222 = arith.constant 0 : index
    %514 = vector.load %arg8[%c0_221, %c0_222] : memref<1x128xf32, #tpu.memory_space<vmem>>, vector<1x128xf32>
    %515 = vector.broadcast %514 : vector<1x128xf32> to vector<8x128xf32>
    %516 = arith.addf %513, %515 : vector<8x128xf32>
    %cst_223 = arith.constant dense<0xFF800000> : vector<8xf32>
    %517 = vector.multi_reduction <maximumf>, %516, %cst_223 [1] : vector<8x128xf32> to vector<8xf32>
    %518 = vector.shape_cast %517 : vector<8xf32> to vector<8x1xf32>
    %519 = vector.broadcast %518 : vector<8x1xf32> to vector<8x128xf32>
    %520 = arith.subf %516, %519 : vector<8x128xf32>
    %521 = math.exp %520 : vector<8x128xf32>
    %cst_224 = arith.constant dense<0.000000e+00> : vector<8xf32>
    %522 = vector.multi_reduction <add>, %521, %cst_224 [1] : vector<8x128xf32> to vector<8xf32>
    %523 = vector.shape_cast %522 : vector<8xf32> to vector<8x1xf32>
    %524 = math.log %523 : vector<8x1xf32>
    %525 = vector.broadcast %524 : vector<8x1xf32> to vector<8x128xf32>
    %526 = arith.subf %520, %525 : vector<8x128xf32>
    %c0_225 = arith.constant 0 : index
    %c0_226 = arith.constant 0 : index
    %527 = vector.load %arg9[%c0_225, %c0_226] : memref<8x128xf32, #tpu.memory_space<vmem>>, vector<8x128xf32>
    tpu.vector_store %arg9[%c0_225, %c0_226], %526 {strides = array<i32>} : memref<8x128xf32, #tpu.memory_space<vmem>>, vector<8x128xf32>,
    return
  }
}

</mosaic_0001>

<llo_original>
// kernel: dual_lstm_tagger_forward.1
$region0: #{dual_lstm_tagger_forward.1}
  #allocation0 [shape = 'u32[]', space=smem, size = 0x4, offset = 0x4, fixed_abs, tag = 'smem constant byte address 0x4 - core index']
  #allocation1 [shape = 'u32[144,128]{1,0:T(1,128)}', space=vmem, size = 0x12000, scoped, tag = 'internal scratch']
  %s0 = inlined_call_operand.vmem [shape: s32[6], index: 0, kind: input, shape index: {}]
  %s1 = inlined_call_operand.vmem [shape: s32[6,5], index: 1, kind: input, shape index: {}]
  %s2 = inlined_call_operand.vmem [shape: f32[32,512], index: 2, kind: input, shape index: {}]
  %s3 = inlined_call_operand.vmem [shape: f32[24,512], index: 3, kind: input, shape index: {}]
  %s4 = inlined_call_operand.vmem [shape: bf16[128,512], index: 4, kind: input, shape index: {}]
  %s5 = inlined_call_operand.vmem [shape: bf16[128,512], index: 5, kind: input, shape index: {}]
  %s6 = inlined_call_operand.vmem [shape: bf16[128,512], index: 6, kind: input, shape index: {}]
  %s7 = inlined_call_operand.vmem [shape: bf16[128,128], index: 7, kind: input, shape index: {}]
  %s8 = inlined_call_operand.vmem [shape: f32[1,128], index: 8, kind: input, shape index: {}]
  %s9 = inlined_call_operand.hbm [shape: f32[8,128], index: 9, kind: output, shape index: {}]
  %s10 = sld [smem:[#allocation0]]
  $region54: #{dual_lstm_tagger_forward.1} parent=0
    _
  %s12 = ssub.s32 1, %s10
  %s13 = scalar_select 0, %s12, %s10
  $region1: #{dual_lstm_tagger_forward.1} parent=0
    #allocation2 [shape = 'u8[512]{0}', space=smem, size = 0x200, scoped, tag = 'input window, operand 0, single buffered']
    #allocation3 [shape = 's32[1]{0}', space=sflag, size = 0x4, scoped, tag = 'scoped memory for dual_lstm_tagger_forward.1']
    #allocation4 [shape = 's32[1]{0}', space=sflag, size = 0x4, scoped, tag = 'scoped memory for dual_lstm_tagger_forward.1']
    #allocation5 [shape = 'u8[4096]{0}', space=smem, size = 0x1000, scoped, tag = 'input window, operand 1, single buffered']
    #allocation6 [shape = 's32[1]{0}', space=sflag, size = 0x4, scoped, tag = 'scoped memory for dual_lstm_tagger_forward.1']
    #allocation7 [shape = 'u8[4096]{0}', space=vmem, size = 0x1000, scoped, tag = 'output window, operand 0, single buffered']
    %14 = vsyncpa [#allocation4], 0
    %15 = vsyncpa [#allocation6], 0
    %16 = vsyncpa [#allocation3], 0
    // Predicated region
    $region2: #{dual_lstm_tagger_forward.1} parent=1 // pred_check
      _
    $region3: #{dual_lstm_tagger_forward.1} parent=1 // pred_check_branch
      %18 = sbr.rel (0) target = $region5
    $region4: #{dual_lstm_tagger_forward.1} parent=1 // pred_region
      %s20 = ssub.s32 16, 16
      %21 = vsyncadd [#allocation4], %s20
      %s23 = sshll.u32 %s0, 4
      %s24 = int_to_ptr.vmem [resolvable:$true] %s23
      %26 = dma.vmem_to_smem %s24, 16, [#allocation2], [#allocation4]
    $region5: #{dual_lstm_tagger_forward.1} parent=1 // pred_fallthru
      _
    // Predicated region
    $region6: #{dual_lstm_tagger_forward.1} parent=1 // pred_check
      _
    $region7: #{dual_lstm_tagger_forward.1} parent=1 // pred_check_branch
      %28 = sbr.rel (0) target = $region9
    $region8: #{dual_lstm_tagger_forward.1} parent=1 // pred_region
      %s30 = ssub.s32 128, 128
      %31 = vsyncadd [#allocation6], %s30
      %s33 = sshll.u32 %s1, 4
      %s34 = int_to_ptr.vmem [resolvable:$true] %s33
      %36 = dma.vmem_to_smem %s34, 128, [#allocation5], [#allocation6]
    $region9: #{dual_lstm_tagger_forward.1} parent=1 // pred_fallthru
      _
    // Predicated region
    $region10: #{dual_lstm_tagger_forward.1} parent=1 // pred_check
      _
    $region11: #{dual_lstm_tagger_forward.1} parent=1 // pred_check_branch
      %38 = sbr.rel (0) target = $region13
    $region12: #{dual_lstm_tagger_forward.1} parent=1 // pred_region
      _
    $region13: #{dual_lstm_tagger_forward.1} parent=1 // pred_fallthru
      _
    // Predicated region
    $region14: #{dual_lstm_tagger_forward.1} parent=1 // pred_check
      _
    $region15: #{dual_lstm_tagger_forward.1} parent=1 // pred_check_branch
      %40 = sbr.rel (0) target = $region17
    $region16: #{dual_lstm_tagger_forward.1} parent=1 // pred_region
      _
    $region17: #{dual_lstm_tagger_forward.1} parent=1 // pred_fallthru
      _
    // Predicated region
    $region18: #{dual_lstm_tagger_forward.1} parent=1 // pred_check
      _
    $region19: #{dual_lstm_tagger_forward.1} parent=1 // pred_check_branch
      %42 = sbr.rel (0) target = $region21
    $region20: #{dual_lstm_tagger_forward.1} parent=1 // pred_region
      _
    $region21: #{dual_lstm_tagger_forward.1} parent=1 // pred_fallthru
      _
    // Predicated region
    $region22: #{dual_lstm_tagger_forward.1} parent=1 // pred_check
      _
    $region23: #{dual_lstm_tagger_forward.1} parent=1 // pred_check_branch
      %44 = sbr.rel (0) target = $region25
    $region24: #{dual_lstm_tagger_forward.1} parent=1 // pred_region
      _
    $region25: #{dual_lstm_tagger_forward.1} parent=1 // pred_fallthru
      _
    // Predicated region
    $region26: #{dual_lstm_tagger_forward.1} parent=1 // pred_check
      _
    $region27: #{dual_lstm_tagger_forward.1} parent=1 // pred_check_branch
      %46 = sbr.rel (0) target = $region29
    $region28: #{dual_lstm_tagger_forward.1} parent=1 // pred_region
      _
    $region29: #{dual_lstm_tagger_forward.1} parent=1 // pred_fallthru
      _
    // Predicated region
    $region30: #{dual_lstm_tagger_forward.1} parent=1 // pred_check
      _
    $region31: #{dual_lstm_tagger_forward.1} parent=1 // pred_check_branch
      %48 = sbr.rel (0) target = $region33
    $region32: #{dual_lstm_tagger_forward.1} parent=1 // pred_region
      _
    $region33: #{dual_lstm_tagger_forward.1} parent=1 // pred_fallthru
      _
    // Predicated region
    $region34: #{dual_lstm_tagger_forward.1} parent=1 // pred_check
      _
    $region35: #{dual_lstm_tagger_forward.1} parent=1 // pred_check_branch
      %50 = sbr.rel (0) target = $region37
    $region36: #{dual_lstm_tagger_forward.1} parent=1 // pred_region
      _
    $region37: #{dual_lstm_tagger_forward.1} parent=1 // pred_fallthru
      _
    // Predicated region
    $region38: #{dual_lstm_tagger_forward.1} parent=1 // pred_check
      _
    $region39: #{dual_lstm_tagger_forward.1} parent=1 // pred_check_branch
      %52 = sbr.rel (0) target = $region41
    $region40: #{dual_lstm_tagger_forward.1} parent=1 // pred_region
      %53 = dma.done [#allocation4], 16
    $region41: #{dual_lstm_tagger_forward.1} parent=1 // pred_fallthru
      _
    // Predicated region
    $region42: #{dual_lstm_tagger_forward.1} parent=1 // pred_check
      _
    $region43: #{dual_lstm_tagger_forward.1} parent=1 // pred_check_branch
      %55 = sbr.rel (0) target = $region45
    $region44: #{dual_lstm_tagger_forward.1} parent=1 // pred_region
      %56 = dma.done [#allocation6], 128
    $region45: #{dual_lstm_tagger_forward.1} parent=1 // pred_fallthru
      _
    %57 = sfence
    %v59 = vld [vmem:[%s4] sm:$0xff]
    %v60 = vld [vmem:[%s4 + $0x8] sm:$0xff]
    %v61 = vld [vmem:[%s4 + $0x10] sm:$0xff]
    %v62 = vld [vmem:[%s4 + $0x18] sm:$0xff]
    %v63 = vld [vmem:[%s4 + $0x20] sm:$0xff]
    %v64 = vld [vmem:[%s4 + $0x28] sm:$0xff]
    %v65 = vld [vmem:[%s4 + $0x30] sm:$0xff]
    %v66 = vld [vmem:[%s4 + $0x38] sm:$0xff]
    %v67 = vld [vmem:[%s4 + $0x40] sm:$0xff]
    %v68 = vld [vmem:[%s4 + $0x48] sm:$0xff]
    %v69 = vld [vmem:[%s4 + $0x50] sm:$0xff]
    %v70 = vld [vmem:[%s4 + $0x58] sm:$0xff]
    %v71 = vld [vmem:[%s4 + $0x60] sm:$0xff]
    %v72 = vld [vmem:[%s4 + $0x68] sm:$0xff]
    %v73 = vld [vmem:[%s4 + $0x70] sm:$0xff]
    %v74 = vld [vmem:[%s4 + $0x78] sm:$0xff]
    %v75 = vld [vmem:[%s4 + $0x80] sm:$0xff]
    %v76 = vld [vmem:[%s4 + $0x88] sm:$0xff]
    %v77 = vld [vmem:[%s4 + $0x90] sm:$0xff]
    %v78 = vld [vmem:[%s4 + $0x98] sm:$0xff]
    %v79 = vld [vmem:[%s4 + $0xa0] sm:$0xff]
    %v80 = vld [vmem:[%s4 + $0xa8] sm:$0xff]
    %v81 = vld [vmem:[%s4 + $0xb0] sm:$0xff]
    %v82 = vld [vmem:[%s4 + $0xb8] sm:$0xff]
    %v83 = vld [vmem:[%s4 + $0xc0] sm:$0xff]
    %v84 = vld [vmem:[%s4 + $0xc8] sm:$0xff]
    %v85 = vld [vmem:[%s4 + $0xd0] sm:$0xff]
    %v86 = vld [vmem:[%s4 + $0xd8] sm:$0xff]
    %v87 = vld [vmem:[%s4 + $0xe0] sm:$0xff]
    %v88 = vld [vmem:[%s4 + $0xe8] sm:$0xff]
    %v89 = vld [vmem:[%s4 + $0xf0] sm:$0xff]
    %v90 = vld [vmem:[%s4 + $0xf8] sm:$0xff]
    %s91 = sld [smem:[#allocation5]]
    %s92 = sshra.s32 %s91, 3
    %s93 = sand.u32 %s91, 7
    %s94 = sshra.s32 %s91, 3
    %s95 = sand.u32 %s91, 7
    %s96 = smul.u32 %s92, 4
    %s97 = smul.u32 %s96, 8
    %s98 = sadd.s32 %s97, %s95
    %s99 = scalar_lea.vmem %s2, %s98
    %v100 = vld [vmem:[%s99] ss:$8 sm:$0xf]
    %s101 = sld [smem:[#allocation5 + $0x80]]
    %s102 = sshra.s32 %s101, 3
    %s103 = sand.u32 %s101, 7
    %s104 = sshra.s32 %s101, 3
    %s105 = sand.u32 %s101, 7
    %s106 = smul.u32 %s102, 4
    %s107 = smul.u32 %s106, 8
    %s108 = sadd.s32 %s107, %s105
    %s109 = scalar_lea.vmem %s2, %s108
    %v110 = vld [vmem:[%s109] ss:$8 sm:$0xf]
    %s111 = sld [smem:[#allocation5 + $0x100]]
    %s112 = sshra.s32 %s111, 3
    %s113 = sand.u32 %s111, 7
    %s114 = sshra.s32 %s111, 3
    %s115 = sand.u32 %s111, 7
    %s116 = smul.u32 %s112, 4
    %s117 = smul.u32 %s116, 8
    %s118 = sadd.s32 %s117, %s115
    %s119 = scalar_lea.vmem %s2, %s118
    %v120 = vld [vmem:[%s119] ss:$8 sm:$0xf]
    %s121 = sld [smem:[#allocation5 + $0x180]]
    %s122 = sshra.s32 %s121, 3
    %s123 = sand.u32 %s121, 7
    %s124 = sshra.s32 %s121, 3
    %s125 = sand.u32 %s121, 7
    %s126 = smul.u32 %s122, 4
    %s127 = smul.u32 %s126, 8
    %s128 = sadd.s32 %s127, %s125
    %s129 = scalar_lea.vmem %s2, %s128
    %v130 = vld [vmem:[%s129] ss:$8 sm:$0xf]
    %s131 = sld [smem:[#allocation5 + $0x200]]
    %s132 = sshra.s32 %s131, 3
    %s133 = sand.u32 %s131, 7
    %s134 = sshra.s32 %s131, 3
    %s135 = sand.u32 %s131, 7
    %s136 = smul.u32 %s132, 4
    %s137 = smul.u32 %s136, 8
    %s138 = sadd.s32 %s137, %s135
    %s139 = scalar_lea.vmem %s2, %s138
    %v140 = vld [vmem:[%s139] ss:$8 sm:$0xf]
    %s141 = sld [smem:[#allocation5 + $0x280]]
    %s142 = sshra.s32 %s141, 3
    %s143 = sand.u32 %s141, 7
    %s144 = sshra.s32 %s141, 3
    %s145 = sand.u32 %s141, 7
    %s146 = smul.u32 %s142, 4
    %s147 = smul.u32 %s146, 8
    %s148 = sadd.s32 %s147, %s145
    %s149 = scalar_lea.vmem %s2, %s148
    %v150 = vld [vmem:[%s149] ss:$8 sm:$0xf]
    %v152 = vlaneseq
    %v153 = vshrl.u32 %v152, 7
    %v154 = vsub.s32 0, %v153
    %v155 = vrot.slane %v100, %v154
    %v156 = vlaneseq
    %v157 = vshrl.u32 %v156, 7
    %v158 = vsub.s32 1, %v157
    %v159 = vrot.slane %v100, %v158
    %v160 = vlaneseq
    %v161 = vshrl.u32 %v160, 7
    %v162 = vsub.s32 2, %v161
    %v163 = vrot.slane %v100, %v162
    %v164 = vlaneseq
    %v165 = vshrl.u32 %v164, 7
    %v166 = vsub.s32 3, %v165
    %v167 = vrot.slane %v100, %v166
    %v173 = vlaneseq
    %v174 = vshrl.u32 %v173, 7
    %v175 = vsub.s32 0, %v174
    %v176 = vrot.slane %v110, %v175
    %v177 = vlaneseq
    %v178 = vshrl.u32 %v177, 7
    %v179 = vsub.s32 1, %v178
    %v180 = vrot.slane %v110, %v179
    %v181 = vlaneseq
    %v182 = vshrl.u32 %v181, 7
    %v183 = vsub.s32 2, %v182
    %v184 = vrot.slane %v110, %v183
    %v185 = vlaneseq
    %v186 = vshrl.u32 %v185, 7
    %v187 = vsub.s32 3, %v186
    %v188 = vrot.slane %v110, %v187
    %v194 = vlaneseq
    %v195 = vshrl.u32 %v194, 7
    %v196 = vsub.s32 0, %v195
    %v197 = vrot.slane %v120, %v196
    %v198 = vlaneseq
    %v199 = vshrl.u32 %v198, 7
    %v200 = vsub.s32 1, %v199
    %v201 = vrot.slane %v120, %v200
    %v202 = vlaneseq
    %v203 = vshrl.u32 %v202, 7
    %v204 = vsub.s32 2, %v203
    %v205 = vrot.slane %v120, %v204
    %v206 = vlaneseq
    %v207 = vshrl.u32 %v206, 7
    %v208 = vsub.s32 3, %v207
    %v209 = vrot.slane %v120, %v208
    %v215 = vlaneseq
    %v216 = vshrl.u32 %v215, 7
    %v217 = vsub.s32 0, %v216
    %v218 = vrot.slane %v130, %v217
    %v219 = vlaneseq
    %v220 = vshrl.u32 %v219, 7
    %v221 = vsub.s32 1, %v220
    %v222 = vrot.slane %v130, %v221
    %v223 = vlaneseq
    %v224 = vshrl.u32 %v223, 7
    %v225 = vsub.s32 2, %v224
    %v226 = vrot.slane %v130, %v225
    %v227 = vlaneseq
    %v228 = vshrl.u32 %v227, 7
    %v229 = vsub.s32 3, %v228
    %v230 = vrot.slane %v130, %v229
    %v236 = vlaneseq
    %v237 = vshrl.u32 %v236, 7
    %v238 = vsub.s32 0, %v237
    %v239 = vrot.slane %v140, %v238
    %v240 = vlaneseq
    %v241 = vshrl.u32 %v240, 7
    %v242 = vsub.s32 1, %v241
    %v243 = vrot.slane %v140, %v242
    %v244 = vlaneseq
    %v245 = vshrl.u32 %v244, 7
    %v246 = vsub.s32 2, %v245
    %v247 = vrot.slane %v140, %v246
    %v248 = vlaneseq
    %v249 = vshrl.u32 %v248, 7
    %v250 = vsub.s32 3, %v249
    %v251 = vrot.slane %v140, %v250
    %v257 = vlaneseq
    %v258 = vshrl.u32 %v257, 7
    %v259 = vsub.s32 0, %v258
    %v260 = vrot.slane %v150, %v259
    %v261 = vlaneseq
    %v262 = vshrl.u32 %v261, 7
    %v263 = vsub.s32 1, %v262
    %v264 = vrot.slane %v150, %v263
    %v265 = vlaneseq
    %v266 = vshrl.u32 %v265, 7
    %v267 = vsub.s32 2, %v266
    %v268 = vrot.slane %v150, %v267
    %v269 = vlaneseq
    %v270 = vshrl.u32 %v269, 7
    %v271 = vsub.s32 3, %v270
    %v272 = vrot.slane %v150, %v271
    %vm277 = vcmask 1040384
    %v278 = vsel %vm277, %v155, %v176
    %v279 = vsel %vm277, %v159, %v180
    %v280 = vsel %vm277, %v163, %v184
    %v281 = vsel %vm277, %v167, %v188
    %vm282 = vcmask 1041408
    %v283 = vsel %vm282, %v278, %v197
    %v284 = vsel %vm282, %v279, %v201
    %v285 = vsel %vm282, %v280, %v205
    %v286 = vsel %vm282, %v281, %v209
    %vm287 = vcmask 1042432
    %v288 = vsel %vm287, %v283, %v218
    %v289 = vsel %vm287, %v284, %v222
    %v290 = vsel %vm287, %v285, %v226
    %v291 = vsel %vm287, %v286, %v230
    %vm292 = vcmask 1043456
    %v293 = vsel %vm292, %v288, %v239
    %v294 = vsel %vm292, %v289, %v243
    %v295 = vsel %vm292, %v290, %v247
    %v296 = vsel %vm292, %v291, %v251
    %vm297 = vcmask 1044480
    %v298 = vsel %vm297, %v293, %v260
    %v299 = vsel %vm297, %v294, %v264
    %v300 = vsel %vm297, %v295, %v268
    %v301 = vsel %vm297, %v296, %v272
    %vm302 = vcmask 1045504
    %v303 = vsel %vm302, %v298, 0.0
    %v304 = vsel %vm302, %v299, 0.0
    %v305 = vsel %vm302, %v300, 0.0
    %v306 = vsel %vm302, %v301, 0.0
    %v339 = vunpack.c.l.b16 %v59
    %v340 = vunpack.c.h.b16 %v59
    %v341 = vunpack.c.l.b16 %v60
    %v342 = vunpack.c.h.b16 %v60
    %v343 = vunpack.c.l.b16 %v61
    %v344 = vunpack.c.h.b16 %v61
    %v345 = vunpack.c.l.b16 %v62
    %v346 = vunpack.c.h.b16 %v62
    %v347 = vunpack.c.l.b16 %v63
    %v348 = vunpack.c.h.b16 %v63
    %v349 = vunpack.c.l.b16 %v64
    %v350 = vunpack.c.h.b16 %v64
    %v351 = vunpack.c.l.b16 %v65
    %v352 = vunpack.c.h.b16 %v65
    %v353 = vunpack.c.l.b16 %v66
    %v354 = vunpack.c.h.b16 %v66
    %v355 = vunpack.c.l.b16 %v67
    %v356 = vunpack.c.h.b16 %v67
    %v357 = vunpack.c.l.b16 %v68
    %v358 = vunpack.c.h.b16 %v68
    %v359 = vunpack.c.l.b16 %v69
    %v360 = vunpack.c.h.b16 %v69
    %v361 = vunpack.c.l.b16 %v70
    %v362 = vunpack.c.h.b16 %v70
    %v363 = vunpack.c.l.b16 %v71
    %v364 = vunpack.c.h.b16 %v71
    %v365 = vunpack.c.l.b16 %v72
    %v366 = vunpack.c.h.b16 %v72
    %v367 = vunpack.c.l.b16 %v73
    %v368 = vunpack.c.h.b16 %v73
    %v369 = vunpack.c.l.b16 %v74
    %v370 = vunpack.c.h.b16 %v74
    %v371 = vunpack.c.l.b16 %v75
    %v372 = vunpack.c.h.b16 %v75
    %v373 = vunpack.c.l.b16 %v76
    %v374 = vunpack.c.h.b16 %v76
    %v375 = vunpack.c.l.b16 %v77
    %v376 = vunpack.c.h.b16 %v77
    %v377 = vunpack.c.l.b16 %v78
    %v378 = vunpack.c.h.b16 %v78
    %v379 = vunpack.c.l.b16 %v79
    %v380 = vunpack.c.h.b16 %v79
    %v381 = vunpack.c.l.b16 %v80
    %v382 = vunpack.c.h.b16 %v80
    %v383 = vunpack.c.l.b16 %v81
    %v384 = vunpack.c.h.b16 %v81
    %v385 = vunpack.c.l.b16 %v82
    %v386 = vunpack.c.h.b16 %v82
    %v387 = vunpack.c.l.b16 %v83
    %v388 = vunpack.c.h.b16 %v83
    %v389 = vunpack.c.l.b16 %v84
    %v390 = vunpack.c.h.b16 %v84
    %v391 = vunpack.c.l.b16 %v85
    %v392 = vunpack.c.h.b16 %v85
    %v393 = vunpack.c.l.b16 %v86
    %v394 = vunpack.c.h.b16 %v86
    %v395 = vunpack.c.l.b16 %v87
    %v396 = vunpack.c.h.b16 %v87
    %v397 = vunpack.c.l.b16 %v88
    %v398 = vunpack.c.h.b16 %v88
    %v399 = vunpack.c.l.b16 %v89
    %v400 = vunpack.c.h.b16 %v89
    %v401 = vunpack.c.l.b16 %v90
    %v402 = vunpack.c.h.b16 %v90
    %v403 = vpack.c.b16 %v343, %v339
    %v404 = vpack.c.b16 %v344, %v340
    %v405 = vpack.c.b16 %v345, %v341
    %v406 = vpack.c.b16 %v346, %v342
    %v407 = vpack.c.b16 %v351, %v347
    %v408 = vpack.c.b16 %v352, %v348
    %v409 = vpack.c.b16 %v353, %v349
    %v410 = vpack.c.b16 %v354, %v350
    %v411 = vpack.c.b16 %v359, %v355
    %v412 = vpack.c.b16 %v360, %v356
    %v413 = vpack.c.b16 %v361, %v357
    %v414 = vpack.c.b16 %v362, %v358
    %v415 = vpack.c.b16 %v367, %v363
    %v416 = vpack.c.b16 %v368, %v364
    %v417 = vpack.c.b16 %v369, %v365
    %v418 = vpack.c.b16 %v370, %v366
    %v419 = vpack.c.b16 %v375, %v371
    %v420 = vpack.c.b16 %v376, %v372
    %v421 = vpack.c.b16 %v377, %v373
    %v422 = vpack.c.b16 %v378, %v374
    %v423 = vpack.c.b16 %v383, %v379
    %v424 = vpack.c.b16 %v384, %v380
    %v425 = vpack.c.b16 %v385, %v381
    %v426 = vpack.c.b16 %v386, %v382
    %v427 = vpack.c.b16 %v391, %v387
    %v428 = vpack.c.b16 %v392, %v388
    %v429 = vpack.c.b16 %v393, %v389
    %v430 = vpack.c.b16 %v394, %v390
    %v431 = vpack.c.b16 %v399, %v395
    %v432 = vpack.c.b16 %v400, %v396
    %v433 = vpack.c.b16 %v401, %v397
    %v434 = vpack.c.b16 %v402, %v398
    %467 = vmatprep.subr.bf16.mxu0 %v404
    %468 = vmatpush1.bf16.msra.mxu0 %v403
    %469 = vmatprep.subr.bf16.mxu0 %v408
    %470 = vmatpush1.bf16.msra.mxu0 %v407
    %471 = vmatprep.subr.bf16.mxu0 %v412
    %472 = vmatpush1.bf16.msra.mxu0 %v411
    %473 = vmatprep.subr.bf16.mxu0 %v416
    %474 = vmatpush1.bf16.msra.mxu0 %v415
    %475 = vmatprep.subr.bf16.mxu0 %v420
    %476 = vmatpush1.bf16.msra.mxu0 %v419
    %477 = vmatprep.subr.bf16.mxu0 %v424
    %478 = vmatpush1.bf16.msra.mxu0 %v423
    %479 = vmatprep.subr.bf16.mxu0 %v428
    %480 = vmatpush1.bf16.msra.mxu0 %v427
    %481 = vmatprep.subr.bf16.mxu0 %v432
    %482 = vmatpush1.bf16.msra.mxu0 %v431
    %483 = vmatprep.subr.bf16.mxu0 0
    %484 = vmatpush1.bf16.msra.mxu0 0
    %485 = vmatprep.subr.bf16.mxu0 0
    %486 = vmatpush1.bf16.msra.mxu0 0
    %487 = vmatprep.subr.bf16.mxu0 0
    %488 = vmatpush1.bf16.msra.mxu0 0
    %489 = vmatprep.subr.bf16.mxu0 0
    %490 = vmatpush1.bf16.msra.mxu0 0
    %491 = vmatprep.subr.bf16.mxu0 0
    %492 = vmatpush1.bf16.msra.mxu0 0
    %493 = vmatprep.subr.bf16.mxu0 0
    %494 = vmatpush1.bf16.msra.mxu0 0
    %495 = vmatprep.subr.bf16.mxu0 0
    %496 = vmatpush1.bf16.msra.mxu0 0
    %497 = vmatprep.subr.bf16.mxu0 0
    %498 = vmatpush1.bf16.msra.mxu0 0
    %499 = vmatprep.mubr.bf16.mxu0 0
    %500 = vmatmul.mubr.bf16.gmra.mrb[0].mxu0 0
    %v501 = vpop.f32.mrb[0].mxu0
    %v502 = vadd.f32 0.0, %v501
    %v503 = vpop.f32.mrb[0].mxu0
    %v504 = vadd.f32 0.0, %v503
    %v505 = vpop.f32.mrb[0].mxu0
    %v506 = vpop.f32.mrb[0].mxu0
    %507 = vdwg.mxu0
    %508 = vmatprep.subr.bf16.mxu0 %v406
    %509 = vmatpush1.bf16.msra.mxu0 %v405
    %510 = vmatprep.subr.bf16.mxu0 %v410
    %511 = vmatpush1.bf16.msra.mxu0 %v409
    %512 = vmatprep.subr.bf16.mxu0 %v414
    %513 = vmatpush1.bf16.msra.mxu0 %v413
    %514 = vmatprep.subr.bf16.mxu0 %v418
    %515 = vmatpush1.bf16.msra.mxu0 %v417
    %516 = vmatprep.subr.bf16.mxu0 %v422
    %517 = vmatpush1.bf16.msra.mxu0 %v421
    %518 = vmatprep.subr.bf16.mxu0 %v426
    %519 = vmatpush1.bf16.msra.mxu0 %v425
    %520 = vmatprep.subr.bf16.mxu0 %v430
    %521 = vmatpush1.bf16.msra.mxu0 %v429
    %522 = vmatprep.subr.bf16.mxu0 %v434
    %523 = vmatpush1.bf16.msra.mxu0 %v433
    %524 = vmatprep.subr.bf16.mxu0 0
    %525 = vmatpush1.bf16.msra.mxu0 0
    %526 = vmatprep.subr.bf16.mxu0 0
    %527 = vmatpush1.bf16.msra.mxu0 0
    %528 = vmatprep.subr.bf16.mxu0 0
    %529 = vmatpush1.bf16.msra.mxu0 0
    %530 = vmatprep.subr.bf16.mxu0 0
    %531 = vmatpush1.bf16.msra.mxu0 0
    %532 = vmatprep.subr.bf16.mxu0 0
    %533 = vmatpush1.bf16.msra.mxu0 0
    %534 = vmatprep.subr.bf16.mxu0 0
    %535 = vmatpush1.bf16.msra.mxu0 0
    %536 = vmatprep.subr.bf16.mxu0 0
    %537 = vmatpush1.bf16.msra.mxu0 0
    %538 = vmatprep.subr.bf16.mxu0 0
    %539 = vmatpush1.bf16.msra.mxu0 0
    %540 = vmatprep.mubr.bf16.mxu0 0
    %541 = vmatmul.mubr.bf16.gmra.mrb[0].mxu0 0
    %v542 = vpop.f32.mrb[0].mxu0
    %v543 = vadd.f32 0.0, %v542
    %v544 = vpop.f32.mrb[0].mxu0
    %v545 = vadd.f32 0.0, %v544
    %v546 = vpop.f32.mrb[0].mxu0
    %v547 = vpop.f32.mrb[0].mxu0
    %548 = vdwg.mxu0
    %v549 = vadd.f32 %v303, %v502
    %v550 = vadd.f32 %v304, %v504
    %v551 = vadd.f32 %v305, %v543
    %v552 = vadd.f32 %v306, %v545
    %v553 = vmul.f32 %v549, 0.5
    %v554 = vtanh.pop %v553
    %v555 = vmul.f32 %v554, 0.5
    %v556 = vadd.f32 %v555, 0.5
    %v557 = vmul.f32 %v550, 0.5
    %v558 = vtanh.pop %v557
    %v559 = vmul.f32 %v558, 0.5
    %v560 = vadd.f32 %v559, 0.5
    %v561 = vtanh.pop %v551
    %v562 = vmul.f32 %v552, 0.5
    %v563 = vtanh.pop %v562
    %v564 = vmul.f32 %v563, 0.5
    %v565 = vadd.f32 %v564, 0.5
    %v566 = vmul.f32 %v560, 0.0
    %v567 = vmul.f32 %v556, %v561
    %v568 = vadd.f32 %v566, %v567
    %v569 = vtanh.pop %v568
    %v570 = vmul.f32 %v565, %v569
    %s571 = sld [smem:[#allocation5 + $0x1]]
    %s572 = sshra.s32 %s571, 3
    %s573 = sand.u32 %s571, 7
    %s574 = sshra.s32 %s571, 3
    %s575 = sand.u32 %s571, 7
    %s576 = smul.u32 %s572, 4
    %s577 = smul.u32 %s576, 8
    %s578 = sadd.s32 %s577, %s575
    %s579 = scalar_lea.vmem %s2, %s578
    %v580 = vld [vmem:[%s579] ss:$8 sm:$0xf]
    %s581 = sld [smem:[#allocation5 + $0x81]]
    %s582 = sshra.s32 %s581, 3
    %s583 = sand.u32 %s581, 7
    %s584 = sshra.s32 %s581, 3
    %s585 = sand.u32 %s581, 7
    %s586 = smul.u32 %s582, 4
    %s587 = smul.u32 %s586, 8
    %s588 = sadd.s32 %s587, %s585
    %s589 = scalar_lea.vmem %s2, %s588
    %v590 = vld [vmem:[%s589] ss:$8 sm:$0xf]
    %s591 = sld [smem:[#allocation5 + $0x101]]
    %s592 = sshra.s32 %s591, 3
    %s593 = sand.u32 %s591, 7
    %s594 = sshra.s32 %s591, 3
    %s595 = sand.u32 %s591, 7
    %s596 = smul.u32 %s592, 4
    %s597 = smul.u32 %s596, 8
    %s598 = sadd.s32 %s597, %s595
    %s599 = scalar_lea.vmem %s2, %s598
    %v600 = vld [vmem:[%s599] ss:$8 sm:$0xf]
    %s601 = sld [smem:[#allocation5 + $0x181]]
    %s602 = sshra.s32 %s601, 3
    %s603 = sand.u32 %s601, 7
    %s604 = sshra.s32 %s601, 3
    %s605 = sand.u32 %s601, 7
    %s606 = smul.u32 %s602, 4
    %s607 = smul.u32 %s606, 8
    %s608 = sadd.s32 %s607, %s605
    %s609 = scalar_lea.vmem %s2, %s608
    %v610 = vld [vmem:[%s609] ss:$8 sm:$0xf]
    %s611 = sld [smem:[#allocation5 + $0x201]]
    %s612 = sshra.s32 %s611, 3
    %s613 = sand.u32 %s611, 7
    %s614 = sshra.s32 %s611, 3
    %s615 = sand.u32 %s611, 7
    %s616 = smul.u32 %s612, 4
    %s617 = smul.u32 %s616, 8
    %s618 = sadd.s32 %s617, %s615
    %s619 = scalar_lea.vmem %s2, %s618
    %v620 = vld [vmem:[%s619] ss:$8 sm:$0xf]
    %s621 = sld [smem:[#allocation5 + $0x281]]
    %s622 = sshra.s32 %s621, 3
    %s623 = sand.u32 %s621, 7
    %s624 = sshra.s32 %s621, 3
    %s625 = sand.u32 %s621, 7
    %s626 = smul.u32 %s622, 4
    %s627 = smul.u32 %s626, 8
    %s628 = sadd.s32 %s627, %s625
    %s629 = scalar_lea.vmem %s2, %s628
    %v630 = vld [vmem:[%s629] ss:$8 sm:$0xf]
    %v632 = vlaneseq
    %v633 = vshrl.u32 %v632, 7
    %v634 = vsub.s32 0, %v633
    %v635 = vrot.slane %v580, %v634
    %v636 = vlaneseq
    %v637 = vshrl.u32 %v636, 7
    %v638 = vsub.s32 1, %v637
    %v639 = vrot.slane %v580, %v638
    %v640 = vlaneseq
    %v641 = vshrl.u32 %v640, 7
    %v642 = vsub.s32 2, %v641
    %v643 = vrot.slane %v580, %v642
    %v644 = vlaneseq
    %v645 = vshrl.u32 %v644, 7
    %v646 = vsub.s32 3, %v645
    %v647 = vrot.slane %v580, %v646
    %v653 = vlaneseq
    %v654 = vshrl.u32 %v653, 7
    %v655 = vsub.s32 0, %v654
    %v656 = vrot.slane %v590, %v655
    %v657 = vlaneseq
    %v658 = vshrl.u32 %v657, 7
    %v659 = vsub.s32 1, %v658
    %v660 = vrot.slane %v590, %v659
    %v661 = vlaneseq
    %v662 = vshrl.u32 %v661, 7
    %v663 = vsub.s32 2, %v662
    %v664 = vrot.slane %v590, %v663
    %v665 = vlaneseq
    %v666 = vshrl.u32 %v665, 7
    %v667 = vsub.s32 3, %v666
    %v668 = vrot.slane %v590, %v667
    %v674 = vlaneseq
    %v675 = vshrl.u32 %v674, 7
    %v676 = vsub.s32 0, %v675
    %v677 = vrot.slane %v600, %v676
    %v678 = vlaneseq
    %v679 = vshrl.u32 %v678, 7
    %v680 = vsub.s32 1, %v679
    %v681 = vrot.slane %v600, %v680
    %v682 = vlaneseq
    %v683 = vshrl.u32 %v682, 7
    %v684 = vsub.s32 2, %v683
    %v685 = vrot.slane %v600, %v684
    %v686 = vlaneseq
    %v687 = vshrl.u32 %v686, 7
    %v688 = vsub.s32 3, %v687
    %v689 = vrot.slane %v600, %v688
    %v695 = vlaneseq
    %v696 = vshrl.u32 %v695, 7
    %v697 = vsub.s32 0, %v696
    %v698 = vrot.slane %v610, %v697
    %v699 = vlaneseq
    %v700 = vshrl.u32 %v699, 7
    %v701 = vsub.s32 1, %v700
    %v702 = vrot.slane %v610, %v701
    %v703 = vlaneseq
    %v704 = vshrl.u32 %v703, 7
    %v705 = vsub.s32 2, %v704
    %v706 = vrot.slane %v610, %v705
    %v707 = vlaneseq
    %v708 = vshrl.u32 %v707, 7
    %v709 = vsub.s32 3, %v708
    %v710 = vrot.slane %v610, %v709
    %v716 = vlaneseq
    %v717 = vshrl.u32 %v716, 7
    %v718 = vsub.s32 0, %v717
    %v719 = vrot.slane %v620, %v718
    %v720 = vlaneseq
    %v721 = vshrl.u32 %v720, 7
    %v722 = vsub.s32 1, %v721
    %v723 = vrot.slane %v620, %v722
    %v724 = vlaneseq
    %v725 = vshrl.u32 %v724, 7
    %v726 = vsub.s32 2, %v725
    %v727 = vrot.slane %v620, %v726
    %v728 = vlaneseq
    %v729 = vshrl.u32 %v728, 7
    %v730 = vsub.s32 3, %v729
    %v731 = vrot.slane %v620, %v730
    %v737 = vlaneseq
    %v738 = vshrl.u32 %v737, 7
    %v739 = vsub.s32 0, %v738
    %v740 = vrot.slane %v630, %v739
    %v741 = vlaneseq
    %v742 = vshrl.u32 %v741, 7
    %v743 = vsub.s32 1, %v742
    %v744 = vrot.slane %v630, %v743
    %v745 = vlaneseq
    %v746 = vshrl.u32 %v745, 7
    %v747 = vsub.s32 2, %v746
    %v748 = vrot.slane %v630, %v747
    %v749 = vlaneseq
    %v750 = vshrl.u32 %v749, 7
    %v751 = vsub.s32 3, %v750
    %v752 = vrot.slane %v630, %v751
    %v757 = vsel %vm277, %v635, %v656
    %v758 = vsel %vm277, %v639, %v660
    %v759 = vsel %vm277, %v643, %v664
    %v760 = vsel %vm277, %v647, %v668
    %v761 = vsel %vm282, %v757, %v677
    %v762 = vsel %vm282, %v758, %v681
    %v763 = vsel %vm282, %v759, %v685
    %v764 = vsel %vm282, %v760, %v689
    %v765 = vsel %vm287, %v761, %v698
    %v766 = vsel %vm287, %v762, %v702
    %v767 = vsel %vm287, %v763, %v706
    %v768 = vsel %vm287, %v764, %v710
    %v769 = vsel %vm292, %v765, %v719
    %v770 = vsel %vm292, %v766, %v723
    %v771 = vsel %vm292, %v767, %v727
    %v772 = vsel %vm292, %v768, %v731
    %v773 = vsel %vm297, %v769, %v740
    %v774 = vsel %vm297, %v770, %v744
    %v775 = vsel %vm297, %v771, %v748
    %v776 = vsel %vm297, %v772, %v752
    %v777 = vsel %vm302, %v773, 0.0
    %v778 = vsel %vm302, %v774, 0.0
    %v779 = vsel %vm302, %v775, 0.0
    %v780 = vsel %vm302, %v776, 0.0
    %v781 = vpack.c.bf16 %v570, %v570
    %782 = vmatprep.subr.bf16.mxu0 %v404
    %783 = vmatpush1.bf16.msra.mxu0 %v403
    %784 = vmatprep.subr.bf16.mxu0 %v408
    %785 = vmatpush1.bf16.msra.mxu0 %v407
    %786 = vmatprep.subr.bf16.mxu0 %v412
    %787 = vmatpush1.bf16.msra.mxu0 %v411
    %788 = vmatprep.subr.bf16.mxu0 %v416
    %789 = vmatpush1.bf16.msra.mxu0 %v415
    %790 = vmatprep.subr.bf16.mxu0 %v420
    %791 = vmatpush1.bf16.msra.mxu0 %v419
    %792 = vmatprep.subr.bf16.mxu0 %v424
    %793 = vmatpush1.bf16.msra.mxu0 %v423
    %794 = vmatprep.subr.bf16.mxu0 %v428
    %795 = vmatpush1.bf16.msra.mxu0 %v427
    %796 = vmatprep.subr.bf16.mxu0 %v432
    %797 = vmatpush1.bf16.msra.mxu0 %v431
    %798 = vmatprep.subr.bf16.mxu0 0
    %799 = vmatpush1.bf16.msra.mxu0 0
    %800 = vmatprep.subr.bf16.mxu0 0
    %801 = vmatpush1.bf16.msra.mxu0 0
    %802 = vmatprep.subr.bf16.mxu0 0
    %803 = vmatpush1.bf16.msra.mxu0 0
    %804 = vmatprep.subr.bf16.mxu0 0
    %805 = vmatpush1.bf16.msra.mxu0 0
    %806 = vmatprep.subr.bf16.mxu0 0
    %807 = vmatpush1.bf16.msra.mxu0 0
    %808 = vmatprep.subr.bf16.mxu0 0
    %809 = vmatpush1.bf16.msra.mxu0 0
    %810 = vmatprep.subr.bf16.mxu0 0
    %811 = vmatpush1.bf16.msra.mxu0 0
    %812 = vmatprep.subr.bf16.mxu0 0
    %813 = vmatpush1.bf16.msra.mxu0 0
    %814 = vmatprep.mubr.bf16.mxu0 0
    %815 = vmatmul.mubr.bf16.gmra.mrb[0].mxu0 %v781
    %v816 = vpop.f32.mrb[0].mxu0
    %v817 = vadd.f32 0.0, %v816
    %v818 = vpop.f32.mrb[0].mxu0
    %v819 = vadd.f32 0.0, %v818
    %v820 = vpop.f32.mrb[0].mxu0
    %v821 = vpop.f32.mrb[0].mxu0
    %822 = vdwg.mxu0
    %823 = vmatprep.subr.bf16.mxu0 %v406
    %824 = vmatpush1.bf16.msra.mxu0 %v405
    %825 = vmatprep.subr.bf16.mxu0 %v410
    %826 = vmatpush1.bf16.msra.mxu0 %v409
    %827 = vmatprep.subr.bf16.mxu0 %v414
    %828 = vmatpush1.bf16.msra.mxu0 %v413
    %829 = vmatprep.subr.bf16.mxu0 %v418
    %830 = vmatpush1.bf16.msra.mxu0 %v417
    %831 = vmatprep.subr.bf16.mxu0 %v422
    %832 = vmatpush1.bf16.msra.mxu0 %v421
    %833 = vmatprep.subr.bf16.mxu0 %v426
    %834 = vmatpush1.bf16.msra.mxu0 %v425
    %835 = vmatprep.subr.bf16.mxu0 %v430
    %836 = vmatpush1.bf16.msra.mxu0 %v429
    %837 = vmatprep.subr.bf16.mxu0 %v434
    %838 = vmatpush1.bf16.msra.mxu0 %v433
    %839 = vmatprep.subr.bf16.mxu0 0
    %840 = vmatpush1.bf16.msra.mxu0 0
    %841 = vmatprep.subr.bf16.mxu0 0
    %842 = vmatpush1.bf16.msra.mxu0 0
    %843 = vmatprep.subr.bf16.mxu0 0
    %844 = vmatpush1.bf16.msra.mxu0 0
    %845 = vmatprep.subr.bf16.mxu0 0
    %846 = vmatpush1.bf16.msra.mxu0 0
    %847 = vmatprep.subr.bf16.mxu0 0
    %848 = vmatpush1.bf16.msra.mxu0 0
    %849 = vmatprep.subr.bf16.mxu0 0
    %850 = vmatpush1.bf16.msra.mxu0 0
    %851 = vmatprep.subr.bf16.mxu0 0
    %852 = vmatpush1.bf16.msra.mxu0 0
    %853 = vmatprep.subr.bf16.mxu0 0
    %854 = vmatpush1.bf16.msra.mxu0 0
    %855 = vmatprep.mubr.bf16.mxu0 0
    %856 = vmatmul.mubr.bf16.gmra.mrb[0].mxu0 %v781
    %v857 = vpop.f32.mrb[0].mxu0
    %v858 = vadd.f32 0.0, %v857
    %v859 = vpop.f32.mrb[0].mxu0
    %v860 = vadd.f32 0.0, %v859
    %v861 = vpop.f32.mrb[0].mxu0
    %v862 = vpop.f32.mrb[0].mxu0
    %863 = vdwg.mxu0
    %v864 = vadd.f32 %v777, %v817
    %v865 = vadd.f32 %v778, %v819
    %v866 = vadd.f32 %v779, %v858
    %v867 = vadd.f32 %v780, %v860
    %v868 = vmul.f32 %v864, 0.5
    %v869 = vtanh.pop %v868
    %v870 = vmul.f32 %v869, 0.5
    %v871 = vadd.f32 %v870, 0.5
    %v872 = vmul.f32 %v865, 0.5
    %v873 = vtanh.pop %v872
    %v874 = vmul.f32 %v873, 0.5
    %v875 = vadd.f32 %v874, 0.5
    %v876 = vtanh.pop %v866
    %v877 = vmul.f32 %v867, 0.5
    %v878 = vtanh.pop %v877
    %v879 = vmul.f32 %v878, 0.5
    %v880 = vadd.f32 %v879, 0.5
    %v881 = vmul.f32 %v875, %v568
    %v882 = vmul.f32 %v871, %v876
    %v883 = vadd.f32 %v881, %v882
    %v884 = vtanh.pop %v883
    %v885 = vmul.f32 %v880, %v884
    %s886 = sld [smem:[#allocation5 + $0x2]]
    %s887 = sshra.s32 %s886, 3
    %s888 = sand.u32 %s886, 7
    %s889 = sshra.s32 %s886, 3
    %s890 = sand.u32 %s886, 7
    %s891 = smul.u32 %s887, 4
    %s892 = smul.u32 %s891, 8
    %s893 = sadd.s32 %s892, %s890
    %s894 = scalar_lea.vmem %s2, %s893
    %v895 = vld [vmem:[%s894] ss:$8 sm:$0xf]
    %s896 = sld [smem:[#allocation5 + $0x82]]
    %s897 = sshra.s32 %s896, 3
    %s898 = sand.u32 %s896, 7
    %s899 = sshra.s32 %s896, 3
    %s900 = sand.u32 %s896, 7
    %s901 = smul.u32 %s897, 4
    %s902 = smul.u32 %s901, 8
    %s903 = sadd.s32 %s902, %s900
    %s904 = scalar_lea.vmem %s2, %s903
    %v905 = vld [vmem:[%s904] ss:$8 sm:$0xf]
    %s906 = sld [smem:[#allocation5 + $0x102]]
    %s907 = sshra.s32 %s906, 3
    %s908 = sand.u32 %s906, 7
    %s909 = sshra.s32 %s906, 3
    %s910 = sand.u32 %s906, 7
    %s911 = smul.u32 %s907, 4
    %s912 = smul.u32 %s911, 8
    %s913 = sadd.s32 %s912, %s910
    %s914 = scalar_lea.vmem %s2, %s913
    %v915 = vld [vmem:[%s914] ss:$8 sm:$0xf]
    %s916 = sld [smem:[#allocation5 + $0x182]]
    %s917 = sshra.s32 %s916, 3
    %s918 = sand.u32 %s916, 7
    %s919 = sshra.s32 %s916, 3
    %s920 = sand.u32 %s916, 7
    %s921 = smul.u32 %s917, 4
    %s922 = smul.u32 %s921, 8
    %s923 = sadd.s32 %s922, %s920
    %s924 = scalar_lea.vmem %s2, %s923
    %v925 = vld [vmem:[%s924] ss:$8 sm:$0xf]
    %s926 = sld [smem:[#allocation5 + $0x202]]
    %s927 = sshra.s32 %s926, 3
    %s928 = sand.u32 %s926, 7
    %s929 = sshra.s32 %s926, 3
    %s930 = sand.u32 %s926, 7
    %s931 = smul.u32 %s927, 4
    %s932 = smul.u32 %s931, 8
    %s933 = sadd.s32 %s932, %s930
    %s934 = scalar_lea.vmem %s2, %s933
    %v935 = vld [vmem:[%s934] ss:$8 sm:$0xf]
    %s936 = sld [smem:[#allocation5 + $0x282]]
    %s937 = sshra.s32 %s936, 3
    %s938 = sand.u32 %s936, 7
    %s939 = sshra.s32 %s936, 3
    %s940 = sand.u32 %s936, 7
    %s941 = smul.u32 %s937, 4
    %s942 = smul.u32 %s941, 8
    %s943 = sadd.s32 %s942, %s940
    %s944 = scalar_lea.vmem %s2, %s943
    %v945 = vld [vmem:[%s944] ss:$8 sm:$0xf]
    %v947 = vlaneseq
    %v948 = vshrl.u32 %v947, 7
    %v949 = vsub.s32 0, %v948
    %v950 = vrot.slane %v895, %v949
    %v951 = vlaneseq
    %v952 = vshrl.u32 %v951, 7
    %v953 = vsub.s32 1, %v952
    %v954 = vrot.slane %v895, %v953
    %v955 = vlaneseq
    %v956 = vshrl.u32 %v955, 7
    %v957 = vsub.s32 2, %v956
    %v958 = vrot.slane %v895, %v957
    %v959 = vlaneseq
    %v960 = vshrl.u32 %v959, 7
    %v961 = vsub.s32 3, %v960
    %v962 = vrot.slane %v895, %v961
    %v968 = vlaneseq
    %v969 = vshrl.u32 %v968, 7
    %v970 = vsub.s32 0, %v969
    %v971 = vrot.slane %v905, %v970
    %v972 = vlaneseq
    %v973 = vshrl.u32 %v972, 7
    %v974 = vsub.s32 1, %v973
    %v975 = vrot.slane %v905, %v974
    %v976 = vlaneseq
    %v977 = vshrl.u32 %v976, 7
    %v978 = vsub.s32 2, %v977
    %v979 = vrot.slane %v905, %v978
    %v980 = vlaneseq
    %v981 = vshrl.u32 %v980, 7
    %v982 = vsub.s32 3, %v981
    %v983 = vrot.slane %v905, %v982
    %v989 = vlaneseq
    %v990 = vshrl.u32 %v989, 7
    %v991 = vsub.s32 0, %v990
    %v992 = vrot.slane %v915, %v991
    %v993 = vlaneseq
    %v994 = vshrl.u32 %v993, 7
    %v995 = vsub.s32 1, %v994
    %v996 = vrot.slane %v915, %v995
    %v997 = vlaneseq
    %v998 = vshrl.u32 %v997, 7
    %v999 = vsub.s32 2, %v998
    %v1000 = vrot.slane %v915, %v999
    %v1001 = vlaneseq
    %v1002 = vshrl.u32 %v1001, 7
    %v1003 = vsub.s32 3, %v1002
    %v1004 = vrot.slane %v915, %v1003
    %v1010 = vlaneseq
    %v1011 = vshrl.u32 %v1010, 7
    %v1012 = vsub.s32 0, %v1011
    %v1013 = vrot.slane %v925, %v1012
    %v1014 = vlaneseq
    %v1015 = vshrl.u32 %v1014, 7
    %v1016 = vsub.s32 1, %v1015
    %v1017 = vrot.slane %v925, %v1016
    %v1018 = vlaneseq
    %v1019 = vshrl.u32 %v1018, 7
    %v1020 = vsub.s32 2, %v1019
    %v1021 = vrot.slane %v925, %v1020
    %v1022 = vlaneseq
    %v1023 = vshrl.u32 %v1022, 7
    %v1024 = vsub.s32 3, %v1023
    %v1025 = vrot.slane %v925, %v1024
    %v1031 = vlaneseq
    %v1032 = vshrl.u32 %v1031, 7
    %v1033 = vsub.s32 0, %v1032
    %v1034 = vrot.slane %v935, %v1033
    %v1035 = vlaneseq
    %v1036 = vshrl.u32 %v1035, 7
    %v1037 = vsub.s32 1, %v1036
    %v1038 = vrot.slane %v935, %v1037
    %v1039 = vlaneseq
    %v1040 = vshrl.u32 %v1039, 7
    %v1041 = vsub.s32 2, %v1040
    %v1042 = vrot.slane %v935, %v1041
    %v1043 = vlaneseq
    %v1044 = vshrl.u32 %v1043, 7
    %v1045 = vsub.s32 3, %v1044
    %v1046 = vrot.slane %v935, %v1045
    %v1052 = vlaneseq
    %v1053 = vshrl.u32 %v1052, 7
    %v1054 = vsub.s32 0, %v1053
    %v1055 = vrot.slane %v945, %v1054
    %v1056 = vlaneseq
    %v1057 = vshrl.u32 %v1056, 7
    %v1058 = vsub.s32 1, %v1057
    %v1059 = vrot.slane %v945, %v1058
    %v1060 = vlaneseq
    %v1061 = vshrl.u32 %v1060, 7
    %v1062 = vsub.s32 2, %v1061
    %v1063 = vrot.slane %v945, %v1062
    %v1064 = vlaneseq
    %v1065 = vshrl.u32 %v1064, 7
    %v1066 = vsub.s32 3, %v1065
    %v1067 = vrot.slane %v945, %v1066
    %v1072 = vsel %vm277, %v950, %v971
    %v1073 = vsel %vm277, %v954, %v975
    %v1074 = vsel %vm277, %v958, %v979
    %v1075 = vsel %vm277, %v962, %v983
    %v1076 = vsel %vm282, %v1072, %v992
    %v1077 = vsel %vm282, %v1073, %v996
    %v1078 = vsel %vm282, %v1074, %v1000
    %v1079 = vsel %vm282, %v1075, %v1004
    %v1080 = vsel %vm287, %v1076, %v1013
    %v1081 = vsel %vm287, %v1077, %v1017
    %v1082 = vsel %vm287, %v1078, %v1021
    %v1083 = vsel %vm287, %v1079, %v1025
    %v1084 = vsel %vm292, %v1080, %v1034
    %v1085 = vsel %vm292, %v1081, %v1038
    %v1086 = vsel %vm292, %v1082, %v1042
    %v1087 = vsel %vm292, %v1083, %v1046
    %v1088 = vsel %vm297, %v1084, %v1055
    %v1089 = vsel %vm297, %v1085, %v1059
    %v1090 = vsel %vm297, %v1086, %v1063
    %v1091 = vsel %vm297, %v1087, %v1067
    %v1092 = vsel %vm302, %v1088, 0.0
    %v1093 = vsel %vm302, %v1089, 0.0
    %v1094 = vsel %vm302, %v1090, 0.0
    %v1095 = vsel %vm302, %v1091, 0.0
    %v1096 = vpack.c.bf16 %v885, %v885
    %1097 = vmatprep.subr.bf16.mxu0 %v404
    %1098 = vmatpush1.bf16.msra.mxu0 %v403
    %1099 = vmatprep.subr.bf16.mxu0 %v408
    %1100 = vmatpush1.bf16.msra.mxu0 %v407
    %1101 = vmatprep.subr.bf16.mxu0 %v412
    %1102 = vmatpush1.bf16.msra.mxu0 %v411
    %1103 = vmatprep.subr.bf16.mxu0 %v416
    %1104 = vmatpush1.bf16.msra.mxu0 %v415
    %1105 = vmatprep.subr.bf16.mxu0 %v420
    %1106 = vmatpush1.bf16.msra.mxu0 %v419
    %1107 = vmatprep.subr.bf16.mxu0 %v424
    %1108 = vmatpush1.bf16.msra.mxu0 %v423
    %1109 = vmatprep.subr.bf16.mxu0 %v428
    %1110 = vmatpush1.bf16.msra.mxu0 %v427
    %1111 = vmatprep.subr.bf16.mxu0 %v432
    %1112 = vmatpush1.bf16.msra.mxu0 %v431
    %1113 = vmatprep.subr.bf16.mxu0 0
    %1114 = vmatpush1.bf16.msra.mxu0 0
    %1115 = vmatprep.subr.bf16.mxu0 0
    %1116 = vmatpush1.bf16.msra.mxu0 0
    %1117 = vmatprep.subr.bf16.mxu0 0
    %1118 = vmatpush1.bf16.msra.mxu0 0
    %1119 = vmatprep.subr.bf16.mxu0 0
    %1120 = vmatpush1.bf16.msra.mxu0 0
    %1121 = vmatprep.subr.bf16.mxu0 0
    %1122 = vmatpush1.bf16.msra.mxu0 0
    %1123 = vmatprep.subr.bf16.mxu0 0
    %1124 = vmatpush1.bf16.msra.mxu0 0
    %1125 = vmatprep.subr.bf16.mxu0 0
    %1126 = vmatpush1.bf16.msra.mxu0 0
    %1127 = vmatprep.subr.bf16.mxu0 0
    %1128 = vmatpush1.bf16.msra.mxu0 0
    %1129 = vmatprep.mubr.bf16.mxu0 0
    %1130 = vmatmul.mubr.bf16.gmra.mrb[0].mxu0 %v1096
    %v1131 = vpop.f32.mrb[0].mxu0
    %v1132 = vadd.f32 0.0, %v1131
    %v1133 = vpop.f32.mrb[0].mxu0
    %v1134 = vadd.f32 0.0, %v1133
    %v1135 = vpop.f32.mrb[0].mxu0
    %v1136 = vpop.f32.mrb[0].mxu0
    %1137 = vdwg.mxu0
    %1138 = vmatprep.subr.bf16.mxu0 %v406
    %1139 = vmatpush1.bf16.msra.mxu0 %v405
    %1140 = vmatprep.subr.bf16.mxu0 %v410
    %1141 = vmatpush1.bf16.msra.mxu0 %v409
    %1142 = vmatprep.subr.bf16.mxu0 %v414
    %1143 = vmatpush1.bf16.msra.mxu0 %v413
    %1144 = vmatprep.subr.bf16.mxu0 %v418
    %1145 = vmatpush1.bf16.msra.mxu0 %v417
    %1146 = vmatprep.subr.bf16.mxu0 %v422
    %1147 = vmatpush1.bf16.msra.mxu0 %v421
    %1148 = vmatprep.subr.bf16.mxu0 %v426
    %1149 = vmatpush1.bf16.msra.mxu0 %v425
    %1150 = vmatprep.subr.bf16.mxu0 %v430
    %1151 = vmatpush1.bf16.msra.mxu0 %v429
    %1152 = vmatprep.subr.bf16.mxu0 %v434
    %1153 = vmatpush1.bf16.msra.mxu0 %v433
    %1154 = vmatprep.subr.bf16.mxu0 0
    %1155 = vmatpush1.bf16.msra.mxu0 0
    %1156 = vmatprep.subr.bf16.mxu0 0
    %1157 = vmatpush1.bf16.msra.mxu0 0
    %1158 = vmatprep.subr.bf16.mxu0 0
    %1159 = vmatpush1.bf16.msra.mxu0 0
    %1160 = vmatprep.subr.bf16.mxu0 0
    %1161 = vmatpush1.bf16.msra.mxu0 0
    %1162 = vmatprep.subr.bf16.mxu0 0
    %1163 = vmatpush1.bf16.msra.mxu0 0
    %1164 = vmatprep.subr.bf16.mxu0 0
    %1165 = vmatpush1.bf16.msra.mxu0 0
    %1166 = vmatprep.subr.bf16.mxu0 0
    %1167 = vmatpush1.bf16.msra.mxu0 0
    %1168 = vmatprep.subr.bf16.mxu0 0
    %1169 = vmatpush1.bf16.msra.mxu0 0
    %1170 = vmatprep.mubr.bf16.mxu0 0
    %1171 = vmatmul.mubr.bf16.gmra.mrb[0].mxu0 %v1096
    %v1172 = vpop.f32.mrb[0].mxu0
    %v1173 = vadd.f32 0.0, %v1172
    %v1174 = vpop.f32.mrb[0].mxu0
    %v1175 = vadd.f32 0.0, %v1174
    %v1176 = vpop.f32.mrb[0].mxu0
    %v1177 = vpop.f32.mrb[0].mxu0
    %1178 = vdwg.mxu0
    %v1179 = vadd.f32 %v1092, %v1132
    %v1180 = vadd.f32 %v1093, %v1134
    %v1181 = vadd.f32 %v1094, %v1173
    %v1182 = vadd.f32 %v1095, %v1175
    %v1183 = vmul.f32 %v1179, 0.5
    %v1184 = vtanh.pop %v1183
    %v1185 = vmul.f32 %v1184, 0.5
    %v1186 = vadd.f32 %v1185, 0.5
    %v1187 = vmul.f32 %v1180, 0.5
    %v1188 = vtanh.pop %v1187
    %v1189 = vmul.f32 %v1188, 0.5
    %v1190 = vadd.f32 %v1189, 0.5
    %v1191 = vtanh.pop %v1181
    %v1192 = vmul.f32 %v1182, 0.5
    %v1193 = vtanh.pop %v1192
    %v1194 = vmul.f32 %v1193, 0.5
    %v1195 = vadd.f32 %v1194, 0.5
    %v1196 = vmul.f32 %v1190, %v883
    %v1197 = vmul.f32 %v1186, %v1191
    %v1198 = vadd.f32 %v1196, %v1197
    %v1199 = vtanh.pop %v1198
    %v1200 = vmul.f32 %v1195, %v1199
    %s1201 = sld [smem:[#allocation5 + $0x3]]
    %s1202 = sshra.s32 %s1201, 3
    %s1203 = sand.u32 %s1201, 7
    %s1204 = sshra.s32 %s1201, 3
    %s1205 = sand.u32 %s1201, 7
    %s1206 = smul.u32 %s1202, 4
    %s1207 = smul.u32 %s1206, 8
    %s1208 = sadd.s32 %s1207, %s1205
    %s1209 = scalar_lea.vmem %s2, %s1208
    %v1210 = vld [vmem:[%s1209] ss:$8 sm:$0xf]
    %s1211 = sld [smem:[#allocation5 + $0x83]]
    %s1212 = sshra.s32 %s1211, 3
    %s1213 = sand.u32 %s1211, 7
    %s1214 = sshra.s32 %s1211, 3
    %s1215 = sand.u32 %s1211, 7
    %s1216 = smul.u32 %s1212, 4
    %s1217 = smul.u32 %s1216, 8
    %s1218 = sadd.s32 %s1217, %s1215
    %s1219 = scalar_lea.vmem %s2, %s1218
    %v1220 = vld [vmem:[%s1219] ss:$8 sm:$0xf]
    %s1221 = sld [smem:[#allocation5 + $0x103]]
    %s1222 = sshra.s32 %s1221, 3
    %s1223 = sand.u32 %s1221, 7
    %s1224 = sshra.s32 %s1221, 3
    %s1225 = sand.u32 %s1221, 7
    %s1226 = smul.u32 %s1222, 4
    %s1227 = smul.u32 %s1226, 8
    %s1228 = sadd.s32 %s1227, %s1225
    %s1229 = scalar_lea.vmem %s2, %s1228
    %v1230 = vld [vmem:[%s1229] ss:$8 sm:$0xf]
    %s1231 = sld [smem:[#allocation5 + $0x183]]
    %s1232 = sshra.s32 %s1231, 3
    %s1233 = sand.u32 %s1231, 7
    %s1234 = sshra.s32 %s1231, 3
    %s1235 = sand.u32 %s1231, 7
    %s1236 = smul.u32 %s1232, 4
    %s1237 = smul.u32 %s1236, 8
    %s1238 = sadd.s32 %s1237, %s1235
    %s1239 = scalar_lea.vmem %s2, %s1238
    %v1240 = vld [vmem:[%s1239] ss:$8 sm:$0xf]
    %s1241 = sld [smem:[#allocation5 + $0x203]]
    %s1242 = sshra.s32 %s1241, 3
    %s1243 = sand.u32 %s1241, 7
    %s1244 = sshra.s32 %s1241, 3
    %s1245 = sand.u32 %s1241, 7
    %s1246 = smul.u32 %s1242, 4
    %s1247 = smul.u32 %s1246, 8
    %s1248 = sadd.s32 %s1247, %s1245
    %s1249 = scalar_lea.vmem %s2, %s1248
    %v1250 = vld [vmem:[%s1249] ss:$8 sm:$0xf]
    %s1251 = sld [smem:[#allocation5 + $0x283]]
    %s1252 = sshra.s32 %s1251, 3
    %s1253 = sand.u32 %s1251, 7
    %s1254 = sshra.s32 %s1251, 3
    %s1255 = sand.u32 %s1251, 7
    %s1256 = smul.u32 %s1252, 4
    %s1257 = smul.u32 %s1256, 8
    %s1258 = sadd.s32 %s1257, %s1255
    %s1259 = scalar_lea.vmem %s2, %s1258
    %v1260 = vld [vmem:[%s1259] ss:$8 sm:$0xf]
    %v1262 = vlaneseq
    %v1263 = vshrl.u32 %v1262, 7
    %v1264 = vsub.s32 0, %v1263
    %v1265 = vrot.slane %v1210, %v1264
    %v1266 = vlaneseq
    %v1267 = vshrl.u32 %v1266, 7
    %v1268 = vsub.s32 1, %v1267
    %v1269 = vrot.slane %v1210, %v1268
    %v1270 = vlaneseq
    %v1271 = vshrl.u32 %v1270, 7
    %v1272 = vsub.s32 2, %v1271
    %v1273 = vrot.slane %v1210, %v1272
    %v1274 = vlaneseq
    %v1275 = vshrl.u32 %v1274, 7
    %v1276 = vsub.s32 3, %v1275
    %v1277 = vrot.slane %v1210, %v1276
    %v1283 = vlaneseq
    %v1284 = vshrl.u32 %v1283, 7
    %v1285 = vsub.s32 0, %v1284
    %v1286 = vrot.slane %v1220, %v1285
    %v1287 = vlaneseq
    %v1288 = vshrl.u32 %v1287, 7
    %v1289 = vsub.s32 1, %v1288
    %v1290 = vrot.slane %v1220, %v1289
    %v1291 = vlaneseq
    %v1292 = vshrl.u32 %v1291, 7
    %v1293 = vsub.s32 2, %v1292
    %v1294 = vrot.slane %v1220, %v1293
    %v1295 = vlaneseq
    %v1296 = vshrl.u32 %v1295, 7
    %v1297 = vsub.s32 3, %v1296
    %v1298 = vrot.slane %v1220, %v1297
    %v1304 = vlaneseq
    %v1305 = vshrl.u32 %v1304, 7
    %v1306 = vsub.s32 0, %v1305
    %v1307 = vrot.slane %v1230, %v1306
    %v1308 = vlaneseq
    %v1309 = vshrl.u32 %v1308, 7
    %v1310 = vsub.s32 1, %v1309
    %v1311 = vrot.slane %v1230, %v1310
    %v1312 = vlaneseq
    %v1313 = vshrl.u32 %v1312, 7
    %v1314 = vsub.s32 2, %v1313
    %v1315 = vrot.slane %v1230, %v1314
    %v1316 = vlaneseq
    %v1317 = vshrl.u32 %v1316, 7
    %v1318 = vsub.s32 3, %v1317
    %v1319 = vrot.slane %v1230, %v1318
    %v1325 = vlaneseq
    %v1326 = vshrl.u32 %v1325, 7
    %v1327 = vsub.s32 0, %v1326
    %v1328 = vrot.slane %v1240, %v1327
    %v1329 = vlaneseq
    %v1330 = vshrl.u32 %v1329, 7
    %v1331 = vsub.s32 1, %v1330
    %v1332 = vrot.slane %v1240, %v1331
    %v1333 = vlaneseq
    %v1334 = vshrl.u32 %v1333, 7
    %v1335 = vsub.s32 2, %v1334
    %v1336 = vrot.slane %v1240, %v1335
    %v1337 = vlaneseq
    %v1338 = vshrl.u32 %v1337, 7
    %v1339 = vsub.s32 3, %v1338
    %v1340 = vrot.slane %v1240, %v1339
    %v1346 = vlaneseq
    %v1347 = vshrl.u32 %v1346, 7
    %v1348 = vsub.s32 0, %v1347
    %v1349 = vrot.slane %v1250, %v1348
    %v1350 = vlaneseq
    %v1351 = vshrl.u32 %v1350, 7
    %v1352 = vsub.s32 1, %v1351
    %v1353 = vrot.slane %v1250, %v1352
    %v1354 = vlaneseq
    %v1355 = vshrl.u32 %v1354, 7
    %v1356 = vsub.s32 2, %v1355
    %v1357 = vrot.slane %v1250, %v1356
    %v1358 = vlaneseq
    %v1359 = vshrl.u32 %v1358, 7
    %v1360 = vsub.s32 3, %v1359
    %v1361 = vrot.slane %v1250, %v1360
    %v1367 = vlaneseq
    %v1368 = vshrl.u32 %v1367, 7
    %v1369 = vsub.s32 0, %v1368
    %v1370 = vrot.slane %v1260, %v1369
    %v1371 = vlaneseq
    %v1372 = vshrl.u32 %v1371, 7
    %v1373 = vsub.s32 1, %v1372
    %v1374 = vrot.slane %v1260, %v1373
    %v1375 = vlaneseq
    %v1376 = vshrl.u32 %v1375, 7
    %v1377 = vsub.s32 2, %v1376
    %v1378 = vrot.slane %v1260, %v1377
    %v1379 = vlaneseq
    %v1380 = vshrl.u32 %v1379, 7
    %v1381 = vsub.s32 3, %v1380
    %v1382 = vrot.slane %v1260, %v1381
    %v1387 = vsel %vm277, %v1265, %v1286
    %v1388 = vsel %vm277, %v1269, %v1290
    %v1389 = vsel %vm277, %v1273, %v1294
    %v1390 = vsel %vm277, %v1277, %v1298
    %v1391 = vsel %vm282, %v1387, %v1307
    %v1392 = vsel %vm282, %v1388, %v1311
    %v1393 = vsel %vm282, %v1389, %v1315
    %v1394 = vsel %vm282, %v1390, %v1319
    %v1395 = vsel %vm287, %v1391, %v1328
    %v1396 = vsel %vm287, %v1392, %v1332
    %v1397 = vsel %vm287, %v1393, %v1336
    %v1398 = vsel %vm287, %v1394, %v1340
    %v1399 = vsel %vm292, %v1395, %v1349
    %v1400 = vsel %vm292, %v1396, %v1353
    %v1401 = vsel %vm292, %v1397, %v1357
    %v1402 = vsel %vm292, %v1398, %v1361
    %v1403 = vsel %vm297, %v1399, %v1370
    %v1404 = vsel %vm297, %v1400, %v1374
    %v1405 = vsel %vm297, %v1401, %v1378
    %v1406 = vsel %vm297, %v1402, %v1382
    %v1407 = vsel %vm302, %v1403, 0.0
    %v1408 = vsel %vm302, %v1404, 0.0
    %v1409 = vsel %vm302, %v1405, 0.0
    %v1410 = vsel %vm302, %v1406, 0.0
    %v1411 = vpack.c.bf16 %v1200, %v1200
    %1412 = vmatprep.subr.bf16.mxu0 %v404
    %1413 = vmatpush1.bf16.msra.mxu0 %v403
    %1414 = vmatprep.subr.bf16.mxu0 %v408
    %1415 = vmatpush1.bf16.msra.mxu0 %v407
    %1416 = vmatprep.subr.bf16.mxu0 %v412
    %1417 = vmatpush1.bf16.msra.mxu0 %v411
    %1418 = vmatprep.subr.bf16.mxu0 %v416
    %1419 = vmatpush1.bf16.msra.mxu0 %v415
    %1420 = vmatprep.subr.bf16.mxu0 %v420
    %1421 = vmatpush1.bf16.msra.mxu0 %v419
    %1422 = vmatprep.subr.bf16.mxu0 %v424
    %1423 = vmatpush1.bf16.msra.mxu0 %v423
    %1424 = vmatprep.subr.bf16.mxu0 %v428
    %1425 = vmatpush1.bf16.msra.mxu0 %v427
    %1426 = vmatprep.subr.bf16.mxu0 %v432
    %1427 = vmatpush1.bf16.msra.mxu0 %v431
    %1428 = vmatprep.subr.bf16.mxu0 0
    %1429 = vmatpush1.bf16.msra.mxu0 0
    %1430 = vmatprep.subr.bf16.mxu0 0
    %1431 = vmatpush1.bf16.msra.mxu0 0
    %1432 = vmatprep.subr.bf16.mxu0 0
    %1433 = vmatpush1.bf16.msra.mxu0 0
    %1434 = vmatprep.subr.bf16.mxu0 0
    %1435 = vmatpush1.bf16.msra.mxu0 0
    %1436 = vmatprep.subr.bf16.mxu0 0
    %1437 = vmatpush1.bf16.msra.mxu0 0
    %1438 = vmatprep.subr.bf16.mxu0 0
    %1439 = vmatpush1.bf16.msra.mxu0 0
    %1440 = vmatprep.subr.bf16.mxu0 0
    %1441 = vmatpush1.bf16.msra.mxu0 0
    %1442 = vmatprep.subr.bf16.mxu0 0
    %1443 = vmatpush1.bf16.msra.mxu0 0
    %1444 = vmatprep.mubr.bf16.mxu0 0
    %1445 = vmatmul.mubr.bf16.gmra.mrb[0].mxu0 %v1411
    %v1446 = vpop.f32.mrb[0].mxu0
    %v1447 = vadd.f32 0.0, %v1446
    %v1448 = vpop.f32.mrb[0].mxu0
    %v1449 = vadd.f32 0.0, %v1448
    %v1450 = vpop.f32.mrb[0].mxu0
    %v1451 = vpop.f32.mrb[0].mxu0
    %1452 = vdwg.mxu0
    %1453 = vmatprep.subr.bf16.mxu0 %v406
    %1454 = vmatpush1.bf16.msra.mxu0 %v405
    %1455 = vmatprep.subr.bf16.mxu0 %v410
    %1456 = vmatpush1.bf16.msra.mxu0 %v409
    %1457 = vmatprep.subr.bf16.mxu0 %v414
    %1458 = vmatpush1.bf16.msra.mxu0 %v413
    %1459 = vmatprep.subr.bf16.mxu0 %v418
    %1460 = vmatpush1.bf16.msra.mxu0 %v417
    %1461 = vmatprep.subr.bf16.mxu0 %v422
    %1462 = vmatpush1.bf16.msra.mxu0 %v421
    %1463 = vmatprep.subr.bf16.mxu0 %v426
    %1464 = vmatpush1.bf16.msra.mxu0 %v425
    %1465 = vmatprep.subr.bf16.mxu0 %v430
    %1466 = vmatpush1.bf16.msra.mxu0 %v429
    %1467 = vmatprep.subr.bf16.mxu0 %v434
    %1468 = vmatpush1.bf16.msra.mxu0 %v433
    %1469 = vmatprep.subr.bf16.mxu0 0
    %1470 = vmatpush1.bf16.msra.mxu0 0
    %1471 = vmatprep.subr.bf16.mxu0 0
    %1472 = vmatpush1.bf16.msra.mxu0 0
    %1473 = vmatprep.subr.bf16.mxu0 0
    %1474 = vmatpush1.bf16.msra.mxu0 0
    %1475 = vmatprep.subr.bf16.mxu0 0
    %1476 = vmatpush1.bf16.msra.mxu0 0
    %1477 = vmatprep.subr.bf16.mxu0 0
    %1478 = vmatpush1.bf16.msra.mxu0 0
    %1479 = vmatprep.subr.bf16.mxu0 0
    %1480 = vmatpush1.bf16.msra.mxu0 0
    %1481 = vmatprep.subr.bf16.mxu0 0
    %1482 = vmatpush1.bf16.msra.mxu0 0
    %1483 = vmatprep.subr.bf16.mxu0 0
    %1484 = vmatpush1.bf16.msra.mxu0 0
    %1485 = vmatprep.mubr.bf16.mxu0 0
    %1486 = vmatmul.mubr.bf16.gmra.mrb[0].mxu0 %v1411
    %v1487 = vpop.f32.mrb[0].mxu0
    %v1488 = vadd.f32 0.0, %v1487
    %v1489 = vpop.f32.mrb[0].mxu0
    %v1490 = vadd.f32 0.0, %v1489
    %v1491 = vpop.f32.mrb[0].mxu0
    %v1492 = vpop.f32.mrb[0].mxu0
    %1493 = vdwg.mxu0
    %v1494 = vadd.f32 %v1407, %v1447
    %v1495 = vadd.f32 %v1408, %v1449
    %v1496 = vadd.f32 %v1409, %v1488
    %v1497 = vadd.f32 %v1410, %v1490
    %v1498 = vmul.f32 %v1494, 0.5
    %v1499 = vtanh.pop %v1498
    %v1500 = vmul.f32 %v1499, 0.5
    %v1501 = vadd.f32 %v1500, 0.5
    %v1502 = vmul.f32 %v1495, 0.5
    %v1503 = vtanh.pop %v1502
    %v1504 = vmul.f32 %v1503, 0.5
    %v1505 = vadd.f32 %v1504, 0.5
    %v1506 = vtanh.pop %v1496
    %v1507 = vmul.f32 %v1497, 0.5
    %v1508 = vtanh.pop %v1507
    %v1509 = vmul.f32 %v1508, 0.5
    %v1510 = vadd.f32 %v1509, 0.5
    %v1511 = vmul.f32 %v1505, %v1198
    %v1512 = vmul.f32 %v1501, %v1506
    %v1513 = vadd.f32 %v1511, %v1512
    %v1514 = vtanh.pop %v1513
    %v1515 = vmul.f32 %v1510, %v1514
    %s1516 = sld [smem:[#allocation5 + $0x4]]
    %s1517 = sshra.s32 %s1516, 3
    %s1518 = sand.u32 %s1516, 7
    %s1519 = sshra.s32 %s1516, 3
    %s1520 = sand.u32 %s1516, 7
    %s1521 = smul.u32 %s1517, 4
    %s1522 = smul.u32 %s1521, 8
    %s1523 = sadd.s32 %s1522, %s1520
    %s1524 = scalar_lea.vmem %s2, %s1523
    %v1525 = vld [vmem:[%s1524] ss:$8 sm:$0xf]
    %s1526 = sld [smem:[#allocation5 + $0x84]]
    %s1527 = sshra.s32 %s1526, 3
    %s1528 = sand.u32 %s1526, 7
    %s1529 = sshra.s32 %s1526, 3
    %s1530 = sand.u32 %s1526, 7
    %s1531 = smul.u32 %s1527, 4
    %s1532 = smul.u32 %s1531, 8
    %s1533 = sadd.s32 %s1532, %s1530
    %s1534 = scalar_lea.vmem %s2, %s1533
    %v1535 = vld [vmem:[%s1534] ss:$8 sm:$0xf]
    %s1536 = sld [smem:[#allocation5 + $0x104]]
    %s1537 = sshra.s32 %s1536, 3
    %s1538 = sand.u32 %s1536, 7
    %s1539 = sshra.s32 %s1536, 3
    %s1540 = sand.u32 %s1536, 7
    %s1541 = smul.u32 %s1537, 4
    %s1542 = smul.u32 %s1541, 8
    %s1543 = sadd.s32 %s1542, %s1540
    %s1544 = scalar_lea.vmem %s2, %s1543
    %v1545 = vld [vmem:[%s1544] ss:$8 sm:$0xf]
    %s1546 = sld [smem:[#allocation5 + $0x184]]
    %s1547 = sshra.s32 %s1546, 3
    %s1548 = sand.u32 %s1546, 7
    %s1549 = sshra.s32 %s1546, 3
    %s1550 = sand.u32 %s1546, 7
    %s1551 = smul.u32 %s1547, 4
    %s1552 = smul.u32 %s1551, 8
    %s1553 = sadd.s32 %s1552, %s1550
    %s1554 = scalar_lea.vmem %s2, %s1553
    %v1555 = vld [vmem:[%s1554] ss:$8 sm:$0xf]
    %s1556 = sld [smem:[#allocation5 + $0x204]]
    %s1557 = sshra.s32 %s1556, 3
    %s1558 = sand.u32 %s1556, 7
    %s1559 = sshra.s32 %s1556, 3
    %s1560 = sand.u32 %s1556, 7
    %s1561 = smul.u32 %s1557, 4
    %s1562 = smul.u32 %s1561, 8
    %s1563 = sadd.s32 %s1562, %s1560
    %s1564 = scalar_lea.vmem %s2, %s1563
    %v1565 = vld [vmem:[%s1564] ss:$8 sm:$0xf]
    %s1566 = sld [smem:[#allocation5 + $0x284]]
    %s1567 = sshra.s32 %s1566, 3
    %s1568 = sand.u32 %s1566, 7
    %s1569 = sshra.s32 %s1566, 3
    %s1570 = sand.u32 %s1566, 7
    %s1571 = smul.u32 %s1567, 4
    %s1572 = smul.u32 %s1571, 8
    %s1573 = sadd.s32 %s1572, %s1570
    %s1574 = scalar_lea.vmem %s2, %s1573
    %v1575 = vld [vmem:[%s1574] ss:$8 sm:$0xf]
    %v1577 = vlaneseq
    %v1578 = vshrl.u32 %v1577, 7
    %v1579 = vsub.s32 0, %v1578
    %v1580 = vrot.slane %v1525, %v1579
    %v1581 = vlaneseq
    %v1582 = vshrl.u32 %v1581, 7
    %v1583 = vsub.s32 1, %v1582
    %v1584 = vrot.slane %v1525, %v1583
    %v1585 = vlaneseq
    %v1586 = vshrl.u32 %v1585, 7
    %v1587 = vsub.s32 2, %v1586
    %v1588 = vrot.slane %v1525, %v1587
    %v1589 = vlaneseq
    %v1590 = vshrl.u32 %v1589, 7
    %v1591 = vsub.s32 3, %v1590
    %v1592 = vrot.slane %v1525, %v1591
    %v1598 = vlaneseq
    %v1599 = vshrl.u32 %v1598, 7
    %v1600 = vsub.s32 0, %v1599
    %v1601 = vrot.slane %v1535, %v1600
    %v1602 = vlaneseq
    %v1603 = vshrl.u32 %v1602, 7
    %v1604 = vsub.s32 1, %v1603
    %v1605 = vrot.slane %v1535, %v1604
    %v1606 = vlaneseq
    %v1607 = vshrl.u32 %v1606, 7
    %v1608 = vsub.s32 2, %v1607
    %v1609 = vrot.slane %v1535, %v1608
    %v1610 = vlaneseq
    %v1611 = vshrl.u32 %v1610, 7
    %v1612 = vsub.s32 3, %v1611
    %v1613 = vrot.slane %v1535, %v1612
    %v1619 = vlaneseq
    %v1620 = vshrl.u32 %v1619, 7
    %v1621 = vsub.s32 0, %v1620
    %v1622 = vrot.slane %v1545, %v1621
    %v1623 = vlaneseq
    %v1624 = vshrl.u32 %v1623, 7
    %v1625 = vsub.s32 1, %v1624
    %v1626 = vrot.slane %v1545, %v1625
    %v1627 = vlaneseq
    %v1628 = vshrl.u32 %v1627, 7
    %v1629 = vsub.s32 2, %v1628
    %v1630 = vrot.slane %v1545, %v1629
    %v1631 = vlaneseq
    %v1632 = vshrl.u32 %v1631, 7
    %v1633 = vsub.s32 3, %v1632
    %v1634 = vrot.slane %v1545, %v1633
    %v1640 = vlaneseq
    %v1641 = vshrl.u32 %v1640, 7
    %v1642 = vsub.s32 0, %v1641
    %v1643 = vrot.slane %v1555, %v1642
    %v1644 = vlaneseq
    %v1645 = vshrl.u32 %v1644, 7
    %v1646 = vsub.s32 1, %v1645
    %v1647 = vrot.slane %v1555, %v1646
    %v1648 = vlaneseq
    %v1649 = vshrl.u32 %v1648, 7
    %v1650 = vsub.s32 2, %v1649
    %v1651 = vrot.slane %v1555, %v1650
    %v1652 = vlaneseq
    %v1653 = vshrl.u32 %v1652, 7
    %v1654 = vsub.s32 3, %v1653
    %v1655 = vrot.slane %v1555, %v1654
    %v1661 = vlaneseq
    %v1662 = vshrl.u32 %v1661, 7
    %v1663 = vsub.s32 0, %v1662
    %v1664 = vrot.slane %v1565, %v1663
    %v1665 = vlaneseq
    %v1666 = vshrl.u32 %v1665, 7
    %v1667 = vsub.s32 1, %v1666
    %v1668 = vrot.slane %v1565, %v1667
    %v1669 = vlaneseq
    %v1670 = vshrl.u32 %v1669, 7
    %v1671 = vsub.s32 2, %v1670
    %v1672 = vrot.slane %v1565, %v1671
    %v1673 = vlaneseq
    %v1674 = vshrl.u32 %v1673, 7
    %v1675 = vsub.s32 3, %v1674
    %v1676 = vrot.slane %v1565, %v1675
    %v1682 = vlaneseq
    %v1683 = vshrl.u32 %v1682, 7
    %v1684 = vsub.s32 0, %v1683
    %v1685 = vrot.slane %v1575, %v1684
    %v1686 = vlaneseq
    %v1687 = vshrl.u32 %v1686, 7
    %v1688 = vsub.s32 1, %v1687
    %v1689 = vrot.slane %v1575, %v1688
    %v1690 = vlaneseq
    %v1691 = vshrl.u32 %v1690, 7
    %v1692 = vsub.s32 2, %v1691
    %v1693 = vrot.slane %v1575, %v1692
    %v1694 = vlaneseq
    %v1695 = vshrl.u32 %v1694, 7
    %v1696 = vsub.s32 3, %v1695
    %v1697 = vrot.slane %v1575, %v1696
    %v1702 = vsel %vm277, %v1580, %v1601
    %v1703 = vsel %vm277, %v1584, %v1605
    %v1704 = vsel %vm277, %v1588, %v1609
    %v1705 = vsel %vm277, %v1592, %v1613
    %v1706 = vsel %vm282, %v1702, %v1622
    %v1707 = vsel %vm282, %v1703, %v1626
    %v1708 = vsel %vm282, %v1704, %v1630
    %v1709 = vsel %vm282, %v1705, %v1634
    %v1710 = vsel %vm287, %v1706, %v1643
    %v1711 = vsel %vm287, %v1707, %v1647
    %v1712 = vsel %vm287, %v1708, %v1651
    %v1713 = vsel %vm287, %v1709, %v1655
    %v1714 = vsel %vm292, %v1710, %v1664
    %v1715 = vsel %vm292, %v1711, %v1668
    %v1716 = vsel %vm292, %v1712, %v1672
    %v1717 = vsel %vm292, %v1713, %v1676
    %v1718 = vsel %vm297, %v1714, %v1685
    %v1719 = vsel %vm297, %v1715, %v1689
    %v1720 = vsel %vm297, %v1716, %v1693
    %v1721 = vsel %vm297, %v1717, %v1697
    %v1722 = vsel %vm302, %v1718, 0.0
    %v1723 = vsel %vm302, %v1719, 0.0
    %v1724 = vsel %vm302, %v1720, 0.0
    %v1725 = vsel %vm302, %v1721, 0.0
    %v1726 = vpack.c.bf16 %v1515, %v1515
    %1727 = vmatprep.subr.bf16.mxu0 %v404
    %1728 = vmatpush1.bf16.msra.mxu0 %v403
    %1729 = vmatprep.subr.bf16.mxu0 %v408
    %1730 = vmatpush1.bf16.msra.mxu0 %v407
    %1731 = vmatprep.subr.bf16.mxu0 %v412
    %1732 = vmatpush1.bf16.msra.mxu0 %v411
    %1733 = vmatprep.subr.bf16.mxu0 %v416
    %1734 = vmatpush1.bf16.msra.mxu0 %v415
    %1735 = vmatprep.subr.bf16.mxu0 %v420
    %1736 = vmatpush1.bf16.msra.mxu0 %v419
    %1737 = vmatprep.subr.bf16.mxu0 %v424
    %1738 = vmatpush1.bf16.msra.mxu0 %v423
    %1739 = vmatprep.subr.bf16.mxu0 %v428
    %1740 = vmatpush1.bf16.msra.mxu0 %v427
    %1741 = vmatprep.subr.bf16.mxu0 %v432
    %1742 = vmatpush1.bf16.msra.mxu0 %v431
    %1743 = vmatprep.subr.bf16.mxu0 0
    %1744 = vmatpush1.bf16.msra.mxu0 0
    %1745 = vmatprep.subr.bf16.mxu0 0
    %1746 = vmatpush1.bf16.msra.mxu0 0
    %1747 = vmatprep.subr.bf16.mxu0 0
    %1748 = vmatpush1.bf16.msra.mxu0 0
    %1749 = vmatprep.subr.bf16.mxu0 0
    %1750 = vmatpush1.bf16.msra.mxu0 0
    %1751 = vmatprep.subr.bf16.mxu0 0
    %1752 = vmatpush1.bf16.msra.mxu0 0
    %1753 = vmatprep.subr.bf16.mxu0 0
    %1754 = vmatpush1.bf16.msra.mxu0 0
    %1755 = vmatprep.subr.bf16.mxu0 0
    %1756 = vmatpush1.bf16.msra.mxu0 0
    %1757 = vmatprep.subr.bf16.mxu0 0
    %1758 = vmatpush1.bf16.msra.mxu0 0
    %1759 = vmatprep.mubr.bf16.mxu0 0
    %1760 = vmatmul.mubr.bf16.gmra.mrb[0].mxu0 %v1726
    %v1761 = vpop.f32.mrb[0].mxu0
    %v1762 = vadd.f32 0.0, %v1761
    %v1763 = vpop.f32.mrb[0].mxu0
    %v1764 = vadd.f32 0.0, %v1763
    %v1765 = vpop.f32.mrb[0].mxu0
    %v1766 = vpop.f32.mrb[0].mxu0
    %1767 = vdwg.mxu0
    %1768 = vmatprep.subr.bf16.mxu0 %v406
    %1769 = vmatpush1.bf16.msra.mxu0 %v405
    %1770 = vmatprep.subr.bf16.mxu0 %v410
    %1771 = vmatpush1.bf16.msra.mxu0 %v409
    %1772 = vmatprep.subr.bf16.mxu0 %v414
    %1773 = vmatpush1.bf16.msra.mxu0 %v413
    %1774 = vmatprep.subr.bf16.mxu0 %v418
    %1775 = vmatpush1.bf16.msra.mxu0 %v417
    %1776 = vmatprep.subr.bf16.mxu0 %v422
    %1777 = vmatpush1.bf16.msra.mxu0 %v421
    %1778 = vmatprep.subr.bf16.mxu0 %v426
    %1779 = vmatpush1.bf16.msra.mxu0 %v425
    %1780 = vmatprep.subr.bf16.mxu0 %v430
    %1781 = vmatpush1.bf16.msra.mxu0 %v429
    %1782 = vmatprep.subr.bf16.mxu0 %v434
    %1783 = vmatpush1.bf16.msra.mxu0 %v433
    %1784 = vmatprep.subr.bf16.mxu0 0
    %1785 = vmatpush1.bf16.msra.mxu0 0
    %1786 = vmatprep.subr.bf16.mxu0 0
    %1787 = vmatpush1.bf16.msra.mxu0 0
    %1788 = vmatprep.subr.bf16.mxu0 0
    %1789 = vmatpush1.bf16.msra.mxu0 0
    %1790 = vmatprep.subr.bf16.mxu0 0
    %1791 = vmatpush1.bf16.msra.mxu0 0
    %1792 = vmatprep.subr.bf16.mxu0 0
    %1793 = vmatpush1.bf16.msra.mxu0 0
    %1794 = vmatprep.subr.bf16.mxu0 0
    %1795 = vmatpush1.bf16.msra.mxu0 0
    %1796 = vmatprep.subr.bf16.mxu0 0
    %1797 = vmatpush1.bf16.msra.mxu0 0
    %1798 = vmatprep.subr.bf16.mxu0 0
    %1799 = vmatpush1.bf16.msra.mxu0 0
    %1800 = vmatprep.mubr.bf16.mxu0 0
    %1801 = vmatmul.mubr.bf16.gmra.mrb[0].mxu0 %v1726
    %v1802 = vpop.f32.mrb[0].mxu0
    %v1803 = vadd.f32 0.0, %v1802
    %v1804 = vpop.f32.mrb[0].mxu0
    %v1805 = vadd.f32 0.0, %v1804
    %v1806 = vpop.f32.mrb[0].mxu0
    %v1807 = vpop.f32.mrb[0].mxu0
    %1808 = vdwg.mxu0
    %v1809 = vadd.f32 %v1722, %v1762
    %v1810 = vadd.f32 %v1723, %v1764
    %v1811 = vadd.f32 %v1724, %v1803
    %v1812 = vadd.f32 %v1725, %v1805
    %v1813 = vmul.f32 %v1809, 0.5
    %v1814 = vtanh.pop %v1813
    %v1815 = vmul.f32 %v1814, 0.5
    %v1816 = vadd.f32 %v1815, 0.5
    %v1817 = vmul.f32 %v1810, 0.5
    %v1818 = vtanh.pop %v1817
    %v1819 = vmul.f32 %v1818, 0.5
    %v1820 = vadd.f32 %v1819, 0.5
    %v1821 = vtanh.pop %v1811
    %v1822 = vmul.f32 %v1812, 0.5
    %v1823 = vtanh.pop %v1822
    %v1824 = vmul.f32 %v1823, 0.5
    %v1825 = vadd.f32 %v1824, 0.5
    %v1826 = vmul.f32 %v1820, %v1513
    %v1827 = vmul.f32 %v1816, %v1821
    %v1828 = vadd.f32 %v1826, %v1827
    %v1829 = vtanh.pop %v1828
    %v1830 = vmul.f32 %v1825, %v1829
    %v1831 = vpack.c.bf16 %v1830, %v1830
    %v1832 = vld [vmem:[%s5] sm:$0xff]
    %v1833 = vld [vmem:[%s5 + $0x8] sm:$0xff]
    %v1834 = vld [vmem:[%s5 + $0x10] sm:$0xff]
    %v1835 = vld [vmem:[%s5 + $0x18] sm:$0xff]
    %v1836 = vld [vmem:[%s5 + $0x20] sm:$0xff]
    %v1837 = vld [vmem:[%s5 + $0x28] sm:$0xff]
    %v1838 = vld [vmem:[%s5 + $0x30] sm:$0xff]
    %v1839 = vld [vmem:[%s5 + $0x38] sm:$0xff]
    %v1840 = vld [vmem:[%s5 + $0x40] sm:$0xff]
    %v1841 = vld [vmem:[%s5 + $0x48] sm:$0xff]
    %v1842 = vld [vmem:[%s5 + $0x50] sm:$0xff]
    %v1843 = vld [vmem:[%s5 + $0x58] sm:$0xff]
    %v1844 = vld [vmem:[%s5 + $0x60] sm:$0xff]
    %v1845 = vld [vmem:[%s5 + $0x68] sm:$0xff]
    %v1846 = vld [vmem:[%s5 + $0x70] sm:$0xff]
    %v1847 = vld [vmem:[%s5 + $0x78] sm:$0xff]
    %v1848 = vld [vmem:[%s5 + $0x80] sm:$0xff]
    %v1849 = vld [vmem:[%s5 + $0x88] sm:$0xff]
    %v1850 = vld [vmem:[%s5 + $0x90] sm:$0xff]
    %v1851 = vld [vmem:[%s5 + $0x98] sm:$0xff]
    %v1852 = vld [vmem:[%s5 + $0xa0] sm:$0xff]
    %v1853 = vld [vmem:[%s5 + $0xa8] sm:$0xff]
    %v1854 = vld [vmem:[%s5 + $0xb0] sm:$0xff]
    %v1855 = vld [vmem:[%s5 + $0xb8] sm:$0xff]
    %v1856 = vld [vmem:[%s5 + $0xc0] sm:$0xff]
    %v1857 = vld [vmem:[%s5 + $0xc8] sm:$0xff]
    %v1858 = vld [vmem:[%s5 + $0xd0] sm:$0xff]
    %v1859 = vld [vmem:[%s5 + $0xd8] sm:$0xff]
    %v1860 = vld [vmem:[%s5 + $0xe0] sm:$0xff]
    %v1861 = vld [vmem:[%s5 + $0xe8] sm:$0xff]
    %v1862 = vld [vmem:[%s5 + $0xf0] sm:$0xff]
    %v1863 = vld [vmem:[%s5 + $0xf8] sm:$0xff]
    %v1896 = vunpack.c.l.b16 %v1832
    %v1897 = vunpack.c.h.b16 %v1832
    %v1898 = vunpack.c.l.b16 %v1833
    %v1899 = vunpack.c.h.b16 %v1833
    %v1900 = vunpack.c.l.b16 %v1834
    %v1901 = vunpack.c.h.b16 %v1834
    %v1902 = vunpack.c.l.b16 %v1835
    %v1903 = vunpack.c.h.b16 %v1835
    %v1904 = vunpack.c.l.b16 %v1836
    %v1905 = vunpack.c.h.b16 %v1836
    %v1906 = vunpack.c.l.b16 %v1837
    %v1907 = vunpack.c.h.b16 %v1837
    %v1908 = vunpack.c.l.b16 %v1838
    %v1909 = vunpack.c.h.b16 %v1838
    %v1910 = vunpack.c.l.b16 %v1839
    %v1911 = vunpack.c.h.b16 %v1839
    %v1912 = vunpack.c.l.b16 %v1840
    %v1913 = vunpack.c.h.b16 %v1840
    %v1914 = vunpack.c.l.b16 %v1841
    %v1915 = vunpack.c.h.b16 %v1841
    %v1916 = vunpack.c.l.b16 %v1842
    %v1917 = vunpack.c.h.b16 %v1842
    %v1918 = vunpack.c.l.b16 %v1843
    %v1919 = vunpack.c.h.b16 %v1843
    %v1920 = vunpack.c.l.b16 %v1844
    %v1921 = vunpack.c.h.b16 %v1844
    %v1922 = vunpack.c.l.b16 %v1845
    %v1923 = vunpack.c.h.b16 %v1845
    %v1924 = vunpack.c.l.b16 %v1846
    %v1925 = vunpack.c.h.b16 %v1846
    %v1926 = vunpack.c.l.b16 %v1847
    %v1927 = vunpack.c.h.b16 %v1847
    %v1928 = vunpack.c.l.b16 %v1848
    %v1929 = vunpack.c.h.b16 %v1848
    %v1930 = vunpack.c.l.b16 %v1849
    %v1931 = vunpack.c.h.b16 %v1849
    %v1932 = vunpack.c.l.b16 %v1850
    %v1933 = vunpack.c.h.b16 %v1850
    %v1934 = vunpack.c.l.b16 %v1851
    %v1935 = vunpack.c.h.b16 %v1851
    %v1936 = vunpack.c.l.b16 %v1852
    %v1937 = vunpack.c.h.b16 %v1852
    %v1938 = vunpack.c.l.b16 %v1853
    %v1939 = vunpack.c.h.b16 %v1853
    %v1940 = vunpack.c.l.b16 %v1854
    %v1941 = vunpack.c.h.b16 %v1854
    %v1942 = vunpack.c.l.b16 %v1855
    %v1943 = vunpack.c.h.b16 %v1855
    %v1944 = vunpack.c.l.b16 %v1856
    %v1945 = vunpack.c.h.b16 %v1856
    %v1946 = vunpack.c.l.b16 %v1857
    %v1947 = vunpack.c.h.b16 %v1857
    %v1948 = vunpack.c.l.b16 %v1858
    %v1949 = vunpack.c.h.b16 %v1858
    %v1950 = vunpack.c.l.b16 %v1859
    %v1951 = vunpack.c.h.b16 %v1859
    %v1952 = vunpack.c.l.b16 %v1860
    %v1953 = vunpack.c.h.b16 %v1860
    %v1954 = vunpack.c.l.b16 %v1861
    %v1955 = vunpack.c.h.b16 %v1861
    %v1956 = vunpack.c.l.b16 %v1862
    %v1957 = vunpack.c.h.b16 %v1862
    %v1958 = vunpack.c.l.b16 %v1863
    %v1959 = vunpack.c.h.b16 %v1863
    %v1960 = vpack.c.b16 %v1900, %v1896
    %v1961 = vpack.c.b16 %v1901, %v1897
    %v1962 = vpack.c.b16 %v1902, %v1898
    %v1963 = vpack.c.b16 %v1903, %v1899
    %v1964 = vpack.c.b16 %v1908, %v1904
    %v1965 = vpack.c.b16 %v1909, %v1905
    %v1966 = vpack.c.b16 %v1910, %v1906
    %v1967 = vpack.c.b16 %v1911, %v1907
    %v1968 = vpack.c.b16 %v1916, %v1912
    %v1969 = vpack.c.b16 %v1917, %v1913
    %v1970 = vpack.c.b16 %v1918, %v1914
    %v1971 = vpack.c.b16 %v1919, %v1915
    %v1972 = vpack.c.b16 %v1924, %v1920
    %v1973 = vpack.c.b16 %v1925, %v1921
    %v1974 = vpack.c.b16 %v1926, %v1922
    %v1975 = vpack.c.b16 %v1927, %v1923
    %v1976 = vpack.c.b16 %v1932, %v1928
    %v1977 = vpack.c.b16 %v1933, %v1929
    %v1978 = vpack.c.b16 %v1934, %v1930
    %v1979 = vpack.c.b16 %v1935, %v1931
    %v1980 = vpack.c.b16 %v1940, %v1936
    %v1981 = vpack.c.b16 %v1941, %v1937
    %v1982 = vpack.c.b16 %v1942, %v1938
    %v1983 = vpack.c.b16 %v1943, %v1939
    %v1984 = vpack.c.b16 %v1948, %v1944
    %v1985 = vpack.c.b16 %v1949, %v1945
    %v1986 = vpack.c.b16 %v1950, %v1946
    %v1987 = vpack.c.b16 %v1951, %v1947
    %v1988 = vpack.c.b16 %v1956, %v1952
    %v1989 = vpack.c.b16 %v1957, %v1953
    %v1990 = vpack.c.b16 %v1958, %v1954
    %v1991 = vpack.c.b16 %v1959, %v1955
    %2024 = vmatprep.subr.bf16.mxu0 %v1961
    %2025 = vmatpush1.bf16.msra.mxu0 %v1960
    %2026 = vmatprep.subr.bf16.mxu0 %v1965
    %2027 = vmatpush1.bf16.msra.mxu0 %v1964
    %2028 = vmatprep.subr.bf16.mxu0 %v1969
    %2029 = vmatpush1.bf16.msra.mxu0 %v1968
    %2030 = vmatprep.subr.bf16.mxu0 %v1973
    %2031 = vmatpush1.bf16.msra.mxu0 %v1972
    %2032 = vmatprep.subr.bf16.mxu0 %v1977
    %2033 = vmatpush1.bf16.msra.mxu0 %v1976
    %2034 = vmatprep.subr.bf16.mxu0 %v1981
    %2035 = vmatpush1.bf16.msra.mxu0 %v1980
    %2036 = vmatprep.subr.bf16.mxu0 %v1985
    %2037 = vmatpush1.bf16.msra.mxu0 %v1984
    %2038 = vmatprep.subr.bf16.mxu0 %v1989
    %2039 = vmatpush1.bf16.msra.mxu0 %v1988
    %2040 = vmatprep.subr.bf16.mxu0 0
    %2041 = vmatpush1.bf16.msra.mxu0 0
    %2042 = vmatprep.subr.bf16.mxu0 0
    %2043 = vmatpush1.bf16.msra.mxu0 0
    %2044 = vmatprep.subr.bf16.mxu0 0
    %2045 = vmatpush1.bf16.msra.mxu0 0
    %2046 = vmatprep.subr.bf16.mxu0 0
    %2047 = vmatpush1.bf16.msra.mxu0 0
    %2048 = vmatprep.subr.bf16.mxu0 0
    %2049 = vmatpush1.bf16.msra.mxu0 0
    %2050 = vmatprep.subr.bf16.mxu0 0
    %2051 = vmatpush1.bf16.msra.mxu0 0
    %2052 = vmatprep.subr.bf16.mxu0 0
    %2053 = vmatpush1.bf16.msra.mxu0 0
    %2054 = vmatprep.subr.bf16.mxu0 0
    %2055 = vmatpush1.bf16.msra.mxu0 0
    %2056 = vmatprep.mubr.bf16.mxu0 0
    %2057 = vmatmul.mubr.bf16.gmra.mrb[0].mxu0 %v1831
    %v2058 = vpop.f32.mrb[0].mxu0
    %v2059 = vadd.f32 0.0, %v2058
    %v2060 = vpop.f32.mrb[0].mxu0
    %v2061 = vadd.f32 0.0, %v2060
    %v2062 = vpop.f32.mrb[0].mxu0
    %v2063 = vpop.f32.mrb[0].mxu0
    %2064 = vdwg.mxu0
    %2065 = vmatprep.subr.bf16.mxu0 %v1963
    %2066 = vmatpush1.bf16.msra.mxu0 %v1962
    %2067 = vmatprep.subr.bf16.mxu0 %v1967
    %2068 = vmatpush1.bf16.msra.mxu0 %v1966
    %2069 = vmatprep.subr.bf16.mxu0 %v1971
    %2070 = vmatpush1.bf16.msra.mxu0 %v1970
    %2071 = vmatprep.subr.bf16.mxu0 %v1975
    %2072 = vmatpush1.bf16.msra.mxu0 %v1974
    %2073 = vmatprep.subr.bf16.mxu0 %v1979
    %2074 = vmatpush1.bf16.msra.mxu0 %v1978
    %2075 = vmatprep.subr.bf16.mxu0 %v1983
    %2076 = vmatpush1.bf16.msra.mxu0 %v1982
    %2077 = vmatprep.subr.bf16.mxu0 %v1987
    %2078 = vmatpush1.bf16.msra.mxu0 %v1986
    %2079 = vmatprep.subr.bf16.mxu0 %v1991
    %2080 = vmatpush1.bf16.msra.mxu0 %v1990
    %2081 = vmatprep.subr.bf16.mxu0 0
    %2082 = vmatpush1.bf16.msra.mxu0 0
    %2083 = vmatprep.subr.bf16.mxu0 0
    %2084 = vmatpush1.bf16.msra.mxu0 0
    %2085 = vmatprep.subr.bf16.mxu0 0
    %2086 = vmatpush1.bf16.msra.mxu0 0
    %2087 = vmatprep.subr.bf16.mxu0 0
    %2088 = vmatpush1.bf16.msra.mxu0 0
    %2089 = vmatprep.subr.bf16.mxu0 0
    %2090 = vmatpush1.bf16.msra.mxu0 0
    %2091 = vmatprep.subr.bf16.mxu0 0
    %2092 = vmatpush1.bf16.msra.mxu0 0
    %2093 = vmatprep.subr.bf16.mxu0 0
    %2094 = vmatpush1.bf16.msra.mxu0 0
    %2095 = vmatprep.subr.bf16.mxu0 0
    %2096 = vmatpush1.bf16.msra.mxu0 0
    %2097 = vmatprep.mubr.bf16.mxu0 0
    %2098 = vmatmul.mubr.bf16.gmra.mrb[0].mxu0 %v1831
    %v2099 = vpop.f32.mrb[0].mxu0
    %v2100 = vadd.f32 0.0, %v2099
    %v2101 = vpop.f32.mrb[0].mxu0
    %v2102 = vadd.f32 0.0, %v2101
    %v2103 = vpop.f32.mrb[0].mxu0
    %v2104 = vpop.f32.mrb[0].mxu0
    %2105 = vdwg.mxu0
    %v2106 = vld [vmem:[%s6] sm:$0xff]
    %v2107 = vld [vmem:[%s6 + $0x8] sm:$0xff]
    %v2108 = vld [vmem:[%s6 + $0x10] sm:$0xff]
    %v2109 = vld [vmem:[%s6 + $0x18] sm:$0xff]
    %v2110 = vld [vmem:[%s6 + $0x20] sm:$0xff]
    %v2111 = vld [vmem:[%s6 + $0x28] sm:$0xff]
    %v2112 = vld [vmem:[%s6 + $0x30] sm:$0xff]
    %v2113 = vld [vmem:[%s6 + $0x38] sm:$0xff]
    %v2114 = vld [vmem:[%s6 + $0x40] sm:$0xff]
    %v2115 = vld [vmem:[%s6 + $0x48] sm:$0xff]
    %v2116 = vld [vmem:[%s6 + $0x50] sm:$0xff]
    %v2117 = vld [vmem:[%s6 + $0x58] sm:$0xff]
    %v2118 = vld [vmem:[%s6 + $0x60] sm:$0xff]
    %v2119 = vld [vmem:[%s6 + $0x68] sm:$0xff]
    %v2120 = vld [vmem:[%s6 + $0x70] sm:$0xff]
    %v2121 = vld [vmem:[%s6 + $0x78] sm:$0xff]
    %v2122 = vld [vmem:[%s6 + $0x80] sm:$0xff]
    %v2123 = vld [vmem:[%s6 + $0x88] sm:$0xff]
    %v2124 = vld [vmem:[%s6 + $0x90] sm:$0xff]
    %v2125 = vld [vmem:[%s6 + $0x98] sm:$0xff]
    %v2126 = vld [vmem:[%s6 + $0xa0] sm:$0xff]
    %v2127 = vld [vmem:[%s6 + $0xa8] sm:$0xff]
    %v2128 = vld [vmem:[%s6 + $0xb0] sm:$0xff]
    %v2129 = vld [vmem:[%s6 + $0xb8] sm:$0xff]
    %v2130 = vld [vmem:[%s6 + $0xc0] sm:$0xff]
    %v2131 = vld [vmem:[%s6 + $0xc8] sm:$0xff]
    %v2132 = vld [vmem:[%s6 + $0xd0] sm:$0xff]
    %v2133 = vld [vmem:[%s6 + $0xd8] sm:$0xff]
    %v2134 = vld [vmem:[%s6 + $0xe0] sm:$0xff]
    %v2135 = vld [vmem:[%s6 + $0xe8] sm:$0xff]
    %v2136 = vld [vmem:[%s6 + $0xf0] sm:$0xff]
    %v2137 = vld [vmem:[%s6 + $0xf8] sm:$0xff]
    %s2138 = sld [smem:[#allocation2]]
    %s2139 = sshra.s32 %s2138, 3
    %s2140 = sand.u32 %s2138, 7
    %s2141 = sshra.s32 %s2138, 3
    %s2142 = sand.u32 %s2138, 7
    %s2143 = smul.u32 %s2139, 4
    %s2144 = smul.u32 %s2143, 8
    %s2145 = sadd.s32 %s2144, %s2142
    %s2146 = scalar_lea.vmem %s3, %s2145
    %v2147 = vld [vmem:[%s2146] ss:$8 sm:$0xf]
    %v2152 = vcombine.low %v2059, %v2061
    %v2153 = vcombine.low %v2100, %v2102
    %v2155 = vunpack.c.l.s4 1966171168
    %v2156 = vunpack.c.0.s8 %v2155
    %v2157 = vlaneseq
    %v2158 = vshrl.u32 %v2157, 7
    %v2159 = vsub.s32 %v2156, %v2158
    %v2160 = vrot.slane %v2152, %v2159
    %v2162 = vunpack.c.l.s4 1966171168
    %v2163 = vunpack.c.0.s8 %v2162
    %v2164 = vlaneseq
    %v2165 = vshrl.u32 %v2164, 7
    %v2166 = vsub.s32 %v2163, %v2165
    %v2167 = vrot.slane %v2153, %v2166
    %v2168 = vcombine.low %v2160, %v2167
    %v2170 = vunpack.c.l.s4 1966171168
    %v2171 = vunpack.c.0.s8 %v2170
    %v2172 = vlaneseq
    %v2173 = vshrl.u32 %v2172, 7
    %v2174 = vsub.s32 %v2171, %v2173
    %v2175 = vrot.slane %v2168, %v2174
    %v2177 = vadd.f32 %v2147, %v2175
    %v2210 = vunpack.c.l.b16 %v2106
    %v2211 = vunpack.c.h.b16 %v2106
    %v2212 = vunpack.c.l.b16 %v2107
    %v2213 = vunpack.c.h.b16 %v2107
    %v2214 = vunpack.c.l.b16 %v2108
    %v2215 = vunpack.c.h.b16 %v2108
    %v2216 = vunpack.c.l.b16 %v2109
    %v2217 = vunpack.c.h.b16 %v2109
    %v2218 = vunpack.c.l.b16 %v2110
    %v2219 = vunpack.c.h.b16 %v2110
    %v2220 = vunpack.c.l.b16 %v2111
    %v2221 = vunpack.c.h.b16 %v2111
    %v2222 = vunpack.c.l.b16 %v2112
    %v2223 = vunpack.c.h.b16 %v2112
    %v2224 = vunpack.c.l.b16 %v2113
    %v2225 = vunpack.c.h.b16 %v2113
    %v2226 = vunpack.c.l.b16 %v2114
    %v2227 = vunpack.c.h.b16 %v2114
    %v2228 = vunpack.c.l.b16 %v2115
    %v2229 = vunpack.c.h.b16 %v2115
    %v2230 = vunpack.c.l.b16 %v2116
    %v2231 = vunpack.c.h.b16 %v2116
    %v2232 = vunpack.c.l.b16 %v2117
    %v2233 = vunpack.c.h.b16 %v2117
    %v2234 = vunpack.c.l.b16 %v2118
    %v2235 = vunpack.c.h.b16 %v2118
    %v2236 = vunpack.c.l.b16 %v2119
    %v2237 = vunpack.c.h.b16 %v2119
    %v2238 = vunpack.c.l.b16 %v2120
    %v2239 = vunpack.c.h.b16 %v2120
    %v2240 = vunpack.c.l.b16 %v2121
    %v2241 = vunpack.c.h.b16 %v2121
    %v2242 = vunpack.c.l.b16 %v2122
    %v2243 = vunpack.c.h.b16 %v2122
    %v2244 = vunpack.c.l.b16 %v2123
    %v2245 = vunpack.c.h.b16 %v2123
    %v2246 = vunpack.c.l.b16 %v2124
    %v2247 = vunpack.c.h.b16 %v2124
    %v2248 = vunpack.c.l.b16 %v2125
    %v2249 = vunpack.c.h.b16 %v2125
    %v2250 = vunpack.c.l.b16 %v2126
    %v2251 = vunpack.c.h.b16 %v2126
    %v2252 = vunpack.c.l.b16 %v2127
    %v2253 = vunpack.c.h.b16 %v2127
    %v2254 = vunpack.c.l.b16 %v2128
    %v2255 = vunpack.c.h.b16 %v2128
    %v2256 = vunpack.c.l.b16 %v2129
    %v2257 = vunpack.c.h.b16 %v2129
    %v2258 = vunpack.c.l.b16 %v2130
    %v2259 = vunpack.c.h.b16 %v2130
    %v2260 = vunpack.c.l.b16 %v2131
    %v2261 = vunpack.c.h.b16 %v2131
    %v2262 = vunpack.c.l.b16 %v2132
    %v2263 = vunpack.c.h.b16 %v2132
    %v2264 = vunpack.c.l.b16 %v2133
    %v2265 = vunpack.c.h.b16 %v2133
    %v2266 = vunpack.c.l.b16 %v2134
    %v2267 = vunpack.c.h.b16 %v2134
    %v2268 = vunpack.c.l.b16 %v2135
    %v2269 = vunpack.c.h.b16 %v2135
    %v2270 = vunpack.c.l.b16 %v2136
    %v2271 = vunpack.c.h.b16 %v2136
    %v2272 = vunpack.c.l.b16 %v2137
    %v2273 = vunpack.c.h.b16 %v2137
    %v2274 = vpack.c.b16 %v2214, %v2210
    %v2275 = vpack.c.b16 %v2215, %v2211
    %v2276 = vpack.c.b16 %v2216, %v2212
    %v2277 = vpack.c.b16 %v2217, %v2213
    %v2278 = vpack.c.b16 %v2222, %v2218
    %v2279 = vpack.c.b16 %v2223, %v2219
    %v2280 = vpack.c.b16 %v2224, %v2220
    %v2281 = vpack.c.b16 %v2225, %v2221
    %v2282 = vpack.c.b16 %v2230, %v2226
    %v2283 = vpack.c.b16 %v2231, %v2227
    %v2284 = vpack.c.b16 %v2232, %v2228
    %v2285 = vpack.c.b16 %v2233, %v2229
    %v2286 = vpack.c.b16 %v2238, %v2234
    %v2287 = vpack.c.b16 %v2239, %v2235
    %v2288 = vpack.c.b16 %v2240, %v2236
    %v2289 = vpack.c.b16 %v2241, %v2237
    %v2290 = vpack.c.b16 %v2246, %v2242
    %v2291 = vpack.c.b16 %v2247, %v2243
    %v2292 = vpack.c.b16 %v2248, %v2244
    %v2293 = vpack.c.b16 %v2249, %v2245
    %v2294 = vpack.c.b16 %v2254, %v2250
    %v2295 = vpack.c.b16 %v2255, %v2251
    %v2296 = vpack.c.b16 %v2256, %v2252
    %v2297 = vpack.c.b16 %v2257, %v2253
    %v2298 = vpack.c.b16 %v2262, %v2258
    %v2299 = vpack.c.b16 %v2263, %v2259
    %v2300 = vpack.c.b16 %v2264, %v2260
    %v2301 = vpack.c.b16 %v2265, %v2261
    %v2302 = vpack.c.b16 %v2270, %v2266
    %v2303 = vpack.c.b16 %v2271, %v2267
    %v2304 = vpack.c.b16 %v2272, %v2268
    %v2305 = vpack.c.b16 %v2273, %v2269
    %2338 = vmatprep.subr.bf16.mxu0 %v2275
    %2339 = vmatpush1.bf16.msra.mxu0 %v2274
    %2340 = vmatprep.subr.bf16.mxu0 %v2279
    %2341 = vmatpush1.bf16.msra.mxu0 %v2278
    %2342 = vmatprep.subr.bf16.mxu0 %v2283
    %2343 = vmatpush1.bf16.msra.mxu0 %v2282
    %2344 = vmatprep.subr.bf16.mxu0 %v2287
    %2345 = vmatpush1.bf16.msra.mxu0 %v2286
    %2346 = vmatprep.subr.bf16.mxu0 %v2291
    %2347 = vmatpush1.bf16.msra.mxu0 %v2290
    %2348 = vmatprep.subr.bf16.mxu0 %v2295
    %2349 = vmatpush1.bf16.msra.mxu0 %v2294
    %2350 = vmatprep.subr.bf16.mxu0 %v2299
    %2351 = vmatpush1.bf16.msra.mxu0 %v2298
    %2352 = vmatprep.subr.bf16.mxu0 %v2303
    %2353 = vmatpush1.bf16.msra.mxu0 %v2302
    %2354 = vmatprep.subr.bf16.mxu0 0
    %2355 = vmatpush1.bf16.msra.mxu0 0
    %2356 = vmatprep.subr.bf16.mxu0 0
    %2357 = vmatpush1.bf16.msra.mxu0 0
    %2358 = vmatprep.subr.bf16.mxu0 0
    %2359 = vmatpush1.bf16.msra.mxu0 0
    %2360 = vmatprep.subr.bf16.mxu0 0
    %2361 = vmatpush1.bf16.msra.mxu0 0
    %2362 = vmatprep.subr.bf16.mxu0 0
    %2363 = vmatpush1.bf16.msra.mxu0 0
    %2364 = vmatprep.subr.bf16.mxu0 0
    %2365 = vmatpush1.bf16.msra.mxu0 0
    %2366 = vmatprep.subr.bf16.mxu0 0
    %2367 = vmatpush1.bf16.msra.mxu0 0
    %2368 = vmatprep.subr.bf16.mxu0 0
    %2369 = vmatpush1.bf16.msra.mxu0 0
    %2370 = vmatprep.mubr.bf16.mxu0 0
    %2371 = vmatmul.mubr.bf16.gmra.mrb[0].mxu0 0
    %v2372 = vpop.f32.mrb[0].mxu0
    %v2373 = vadd.f32 0.0, %v2372
    %v2374 = vpop.f32.mrb[0].mxu0
    %v2375 = vadd.f32 0.0, %v2374
    %v2376 = vpop.f32.mrb[0].mxu0
    %v2377 = vpop.f32.mrb[0].mxu0
    %2378 = vdwg.mxu0
    %2379 = vmatprep.subr.bf16.mxu0 %v2277
    %2380 = vmatpush1.bf16.msra.mxu0 %v2276
    %2381 = vmatprep.subr.bf16.mxu0 %v2281
    %2382 = vmatpush1.bf16.msra.mxu0 %v2280
    %2383 = vmatprep.subr.bf16.mxu0 %v2285
    %2384 = vmatpush1.bf16.msra.mxu0 %v2284
    %2385 = vmatprep.subr.bf16.mxu0 %v2289
    %2386 = vmatpush1.bf16.msra.mxu0 %v2288
    %2387 = vmatprep.subr.bf16.mxu0 %v2293
    %2388 = vmatpush1.bf16.msra.mxu0 %v2292
    %2389 = vmatprep.subr.bf16.mxu0 %v2297
    %2390 = vmatpush1.bf16.msra.mxu0 %v2296
    %2391 = vmatprep.subr.bf16.mxu0 %v2301
    %2392 = vmatpush1.bf16.msra.mxu0 %v2300
    %2393 = vmatprep.subr.bf16.mxu0 %v2305
    %2394 = vmatpush1.bf16.msra.mxu0 %v2304
    %2395 = vmatprep.subr.bf16.mxu0 0
    %2396 = vmatpush1.bf16.msra.mxu0 0
    %2397 = vmatprep.subr.bf16.mxu0 0
    %2398 = vmatpush1.bf16.msra.mxu0 0
    %2399 = vmatprep.subr.bf16.mxu0 0
    %2400 = vmatpush1.bf16.msra.mxu0 0
    %2401 = vmatprep.subr.bf16.mxu0 0
    %2402 = vmatpush1.bf16.msra.mxu0 0
    %2403 = vmatprep.subr.bf16.mxu0 0
    %2404 = vmatpush1.bf16.msra.mxu0 0
    %2405 = vmatprep.subr.bf16.mxu0 0
    %2406 = vmatpush1.bf16.msra.mxu0 0
    %2407 = vmatprep.subr.bf16.mxu0 0
    %2408 = vmatpush1.bf16.msra.mxu0 0
    %2409 = vmatprep.subr.bf16.mxu0 0
    %2410 = vmatpush1.bf16.msra.mxu0 0
    %2411 = vmatprep.mubr.bf16.mxu0 0
    %2412 = vmatmul.mubr.bf16.gmra.mrb[0].mxu0 0
    %v2413 = vpop.f32.mrb[0].mxu0
    %v2414 = vadd.f32 0.0, %v2413
    %v2415 = vpop.f32.mrb[0].mxu0
    %v2416 = vadd.f32 0.0, %v2415
    %v2417 = vpop.f32.mrb[0].mxu0
    %v2418 = vpop.f32.mrb[0].mxu0
    %2419 = vdwg.mxu0
    %v2424 = vcombine.low %v2373, %v2375
    %v2425 = vcombine.low %v2414, %v2416
    %v2427 = vunpack.c.l.s4 1966171168
    %v2428 = vunpack.c.0.s8 %v2427
    %v2429 = vlaneseq
    %v2430 = vshrl.u32 %v2429, 7
    %v2431 = vsub.s32 %v2428, %v2430
    %v2432 = vrot.slane %v2424, %v2431
    %v2434 = vunpack.c.l.s4 1966171168
    %v2435 = vunpack.c.0.s8 %v2434
    %v2436 = vlaneseq
    %v2437 = vshrl.u32 %v2436, 7
    %v2438 = vsub.s32 %v2435, %v2437
    %v2439 = vrot.slane %v2425, %v2438
    %v2440 = vcombine.low %v2432, %v2439
    %v2442 = vunpack.c.l.s4 1966171168
    %v2443 = vunpack.c.0.s8 %v2442
    %v2444 = vlaneseq
    %v2445 = vshrl.u32 %v2444, 7
    %v2446 = vsub.s32 %v2443, %v2445
    %v2447 = vrot.slane %v2440, %v2446
    %v2449 = vadd.f32 %v2177, %v2447
    %v2450 = vmul.f32 %v2449, 0.5
    %v2451 = vtanh.pop %v2450
    %v2452 = vmul.f32 %v2451, 0.5
    %v2453 = vadd.f32 %v2452, 0.5
    %v2455 = vrot.slane %v2449, 1
    %v2457 = vmul.f32 %v2455, 0.5
    %v2458 = vtanh.pop %v2457
    %v2459 = vmul.f32 %v2458, 0.5
    %v2460 = vadd.f32 %v2459, 0.5
    %v2461 = vrot.slane %v2449, 2
    %v2463 = vtanh.pop %v2461
    %v2464 = vrot.slane %v2449, 3
    %v2466 = vmul.f32 %v2464, 0.5
    %v2467 = vtanh.pop %v2466
    %v2468 = vmul.f32 %v2467, 0.5
    %v2469 = vadd.f32 %v2468, 0.5
    %v2470 = vmul.f32 %v2460, 0.0
    %v2471 = vmul.f32 %v2453, %v2463
    %v2472 = vadd.f32 %v2470, %v2471
    %v2473 = vtanh.pop %v2472
    %v2474 = vmul.f32 %v2469, %v2473
    %s2475 = sld [smem:[#allocation2 + $0x1]]
    %s2476 = sshra.s32 %s2475, 3
    %s2477 = sand.u32 %s2475, 7
    %s2478 = sshra.s32 %s2475, 3
    %s2479 = sand.u32 %s2475, 7
    %s2480 = smul.u32 %s2476, 4
    %s2481 = smul.u32 %s2480, 8
    %s2482 = sadd.s32 %s2481, %s2479
    %s2483 = scalar_lea.vmem %s3, %s2482
    %v2484 = vld [vmem:[%s2483] ss:$8 sm:$0xf]
    %v2485 = vcombine.high %v2160, %v2167
    %v2487 = vunpack.c.l.s4 1966171168
    %v2488 = vunpack.c.0.s8 %v2487
    %v2489 = vlaneseq
    %v2490 = vshrl.u32 %v2489, 7
    %v2491 = vsub.s32 %v2488, %v2490
    %v2492 = vrot.slane %v2485, %v2491
    %v2494 = vadd.f32 %v2484, %v2492
    %v2495 = vpack.c.bf16 %v2474, %v2474
    %2496 = vmatprep.subr.bf16.mxu0 %v2275
    %2497 = vmatpush1.bf16.msra.mxu0 %v2274
    %2498 = vmatprep.subr.bf16.mxu0 %v2279
    %2499 = vmatpush1.bf16.msra.mxu0 %v2278
    %2500 = vmatprep.subr.bf16.mxu0 %v2283
    %2501 = vmatpush1.bf16.msra.mxu0 %v2282
    %2502 = vmatprep.subr.bf16.mxu0 %v2287
    %2503 = vmatpush1.bf16.msra.mxu0 %v2286
    %2504 = vmatprep.subr.bf16.mxu0 %v2291
    %2505 = vmatpush1.bf16.msra.mxu0 %v2290
    %2506 = vmatprep.subr.bf16.mxu0 %v2295
    %2507 = vmatpush1.bf16.msra.mxu0 %v2294
    %2508 = vmatprep.subr.bf16.mxu0 %v2299
    %2509 = vmatpush1.bf16.msra.mxu0 %v2298
    %2510 = vmatprep.subr.bf16.mxu0 %v2303
    %2511 = vmatpush1.bf16.msra.mxu0 %v2302
    %2512 = vmatprep.subr.bf16.mxu0 0
    %2513 = vmatpush1.bf16.msra.mxu0 0
    %2514 = vmatprep.subr.bf16.mxu0 0
    %2515 = vmatpush1.bf16.msra.mxu0 0
    %2516 = vmatprep.subr.bf16.mxu0 0
    %2517 = vmatpush1.bf16.msra.mxu0 0
    %2518 = vmatprep.subr.bf16.mxu0 0
    %2519 = vmatpush1.bf16.msra.mxu0 0
    %2520 = vmatprep.subr.bf16.mxu0 0
    %2521 = vmatpush1.bf16.msra.mxu0 0
    %2522 = vmatprep.subr.bf16.mxu0 0
    %2523 = vmatpush1.bf16.msra.mxu0 0
    %2524 = vmatprep.subr.bf16.mxu0 0
    %2525 = vmatpush1.bf16.msra.mxu0 0
    %2526 = vmatprep.subr.bf16.mxu0 0
    %2527 = vmatpush1.bf16.msra.mxu0 0
    %2528 = vmatprep.mubr.bf16.mxu0 0
    %2529 = vmatmul.mubr.bf16.gmra.mrb[0].mxu0 %v2495
    %v2530 = vpop.f32.mrb[0].mxu0
    %v2531 = vadd.f32 0.0, %v2530
    %v2532 = vpop.f32.mrb[0].mxu0
    %v2533 = vadd.f32 0.0, %v2532
    %v2534 = vpop.f32.mrb[0].mxu0
    %v2535 = vpop.f32.mrb[0].mxu0
    %2536 = vdwg.mxu0
    %2537 = vmatprep.subr.bf16.mxu0 %v2277
    %2538 = vmatpush1.bf16.msra.mxu0 %v2276
    %2539 = vmatprep.subr.bf16.mxu0 %v2281
    %2540 = vmatpush1.bf16.msra.mxu0 %v2280
    %2541 = vmatprep.subr.bf16.mxu0 %v2285
    %2542 = vmatpush1.bf16.msra.mxu0 %v2284
    %2543 = vmatprep.subr.bf16.mxu0 %v2289
    %2544 = vmatpush1.bf16.msra.mxu0 %v2288
    %2545 = vmatprep.subr.bf16.mxu0 %v2293
    %2546 = vmatpush1.bf16.msra.mxu0 %v2292
    %2547 = vmatprep.subr.bf16.mxu0 %v2297
    %2548 = vmatpush1.bf16.msra.mxu0 %v2296
    %2549 = vmatprep.subr.bf16.mxu0 %v2301
    %2550 = vmatpush1.bf16.msra.mxu0 %v2300
    %2551 = vmatprep.subr.bf16.mxu0 %v2305
    %2552 = vmatpush1.bf16.msra.mxu0 %v2304
    %2553 = vmatprep.subr.bf16.mxu0 0
    %2554 = vmatpush1.bf16.msra.mxu0 0
    %2555 = vmatprep.subr.bf16.mxu0 0
    %2556 = vmatpush1.bf16.msra.mxu0 0
    %2557 = vmatprep.subr.bf16.mxu0 0
    %2558 = vmatpush1.bf16.msra.mxu0 0
    %2559 = vmatprep.subr.bf16.mxu0 0
    %2560 = vmatpush1.bf16.msra.mxu0 0
    %2561 = vmatprep.subr.bf16.mxu0 0
    %2562 = vmatpush1.bf16.msra.mxu0 0
    %2563 = vmatprep.subr.bf16.mxu0 0
    %2564 = vmatpush1.bf16.msra.mxu0 0
    %2565 = vmatprep.subr.bf16.mxu0 0
    %2566 = vmatpush1.bf16.msra.mxu0 0
    %2567 = vmatprep.subr.bf16.mxu0 0
    %2568 = vmatpush1.bf16.msra.mxu0 0
    %2569 = vmatprep.mubr.bf16.mxu0 0
    %2570 = vmatmul.mubr.bf16.gmra.mrb[0].mxu0 %v2495
    %v2571 = vpop.f32.mrb[0].mxu0
    %v2572 = vadd.f32 0.0, %v2571
    %v2573 = vpop.f32.mrb[0].mxu0
    %v2574 = vadd.f32 0.0, %v2573
    %v2575 = vpop.f32.mrb[0].mxu0
    %v2576 = vpop.f32.mrb[0].mxu0
    %2577 = vdwg.mxu0
    %v2582 = vcombine.low %v2531, %v2533
    %v2583 = vcombine.low %v2572, %v2574
    %v2585 = vunpack.c.l.s4 1966171168
    %v2586 = vunpack.c.0.s8 %v2585
    %v2587 = vlaneseq
    %v2588 = vshrl.u32 %v2587, 7
    %v2589 = vsub.s32 %v2586, %v2588
    %v2590 = vrot.slane %v2582, %v2589
    %v2592 = vunpack.c.l.s4 1966171168
    %v2593 = vunpack.c.0.s8 %v2592
    %v2594 = vlaneseq
    %v2595 = vshrl.u32 %v2594, 7
    %v2596 = vsub.s32 %v2593, %v2595
    %v2597 = vrot.slane %v2583, %v2596
    %v2598 = vcombine.low %v2590, %v2597
    %v2600 = vunpack.c.l.s4 1966171168
    %v2601 = vunpack.c.0.s8 %v2600
    %v2602 = vlaneseq
    %v2603 = vshrl.u32 %v2602, 7
    %v2604 = vsub.s32 %v2601, %v2603
    %v2605 = vrot.slane %v2598, %v2604
    %v2607 = vadd.f32 %v2494, %v2605
    %v2608 = vmul.f32 %v2607, 0.5
    %v2609 = vtanh.pop %v2608
    %v2610 = vmul.f32 %v2609, 0.5
    %v2611 = vadd.f32 %v2610, 0.5
    %v2613 = vrot.slane %v2607, 1
    %v2615 = vmul.f32 %v2613, 0.5
    %v2616 = vtanh.pop %v2615
    %v2617 = vmul.f32 %v2616, 0.5
    %v2618 = vadd.f32 %v2617, 0.5
    %v2619 = vrot.slane %v2607, 2
    %v2621 = vtanh.pop %v2619
    %v2622 = vrot.slane %v2607, 3
    %v2624 = vmul.f32 %v2622, 0.5
    %v2625 = vtanh.pop %v2624
    %v2626 = vmul.f32 %v2625, 0.5
    %v2627 = vadd.f32 %v2626, 0.5
    %v2628 = vmul.f32 %v2618, %v2472
    %v2629 = vmul.f32 %v2611, %v2621
    %v2630 = vadd.f32 %v2628, %v2629
    %v2631 = vtanh.pop %v2630
    %v2632 = vmul.f32 %v2627, %v2631
    %s2633 = sld [smem:[#allocation2 + $0x2]]
    %s2634 = sshra.s32 %s2633, 3
    %s2635 = sand.u32 %s2633, 7
    %s2636 = sshra.s32 %s2633, 3
    %s2637 = sand.u32 %s2633, 7
    %s2638 = smul.u32 %s2634, 4
    %s2639 = smul.u32 %s2638, 8
    %s2640 = sadd.s32 %s2639, %s2637
    %s2641 = scalar_lea.vmem %s3, %s2640
    %v2642 = vld [vmem:[%s2641] ss:$8 sm:$0xf]
    %v2643 = vcombine.high %v2175, %v2175
    %v2645 = vadd.f32 %v2642, %v2643
    %v2646 = vpack.c.bf16 %v2632, %v2632
    %2647 = vmatprep.subr.bf16.mxu0 %v2275
    %2648 = vmatpush1.bf16.msra.mxu0 %v2274
    %2649 = vmatprep.subr.bf16.mxu0 %v2279
    %2650 = vmatpush1.bf16.msra.mxu0 %v2278
    %2651 = vmatprep.subr.bf16.mxu0 %v2283
    %2652 = vmatpush1.bf16.msra.mxu0 %v2282
    %2653 = vmatprep.subr.bf16.mxu0 %v2287
    %2654 = vmatpush1.bf16.msra.mxu0 %v2286
    %2655 = vmatprep.subr.bf16.mxu0 %v2291
    %2656 = vmatpush1.bf16.msra.mxu0 %v2290
    %2657 = vmatprep.subr.bf16.mxu0 %v2295
    %2658 = vmatpush1.bf16.msra.mxu0 %v2294
    %2659 = vmatprep.subr.bf16.mxu0 %v2299
    %2660 = vmatpush1.bf16.msra.mxu0 %v2298
    %2661 = vmatprep.subr.bf16.mxu0 %v2303
    %2662 = vmatpush1.bf16.msra.mxu0 %v2302
    %2663 = vmatprep.subr.bf16.mxu0 0
    %2664 = vmatpush1.bf16.msra.mxu0 0
    %2665 = vmatprep.subr.bf16.mxu0 0
    %2666 = vmatpush1.bf16.msra.mxu0 0
    %2667 = vmatprep.subr.bf16.mxu0 0
    %2668 = vmatpush1.bf16.msra.mxu0 0
    %2669 = vmatprep.subr.bf16.mxu0 0
    %2670 = vmatpush1.bf16.msra.mxu0 0
    %2671 = vmatprep.subr.bf16.mxu0 0
    %2672 = vmatpush1.bf16.msra.mxu0 0
    %2673 = vmatprep.subr.bf16.mxu0 0
    %2674 = vmatpush1.bf16.msra.mxu0 0
    %2675 = vmatprep.subr.bf16.mxu0 0
    %2676 = vmatpush1.bf16.msra.mxu0 0
    %2677 = vmatprep.subr.bf16.mxu0 0
    %2678 = vmatpush1.bf16.msra.mxu0 0
    %2679 = vmatprep.mubr.bf16.mxu0 0
    %2680 = vmatmul.mubr.bf16.gmra.mrb[0].mxu0 %v2646
    %v2681 = vpop.f32.mrb[0].mxu0
    %v2682 = vadd.f32 0.0, %v2681
    %v2683 = vpop.f32.mrb[0].mxu0
    %v2684 = vadd.f32 0.0, %v2683
    %v2685 = vpop.f32.mrb[0].mxu0
    %v2686 = vpop.f32.mrb[0].mxu0
    %2687 = vdwg.mxu0
    %2688 = vmatprep.subr.bf16.mxu0 %v2277
    %2689 = vmatpush1.bf16.msra.mxu0 %v2276
    %2690 = vmatprep.subr.bf16.mxu0 %v2281
    %2691 = vmatpush1.bf16.msra.mxu0 %v2280
    %2692 = vmatprep.subr.bf16.mxu0 %v2285
    %2693 = vmatpush1.bf16.msra.mxu0 %v2284
    %2694 = vmatprep.subr.bf16.mxu0 %v2289
    %2695 = vmatpush1.bf16.msra.mxu0 %v2288
    %2696 = vmatprep.subr.bf16.mxu0 %v2293
    %2697 = vmatpush1.bf16.msra.mxu0 %v2292
    %2698 = vmatprep.subr.bf16.mxu0 %v2297
    %2699 = vmatpush1.bf16.msra.mxu0 %v2296
    %2700 = vmatprep.subr.bf16.mxu0 %v2301
    %2701 = vmatpush1.bf16.msra.mxu0 %v2300
    %2702 = vmatprep.subr.bf16.mxu0 %v2305
    %2703 = vmatpush1.bf16.msra.mxu0 %v2304
    %2704 = vmatprep.subr.bf16.mxu0 0
    %2705 = vmatpush1.bf16.msra.mxu0 0
    %2706 = vmatprep.subr.bf16.mxu0 0
    %2707 = vmatpush1.bf16.msra.mxu0 0
    %2708 = vmatprep.subr.bf16.mxu0 0
    %2709 = vmatpush1.bf16.msra.mxu0 0
    %2710 = vmatprep.subr.bf16.mxu0 0
    %2711 = vmatpush1.bf16.msra.mxu0 0
    %2712 = vmatprep.subr.bf16.mxu0 0
    %2713 = vmatpush1.bf16.msra.mxu0 0
    %2714 = vmatprep.subr.bf16.mxu0 0
    %2715 = vmatpush1.bf16.msra.mxu0 0
    %2716 = vmatprep.subr.bf16.mxu0 0
    %2717 = vmatpush1.bf16.msra.mxu0 0
    %2718 = vmatprep.subr.bf16.mxu0 0
    %2719 = vmatpush1.bf16.msra.mxu0 0
    %2720 = vmatprep.mubr.bf16.mxu0 0
    %2721 = vmatmul.mubr.bf16.gmra.mrb[0].mxu0 %v2646
    %v2722 = vpop.f32.mrb[0].mxu0
    %v2723 = vadd.f32 0.0, %v2722
    %v2724 = vpop.f32.mrb[0].mxu0
    %v2725 = vadd.f32 0.0, %v2724
    %v2726 = vpop.f32.mrb[0].mxu0
    %v2727 = vpop.f32.mrb[0].mxu0
    %2728 = vdwg.mxu0
    %v2733 = vcombine.low %v2682, %v2684
    %v2734 = vcombine.low %v2723, %v2725
    %v2736 = vunpack.c.l.s4 1966171168
    %v2737 = vunpack.c.0.s8 %v2736
    %v2738 = vlaneseq
    %v2739 = vshrl.u32 %v2738, 7
    %v2740 = vsub.s32 %v2737, %v2739
    %v2741 = vrot.slane %v2733, %v2740
    %v2743 = vunpack.c.l.s4 1966171168
    %v2744 = vunpack.c.0.s8 %v2743
    %v2745 = vlaneseq
    %v2746 = vshrl.u32 %v2745, 7
    %v2747 = vsub.s32 %v2744, %v2746
    %v2748 = vrot.slane %v2734, %v2747
    %v2749 = vcombine.low %v2741, %v2748
    %v2751 = vunpack.c.l.s4 1966171168
    %v2752 = vunpack.c.0.s8 %v2751
    %v2753 = vlaneseq
    %v2754 = vshrl.u32 %v2753, 7
    %v2755 = vsub.s32 %v2752, %v2754
    %v2756 = vrot.slane %v2749, %v2755
    %v2758 = vadd.f32 %v2645, %v2756
    %v2759 = vmul.f32 %v2758, 0.5
    %v2760 = vtanh.pop %v2759
    %v2761 = vmul.f32 %v2760, 0.5
    %v2762 = vadd.f32 %v2761, 0.5
    %v2764 = vrot.slane %v2758, 1
    %v2766 = vmul.f32 %v2764, 0.5
    %v2767 = vtanh.pop %v2766
    %v2768 = vmul.f32 %v2767, 0.5
    %v2769 = vadd.f32 %v2768, 0.5
    %v2770 = vrot.slane %v2758, 2
    %v2772 = vtanh.pop %v2770
    %v2773 = vrot.slane %v2758, 3
    %v2775 = vmul.f32 %v2773, 0.5
    %v2776 = vtanh.pop %v2775
    %v2777 = vmul.f32 %v2776, 0.5
    %v2778 = vadd.f32 %v2777, 0.5
    %v2779 = vmul.f32 %v2769, %v2630
    %v2780 = vmul.f32 %v2762, %v2772
    %v2781 = vadd.f32 %v2779, %v2780
    %v2782 = vtanh.pop %v2781
    %v2783 = vmul.f32 %v2778, %v2782
    %s2784 = sld [smem:[#allocation2 + $0x3]]
    %s2785 = sshra.s32 %s2784, 3
    %s2786 = sand.u32 %s2784, 7
    %s2787 = sshra.s32 %s2784, 3
    %s2788 = sand.u32 %s2784, 7
    %s2789 = smul.u32 %s2785, 4
    %s2790 = smul.u32 %s2789, 8
    %s2791 = sadd.s32 %s2790, %s2788
    %s2792 = scalar_lea.vmem %s3, %s2791
    %v2793 = vld [vmem:[%s2792] ss:$8 sm:$0xf]
    %v2794 = vcombine.high %v2492, %v2492
    %v2796 = vadd.f32 %v2793, %v2794
    %v2797 = vpack.c.bf16 %v2783, %v2783
    %2798 = vmatprep.subr.bf16.mxu0 %v2275
    %2799 = vmatpush1.bf16.msra.mxu0 %v2274
    %2800 = vmatprep.subr.bf16.mxu0 %v2279
    %2801 = vmatpush1.bf16.msra.mxu0 %v2278
    %2802 = vmatprep.subr.bf16.mxu0 %v2283
    %2803 = vmatpush1.bf16.msra.mxu0 %v2282
    %2804 = vmatprep.subr.bf16.mxu0 %v2287
    %2805 = vmatpush1.bf16.msra.mxu0 %v2286
    %2806 = vmatprep.subr.bf16.mxu0 %v2291
    %2807 = vmatpush1.bf16.msra.mxu0 %v2290
    %2808 = vmatprep.subr.bf16.mxu0 %v2295
    %2809 = vmatpush1.bf16.msra.mxu0 %v2294
    %2810 = vmatprep.subr.bf16.mxu0 %v2299
    %2811 = vmatpush1.bf16.msra.mxu0 %v2298
    %2812 = vmatprep.subr.bf16.mxu0 %v2303
    %2813 = vmatpush1.bf16.msra.mxu0 %v2302
    %2814 = vmatprep.subr.bf16.mxu0 0
    %2815 = vmatpush1.bf16.msra.mxu0 0
    %2816 = vmatprep.subr.bf16.mxu0 0
    %2817 = vmatpush1.bf16.msra.mxu0 0
    %2818 = vmatprep.subr.bf16.mxu0 0
    %2819 = vmatpush1.bf16.msra.mxu0 0
    %2820 = vmatprep.subr.bf16.mxu0 0
    %2821 = vmatpush1.bf16.msra.mxu0 0
    %2822 = vmatprep.subr.bf16.mxu0 0
    %2823 = vmatpush1.bf16.msra.mxu0 0
    %2824 = vmatprep.subr.bf16.mxu0 0
    %2825 = vmatpush1.bf16.msra.mxu0 0
    %2826 = vmatprep.subr.bf16.mxu0 0
    %2827 = vmatpush1.bf16.msra.mxu0 0
    %2828 = vmatprep.subr.bf16.mxu0 0
    %2829 = vmatpush1.bf16.msra.mxu0 0
    %2830 = vmatprep.mubr.bf16.mxu0 0
    %2831 = vmatmul.mubr.bf16.gmra.mrb[0].mxu0 %v2797
    %v2832 = vpop.f32.mrb[0].mxu0
    %v2833 = vadd.f32 0.0, %v2832
    %v2834 = vpop.f32.mrb[0].mxu0
    %v2835 = vadd.f32 0.0, %v2834
    %v2836 = vpop.f32.mrb[0].mxu0
    %v2837 = vpop.f32.mrb[0].mxu0
    %2838 = vdwg.mxu0
    %2839 = vmatprep.subr.bf16.mxu0 %v2277
    %2840 = vmatpush1.bf16.msra.mxu0 %v2276
    %2841 = vmatprep.subr.bf16.mxu0 %v2281
    %2842 = vmatpush1.bf16.msra.mxu0 %v2280
    %2843 = vmatprep.subr.bf16.mxu0 %v2285
    %2844 = vmatpush1.bf16.msra.mxu0 %v2284
    %2845 = vmatprep.subr.bf16.mxu0 %v2289
    %2846 = vmatpush1.bf16.msra.mxu0 %v2288
    %2847 = vmatprep.subr.bf16.mxu0 %v2293
    %2848 = vmatpush1.bf16.msra.mxu0 %v2292
    %2849 = vmatprep.subr.bf16.mxu0 %v2297
    %2850 = vmatpush1.bf16.msra.mxu0 %v2296
    %2851 = vmatprep.subr.bf16.mxu0 %v2301
    %2852 = vmatpush1.bf16.msra.mxu0 %v2300
    %2853 = vmatprep.subr.bf16.mxu0 %v2305
    %2854 = vmatpush1.bf16.msra.mxu0 %v2304
    %2855 = vmatprep.subr.bf16.mxu0 0
    %2856 = vmatpush1.bf16.msra.mxu0 0
    %2857 = vmatprep.subr.bf16.mxu0 0
    %2858 = vmatpush1.bf16.msra.mxu0 0
    %2859 = vmatprep.subr.bf16.mxu0 0
    %2860 = vmatpush1.bf16.msra.mxu0 0
    %2861 = vmatprep.subr.bf16.mxu0 0
    %2862 = vmatpush1.bf16.msra.mxu0 0
    %2863 = vmatprep.subr.bf16.mxu0 0
    %2864 = vmatpush1.bf16.msra.mxu0 0
    %2865 = vmatprep.subr.bf16.mxu0 0
    %2866 = vmatpush1.bf16.msra.mxu0 0
    %2867 = vmatprep.subr.bf16.mxu0 0
    %2868 = vmatpush1.bf16.msra.mxu0 0
    %2869 = vmatprep.subr.bf16.mxu0 0
    %2870 = vmatpush1.bf16.msra.mxu0 0
    %2871 = vmatprep.mubr.bf16.mxu0 0
    %2872 = vmatmul.mubr.bf16.gmra.mrb[0].mxu0 %v2797
    %v2873 = vpop.f32.mrb[0].mxu0
    %v2874 = vadd.f32 0.0, %v2873
    %v2875 = vpop.f32.mrb[0].mxu0
    %v2876 = vadd.f32 0.0, %v2875
    %v2877 = vpop.f32.mrb[0].mxu0
    %v2878 = vpop.f32.mrb[0].mxu0
    %2879 = vdwg.mxu0
    %v2884 = vcombine.low %v2833, %v2835
    %v2885 = vcombine.low %v2874, %v2876
    %v2887 = vunpack.c.l.s4 1966171168
    %v2888 = vunpack.c.0.s8 %v2887
    %v2889 = vlaneseq
    %v2890 = vshrl.u32 %v2889, 7
    %v2891 = vsub.s32 %v2888, %v2890
    %v2892 = vrot.slane %v2884, %v2891
    %v2894 = vunpack.c.l.s4 1966171168
    %v2895 = vunpack.c.0.s8 %v2894
    %v2896 = vlaneseq
    %v2897 = vshrl.u32 %v2896, 7
    %v2898 = vsub.s32 %v2895, %v2897
    %v2899 = vrot.slane %v2885, %v2898
    %v2900 = vcombine.low %v2892, %v2899
    %v2902 = vunpack.c.l.s4 1966171168
    %v2903 = vunpack.c.0.s8 %v2902
    %v2904 = vlaneseq
    %v2905 = vshrl.u32 %v2904, 7
    %v2906 = vsub.s32 %v2903, %v2905
    %v2907 = vrot.slane %v2900, %v2906
    %v2909 = vadd.f32 %v2796, %v2907
    %v2910 = vmul.f32 %v2909, 0.5
    %v2911 = vtanh.pop %v2910
    %v2912 = vmul.f32 %v2911, 0.5
    %v2913 = vadd.f32 %v2912, 0.5
    %v2915 = vrot.slane %v2909, 1
    %v2917 = vmul.f32 %v2915, 0.5
    %v2918 = vtanh.pop %v2917
    %v2919 = vmul.f32 %v2918, 0.5
    %v2920 = vadd.f32 %v2919, 0.5
    %v2921 = vrot.slane %v2909, 2
    %v2923 = vtanh.pop %v2921
    %v2924 = vrot.slane %v2909, 3
    %v2926 = vmul.f32 %v2924, 0.5
    %v2927 = vtanh.pop %v2926
    %v2928 = vmul.f32 %v2927, 0.5
    %v2929 = vadd.f32 %v2928, 0.5
    %v2930 = vmul.f32 %v2920, %v2781
    %v2931 = vmul.f32 %v2913, %v2923
    %v2932 = vadd.f32 %v2930, %v2931
    %v2933 = vtanh.pop %v2932
    %v2934 = vmul.f32 %v2929, %v2933
    %s2935 = sld [smem:[#allocation2 + $0x4]]
    %s2936 = sshra.s32 %s2935, 3
    %s2937 = sand.u32 %s2935, 7
    %s2938 = sshra.s32 %s2935, 3
    %s2939 = sand.u32 %s2935, 7
    %s2940 = smul.u32 %s2936, 4
    %s2941 = smul.u32 %s2940, 8
    %s2942 = sadd.s32 %s2941, %s2939
    %s2943 = scalar_lea.vmem %s3, %s2942
    %v2944 = vld [vmem:[%s2943] ss:$8 sm:$0xf]
    %v2945 = vcombine.high %v2059, %v2061
    %v2946 = vcombine.high %v2100, %v2102
    %v2948 = vunpack.c.l.s4 1966171168
    %v2949 = vunpack.c.0.s8 %v2948
    %v2950 = vlaneseq
    %v2951 = vshrl.u32 %v2950, 7
    %v2952 = vsub.s32 %v2949, %v2951
    %v2953 = vrot.slane %v2945, %v2952
    %v2955 = vunpack.c.l.s4 1966171168
    %v2956 = vunpack.c.0.s8 %v2955
    %v2957 = vlaneseq
    %v2958 = vshrl.u32 %v2957, 7
    %v2959 = vsub.s32 %v2956, %v2958
    %v2960 = vrot.slane %v2946, %v2959
    %v2961 = vcombine.low %v2953, %v2960
    %v2963 = vunpack.c.l.s4 1966171168
    %v2964 = vunpack.c.0.s8 %v2963
    %v2965 = vlaneseq
    %v2966 = vshrl.u32 %v2965, 7
    %v2967 = vsub.s32 %v2964, %v2966
    %v2968 = vrot.slane %v2961, %v2967
    %v2970 = vadd.f32 %v2944, %v2968
    %v2971 = vpack.c.bf16 %v2934, %v2934
    %2972 = vmatprep.subr.bf16.mxu0 %v2275
    %2973 = vmatpush1.bf16.msra.mxu0 %v2274
    %2974 = vmatprep.subr.bf16.mxu0 %v2279
    %2975 = vmatpush1.bf16.msra.mxu0 %v2278
    %2976 = vmatprep.subr.bf16.mxu0 %v2283
    %2977 = vmatpush1.bf16.msra.mxu0 %v2282
    %2978 = vmatprep.subr.bf16.mxu0 %v2287
    %2979 = vmatpush1.bf16.msra.mxu0 %v2286
    %2980 = vmatprep.subr.bf16.mxu0 %v2291
    %2981 = vmatpush1.bf16.msra.mxu0 %v2290
    %2982 = vmatprep.subr.bf16.mxu0 %v2295
    %2983 = vmatpush1.bf16.msra.mxu0 %v2294
    %2984 = vmatprep.subr.bf16.mxu0 %v2299
    %2985 = vmatpush1.bf16.msra.mxu0 %v2298
    %2986 = vmatprep.subr.bf16.mxu0 %v2303
    %2987 = vmatpush1.bf16.msra.mxu0 %v2302
    %2988 = vmatprep.subr.bf16.mxu0 0
    %2989 = vmatpush1.bf16.msra.mxu0 0
    %2990 = vmatprep.subr.bf16.mxu0 0
    %2991 = vmatpush1.bf16.msra.mxu0 0
    %2992 = vmatprep.subr.bf16.mxu0 0
    %2993 = vmatpush1.bf16.msra.mxu0 0
    %2994 = vmatprep.subr.bf16.mxu0 0
    %2995 = vmatpush1.bf16.msra.mxu0 0
    %2996 = vmatprep.subr.bf16.mxu0 0
    %2997 = vmatpush1.bf16.msra.mxu0 0
    %2998 = vmatprep.subr.bf16.mxu0 0
    %2999 = vmatpush1.bf16.msra.mxu0 0
    %3000 = vmatprep.subr.bf16.mxu0 0
    %3001 = vmatpush1.bf16.msra.mxu0 0
    %3002 = vmatprep.subr.bf16.mxu0 0
    %3003 = vmatpush1.bf16.msra.mxu0 0
    %3004 = vmatprep.mubr.bf16.mxu0 0
    %3005 = vmatmul.mubr.bf16.gmra.mrb[0].mxu0 %v2971
    %v3006 = vpop.f32.mrb[0].mxu0
    %v3007 = vadd.f32 0.0, %v3006
    %v3008 = vpop.f32.mrb[0].mxu0
    %v3009 = vadd.f32 0.0, %v3008
    %v3010 = vpop.f32.mrb[0].mxu0
    %v3011 = vpop.f32.mrb[0].mxu0
    %3012 = vdwg.mxu0
    %3013 = vmatprep.subr.bf16.mxu0 %v2277
    %3014 = vmatpush1.bf16.msra.mxu0 %v2276
    %3015 = vmatprep.subr.bf16.mxu0 %v2281
    %3016 = vmatpush1.bf16.msra.mxu0 %v2280
    %3017 = vmatprep.subr.bf16.mxu0 %v2285
    %3018 = vmatpush1.bf16.msra.mxu0 %v2284
    %3019 = vmatprep.subr.bf16.mxu0 %v2289
    %3020 = vmatpush1.bf16.msra.mxu0 %v2288
    %3021 = vmatprep.subr.bf16.mxu0 %v2293
    %3022 = vmatpush1.bf16.msra.mxu0 %v2292
    %3023 = vmatprep.subr.bf16.mxu0 %v2297
    %3024 = vmatpush1.bf16.msra.mxu0 %v2296
    %3025 = vmatprep.subr.bf16.mxu0 %v2301
    %3026 = vmatpush1.bf16.msra.mxu0 %v2300
    %3027 = vmatprep.subr.bf16.mxu0 %v2305
    %3028 = vmatpush1.bf16.msra.mxu0 %v2304
    %3029 = vmatprep.subr.bf16.mxu0 0
    %3030 = vmatpush1.bf16.msra.mxu0 0
    %3031 = vmatprep.subr.bf16.mxu0 0
    %3032 = vmatpush1.bf16.msra.mxu0 0
    %3033 = vmatprep.subr.bf16.mxu0 0
    %3034 = vmatpush1.bf16.msra.mxu0 0
    %3035 = vmatprep.subr.bf16.mxu0 0
    %3036 = vmatpush1.bf16.msra.mxu0 0
    %3037 = vmatprep.subr.bf16.mxu0 0
    %3038 = vmatpush1.bf16.msra.mxu0 0
    %3039 = vmatprep.subr.bf16.mxu0 0
    %3040 = vmatpush1.bf16.msra.mxu0 0
    %3041 = vmatprep.subr.bf16.mxu0 0
    %3042 = vmatpush1.bf16.msra.mxu0 0
    %3043 = vmatprep.subr.bf16.mxu0 0
    %3044 = vmatpush1.bf16.msra.mxu0 0
    %3045 = vmatprep.mubr.bf16.mxu0 0
    %3046 = vmatmul.mubr.bf16.gmra.mrb[0].mxu0 %v2971
    %v3047 = vpop.f32.mrb[0].mxu0
    %v3048 = vadd.f32 0.0, %v3047
    %v3049 = vpop.f32.mrb[0].mxu0
    %v3050 = vadd.f32 0.0, %v3049
    %v3051 = vpop.f32.mrb[0].mxu0
    %v3052 = vpop.f32.mrb[0].mxu0
    %3053 = vdwg.mxu0
    %v3058 = vcombine.low %v3007, %v3009
    %v3059 = vcombine.low %v3048, %v3050
    %v3061 = vunpack.c.l.s4 1966171168
    %v3062 = vunpack.c.0.s8 %v3061
    %v3063 = vlaneseq
    %v3064 = vshrl.u32 %v3063, 7
    %v3065 = vsub.s32 %v3062, %v3064
    %v3066 = vrot.slane %v3058, %v3065
    %v3068 = vunpack.c.l.s4 1966171168
    %v3069 = vunpack.c.0.s8 %v3068
    %v3070 = vlaneseq
    %v3071 = vshrl.u32 %v3070, 7
    %v3072 = vsub.s32 %v3069, %v3071
    %v3073 = vrot.slane %v3059, %v3072
    %v3074 = vcombine.low %v3066, %v3073
    %v3076 = vunpack.c.l.s4 1966171168
    %v3077 = vunpack.c.0.s8 %v3076
    %v3078 = vlaneseq
    %v3079 = vshrl.u32 %v3078, 7
    %v3080 = vsub.s32 %v3077, %v3079
    %v3081 = vrot.slane %v3074, %v3080
    %v3083 = vadd.f32 %v2970, %v3081
    %v3084 = vmul.f32 %v3083, 0.5
    %v3085 = vtanh.pop %v3084
    %v3086 = vmul.f32 %v3085, 0.5
    %v3087 = vadd.f32 %v3086, 0.5
    %v3089 = vrot.slane %v3083, 1
    %v3091 = vmul.f32 %v3089, 0.5
    %v3092 = vtanh.pop %v3091
    %v3093 = vmul.f32 %v3092, 0.5
    %v3094 = vadd.f32 %v3093, 0.5
    %v3095 = vrot.slane %v3083, 2
    %v3097 = vtanh.pop %v3095
    %v3098 = vrot.slane %v3083, 3
    %v3100 = vmul.f32 %v3098, 0.5
    %v3101 = vtanh.pop %v3100
    %v3102 = vmul.f32 %v3101, 0.5
    %v3103 = vadd.f32 %v3102, 0.5
    %v3104 = vmul.f32 %v3094, %v2932
    %v3105 = vmul.f32 %v3087, %v3097
    %v3106 = vadd.f32 %v3104, %v3105
    %v3107 = vtanh.pop %v3106
    %v3108 = vmul.f32 %v3103, %v3107
    %s3109 = sld [smem:[#allocation2 + $0x5]]
    %s3110 = sshra.s32 %s3109, 3
    %s3111 = sand.u32 %s3109, 7
    %s3112 = sshra.s32 %s3109, 3
    %s3113 = sand.u32 %s3109, 7
    %s3114 = smul.u32 %s3110, 4
    %s3115 = smul.u32 %s3114, 8
    %s3116 = sadd.s32 %s3115, %s3113
    %s3117 = scalar_lea.vmem %s3, %s3116
    %v3118 = vld [vmem:[%s3117] ss:$8 sm:$0xf]
    %v3119 = vcombine.high %v2953, %v2960
    %v3121 = vunpack.c.l.s4 1966171168
    %v3122 = vunpack.c.0.s8 %v3121
    %v3123 = vlaneseq
    %v3124 = vshrl.u32 %v3123, 7
    %v3125 = vsub.s32 %v3122, %v3124
    %v3126 = vrot.slane %v3119, %v3125
    %v3128 = vadd.f32 %v3118, %v3126
    %v3129 = vpack.c.bf16 %v3108, %v3108
    %3130 = vmatprep.subr.bf16.mxu0 %v2275
    %3131 = vmatpush1.bf16.msra.mxu0 %v2274
    %3132 = vmatprep.subr.bf16.mxu0 %v2279
    %3133 = vmatpush1.bf16.msra.mxu0 %v2278
    %3134 = vmatprep.subr.bf16.mxu0 %v2283
    %3135 = vmatpush1.bf16.msra.mxu0 %v2282
    %3136 = vmatprep.subr.bf16.mxu0 %v2287
    %3137 = vmatpush1.bf16.msra.mxu0 %v2286
    %3138 = vmatprep.subr.bf16.mxu0 %v2291
    %3139 = vmatpush1.bf16.msra.mxu0 %v2290
    %3140 = vmatprep.subr.bf16.mxu0 %v2295
    %3141 = vmatpush1.bf16.msra.mxu0 %v2294
    %3142 = vmatprep.subr.bf16.mxu0 %v2299
    %3143 = vmatpush1.bf16.msra.mxu0 %v2298
    %3144 = vmatprep.subr.bf16.mxu0 %v2303
    %3145 = vmatpush1.bf16.msra.mxu0 %v2302
    %3146 = vmatprep.subr.bf16.mxu0 0
    %3147 = vmatpush1.bf16.msra.mxu0 0
    %3148 = vmatprep.subr.bf16.mxu0 0
    %3149 = vmatpush1.bf16.msra.mxu0 0
    %3150 = vmatprep.subr.bf16.mxu0 0
    %3151 = vmatpush1.bf16.msra.mxu0 0
    %3152 = vmatprep.subr.bf16.mxu0 0
    %3153 = vmatpush1.bf16.msra.mxu0 0
    %3154 = vmatprep.subr.bf16.mxu0 0
    %3155 = vmatpush1.bf16.msra.mxu0 0
    %3156 = vmatprep.subr.bf16.mxu0 0
    %3157 = vmatpush1.bf16.msra.mxu0 0
    %3158 = vmatprep.subr.bf16.mxu0 0
    %3159 = vmatpush1.bf16.msra.mxu0 0
    %3160 = vmatprep.subr.bf16.mxu0 0
    %3161 = vmatpush1.bf16.msra.mxu0 0
    %3162 = vmatprep.mubr.bf16.mxu0 0
    %3163 = vmatmul.mubr.bf16.gmra.mrb[0].mxu0 %v3129
    %v3164 = vpop.f32.mrb[0].mxu0
    %v3165 = vadd.f32 0.0, %v3164
    %v3166 = vpop.f32.mrb[0].mxu0
    %v3167 = vadd.f32 0.0, %v3166
    %v3168 = vpop.f32.mrb[0].mxu0
    %v3169 = vpop.f32.mrb[0].mxu0
    %3170 = vdwg.mxu0
    %3171 = vmatprep.subr.bf16.mxu0 %v2277
    %3172 = vmatpush1.bf16.msra.mxu0 %v2276
    %3173 = vmatprep.subr.bf16.mxu0 %v2281
    %3174 = vmatpush1.bf16.msra.mxu0 %v2280
    %3175 = vmatprep.subr.bf16.mxu0 %v2285
    %3176 = vmatpush1.bf16.msra.mxu0 %v2284
    %3177 = vmatprep.subr.bf16.mxu0 %v2289
    %3178 = vmatpush1.bf16.msra.mxu0 %v2288
    %3179 = vmatprep.subr.bf16.mxu0 %v2293
    %3180 = vmatpush1.bf16.msra.mxu0 %v2292
    %3181 = vmatprep.subr.bf16.mxu0 %v2297
    %3182 = vmatpush1.bf16.msra.mxu0 %v2296
    %3183 = vmatprep.subr.bf16.mxu0 %v2301
    %3184 = vmatpush1.bf16.msra.mxu0 %v2300
    %3185 = vmatprep.subr.bf16.mxu0 %v2305
    %3186 = vmatpush1.bf16.msra.mxu0 %v2304
    %3187 = vmatprep.subr.bf16.mxu0 0
    %3188 = vmatpush1.bf16.msra.mxu0 0
    %3189 = vmatprep.subr.bf16.mxu0 0
    %3190 = vmatpush1.bf16.msra.mxu0 0
    %3191 = vmatprep.subr.bf16.mxu0 0
    %3192 = vmatpush1.bf16.msra.mxu0 0
    %3193 = vmatprep.subr.bf16.mxu0 0
    %3194 = vmatpush1.bf16.msra.mxu0 0
    %3195 = vmatprep.subr.bf16.mxu0 0
    %3196 = vmatpush1.bf16.msra.mxu0 0
    %3197 = vmatprep.subr.bf16.mxu0 0
    %3198 = vmatpush1.bf16.msra.mxu0 0
    %3199 = vmatprep.subr.bf16.mxu0 0
    %3200 = vmatpush1.bf16.msra.mxu0 0
    %3201 = vmatprep.subr.bf16.mxu0 0
    %3202 = vmatpush1.bf16.msra.mxu0 0
    %3203 = vmatprep.mubr.bf16.mxu0 0
    %3204 = vmatmul.mubr.bf16.gmra.mrb[0].mxu0 %v3129
    %v3205 = vpop.f32.mrb[0].mxu0
    %v3206 = vadd.f32 0.0, %v3205
    %v3207 = vpop.f32.mrb[0].mxu0
    %v3208 = vadd.f32 0.0, %v3207
    %v3209 = vpop.f32.mrb[0].mxu0
    %v3210 = vpop.f32.mrb[0].mxu0
    %3211 = vdwg.mxu0
    %v3216 = vcombine.low %v3165, %v3167
    %v3217 = vcombine.low %v3206, %v3208
    %v3219 = vunpack.c.l.s4 1966171168
    %v3220 = vunpack.c.0.s8 %v3219
    %v3221 = vlaneseq
    %v3222 = vshrl.u32 %v3221, 7
    %v3223 = vsub.s32 %v3220, %v3222
    %v3224 = vrot.slane %v3216, %v3223
    %v3226 = vunpack.c.l.s4 1966171168
    %v3227 = vunpack.c.0.s8 %v3226
    %v3228 = vlaneseq
    %v3229 = vshrl.u32 %v3228, 7
    %v3230 = vsub.s32 %v3227, %v3229
    %v3231 = vrot.slane %v3217, %v3230
    %v3232 = vcombine.low %v3224, %v3231
    %v3234 = vunpack.c.l.s4 1966171168
    %v3235 = vunpack.c.0.s8 %v3234
    %v3236 = vlaneseq
    %v3237 = vshrl.u32 %v3236, 7
    %v3238 = vsub.s32 %v3235, %v3237
    %v3239 = vrot.slane %v3232, %v3238
    %v3241 = vadd.f32 %v3128, %v3239
    %v3242 = vmul.f32 %v3241, 0.5
    %v3243 = vtanh.pop %v3242
    %v3244 = vmul.f32 %v3243, 0.5
    %v3245 = vadd.f32 %v3244, 0.5
    %v3247 = vrot.slane %v3241, 1
    %v3249 = vmul.f32 %v3247, 0.5
    %v3250 = vtanh.pop %v3249
    %v3251 = vmul.f32 %v3250, 0.5
    %v3252 = vadd.f32 %v3251, 0.5
    %v3253 = vrot.slane %v3241, 2
    %v3255 = vtanh.pop %v3253
    %v3256 = vrot.slane %v3241, 3
    %v3258 = vmul.f32 %v3256, 0.5
    %v3259 = vtanh.pop %v3258
    %v3260 = vmul.f32 %v3259, 0.5
    %v3261 = vadd.f32 %v3260, 0.5
    %v3262 = vmul.f32 %v3252, %v3106
    %v3263 = vmul.f32 %v3245, %v3255
    %v3264 = vadd.f32 %v3262, %v3263
    %v3265 = vtanh.pop %v3264
    %v3266 = vmul.f32 %v3261, %v3265
    %v3268 = vlaneseq
    %v3269 = vshrl.u32 %v3268, 7
    %v3270 = vsub.s32 0, %v3269
    %v3271 = vrot.slane %v2632, %v3270
    %v3274 = vlaneseq
    %v3275 = vshrl.u32 %v3274, 7
    %v3276 = vsub.s32 0, %v3275
    %v3277 = vrot.slane %v2783, %v3276
    %v3280 = vlaneseq
    %v3281 = vshrl.u32 %v3280, 7
    %v3282 = vsub.s32 0, %v3281
    %v3283 = vrot.slane %v2934, %v3282
    %v3286 = vlaneseq
    %v3287 = vshrl.u32 %v3286, 7
    %v3288 = vsub.s32 0, %v3287
    %v3289 = vrot.slane %v3108, %v3288
    %v3292 = vlaneseq
    %v3293 = vshrl.u32 %v3292, 7
    %v3294 = vsub.s32 0, %v3293
    %v3295 = vrot.slane %v3266, %v3294
    %v3297 = vsel %vm277, %v2474, %v3271
    %v3298 = vsel %vm282, %v3297, %v3277
    %v3299 = vsel %vm287, %v3298, %v3283
    %v3300 = vsel %vm292, %v3299, %v3289
    %v3301 = vsel %vm297, %v3300, %v3295
    %v3302 = vsel %vm302, %v3301, 0.0
    %v3303 = vpack.c.bf16 %v3302, %v3302
    %v3304 = vld [vmem:[%s7] sm:$0xf]
    %v3305 = vld [vmem:[%s7 + $0x4] sm:$0xf]
    %v3306 = vld [vmem:[%s7 + $0x8] sm:$0xf]
    %v3307 = vld [vmem:[%s7 + $0xc] sm:$0xf]
    %v3308 = vld [vmem:[%s7 + $0x10] sm:$0xf]
    %v3309 = vld [vmem:[%s7 + $0x14] sm:$0xf]
    %v3310 = vld [vmem:[%s7 + $0x18] sm:$0xf]
    %v3311 = vld [vmem:[%s7 + $0x1c] sm:$0xf]
    %v3312 = vld [vmem:[%s7 + $0x20] sm:$0xf]
    %v3313 = vld [vmem:[%s7 + $0x24] sm:$0xf]
    %v3314 = vld [vmem:[%s7 + $0x28] sm:$0xf]
    %v3315 = vld [vmem:[%s7 + $0x2c] sm:$0xf]
    %v3316 = vld [vmem:[%s7 + $0x30] sm:$0xf]
    %v3317 = vld [vmem:[%s7 + $0x34] sm:$0xf]
    %v3318 = vld [vmem:[%s7 + $0x38] sm:$0xf]
    %v3319 = vld [vmem:[%s7 + $0x3c] sm:$0xf]
    %v3320 = vld [vmem:[%s8] sm:$0x1]
    %v3322 = vlaneseq
    %v3323 = vshrl.u32 %v3322, 7
    %v3324 = vsub.s32 0, %v3323
    %v3325 = vrot.slane %v3320, %v3324
    %v3343 = vunpack.c.l.b16 %v3304
    %v3344 = vunpack.c.l.b16 %v3305
    %v3345 = vunpack.c.l.b16 %v3306
    %v3346 = vunpack.c.l.b16 %v3307
    %v3347 = vunpack.c.l.b16 %v3308
    %v3348 = vunpack.c.l.b16 %v3309
    %v3349 = vunpack.c.l.b16 %v3310
    %v3350 = vunpack.c.l.b16 %v3311
    %v3351 = vunpack.c.l.b16 %v3312
    %v3352 = vunpack.c.l.b16 %v3313
    %v3353 = vunpack.c.l.b16 %v3314
    %v3354 = vunpack.c.l.b16 %v3315
    %v3355 = vunpack.c.l.b16 %v3316
    %v3356 = vunpack.c.l.b16 %v3317
    %v3357 = vunpack.c.l.b16 %v3318
    %v3358 = vunpack.c.l.b16 %v3319
    %v3359 = vpack.c.b16 %v3344, %v3343
    %v3360 = vpack.c.b16 %v3346, %v3345
    %v3361 = vpack.c.b16 %v3348, %v3347
    %v3362 = vpack.c.b16 %v3350, %v3349
    %v3363 = vpack.c.b16 %v3352, %v3351
    %v3364 = vpack.c.b16 %v3354, %v3353
    %v3365 = vpack.c.b16 %v3356, %v3355
    %v3366 = vpack.c.b16 %v3358, %v3357
    %3375 = vmatprep.subr.bf16.mxu0 0
    %3376 = vmatpush1.bf16.msra.mxu0 %v3359
    %3377 = vmatprep.subr.bf16.mxu0 0
    %3378 = vmatpush1.bf16.msra.mxu0 %v3360
    %3379 = vmatprep.subr.bf16.mxu0 0
    %3380 = vmatpush1.bf16.msra.mxu0 %v3361
    %3381 = vmatprep.subr.bf16.mxu0 0
    %3382 = vmatpush1.bf16.msra.mxu0 %v3362
    %3383 = vmatprep.subr.bf16.mxu0 0
    %3384 = vmatpush1.bf16.msra.mxu0 %v3363
    %3385 = vmatprep.subr.bf16.mxu0 0
    %3386 = vmatpush1.bf16.msra.mxu0 %v3364
    %3387 = vmatprep.subr.bf16.mxu0 0
    %3388 = vmatpush1.bf16.msra.mxu0 %v3365
    %3389 = vmatprep.subr.bf16.mxu0 0
    %3390 = vmatpush1.bf16.msra.mxu0 %v3366
    %3391 = vmatprep.subr.bf16.mxu0 0
    %3392 = vmatpush1.bf16.msra.mxu0 0
    %3393 = vmatprep.subr.bf16.mxu0 0
    %3394 = vmatpush1.bf16.msra.mxu0 0
    %3395 = vmatprep.subr.bf16.mxu0 0
    %3396 = vmatpush1.bf16.msra.mxu0 0
    %3397 = vmatprep.subr.bf16.mxu0 0
    %3398 = vmatpush1.bf16.msra.mxu0 0
    %3399 = vmatprep.subr.bf16.mxu0 0
    %3400 = vmatpush1.bf16.msra.mxu0 0
    %3401 = vmatprep.subr.bf16.mxu0 0
    %3402 = vmatpush1.bf16.msra.mxu0 0
    %3403 = vmatprep.subr.bf16.mxu0 0
    %3404 = vmatpush1.bf16.msra.mxu0 0
    %3405 = vmatprep.subr.bf16.mxu0 0
    %3406 = vmatpush1.bf16.msra.mxu0 0
    %3407 = vmatprep.mubr.bf16.mxu0 0
    %3408 = vmatmul.mubr.bf16.gmra.mrb[0].mxu0 %v3303
    %v3409 = vpop.f32.mrb[0].mxu0
    %v3410 = vadd.f32 %v3325, %v3409
    %v3411 = vpop.f32.mrb[0].mxu0
    %v3412 = vpop.f32.mrb[0].mxu0
    %v3413 = vpop.f32.mrb[0].mxu0
    %3414 = vdwg.mxu0
    %3415 = vmax.xlane.f32.xlu0 %v3410
    %v3416 = vpop.xlane.xlu0 %3415
    %v3417 = vsub.f32 %v3410, %v3416
    %v3418 = vmul.f32 %v3417, 1.442695
    %v3419 = vpow.pop %v3418
    %3420 = vadd.xlane.f32.xlu0 %v3419
    %v3421 = vpop.xlane.xlu0 %3420
    %v3422 = vlog2.pop %v3421
    %v3423 = vmul.f32 %v3422, 0.6931472
    %v3424 = vsub.f32 %v3417, %v3423
    %3425 = vst [vmem:[#allocation7] sm:$0xff] %v3424
    // Predicated region
    $region46: #{dual_lstm_tagger_forward.1} parent=1 // pred_check
      _
    $region47: #{dual_lstm_tagger_forward.1} parent=1 // pred_check_branch
      %3427 = sbr.rel (0) target = $region49
    $region48: #{dual_lstm_tagger_forward.1} parent=1 // pred_region
      %s3429 = ssub.s32 128, 128
      %3430 = vsyncadd [#allocation3], %s3429
      %s3432 = sshll.u32 [#allocation7], 4
      %s3433 = int_to_ptr.vmem [resolvable:$true] %s3432
      %3435 = dma.vmem_to_hbm [thread:$0]  %s3433, 128, %s9, [#allocation3]
    $region49: #{dual_lstm_tagger_forward.1} parent=1 // pred_fallthru
      _
    // Predicated region
    $region50: #{dual_lstm_tagger_forward.1} parent=1 // pred_check
      _
    $region51: #{dual_lstm_tagger_forward.1} parent=1 // pred_check_branch
      %3437 = sbr.rel (0) target = $region53
    $region52: #{dual_lstm_tagger_forward.1} parent=1 // pred_region
      %3438 = dma.done [#allocation3], 128
    $region53: #{dual_lstm_tagger_forward.1} parent=1 // pred_fallthru
      _
    %3439 = vsyncpa [#allocation3], 1
    %3440 = vsyncpa [#allocation4], 1
    %3441 = vsyncpa [#allocation6], 1

</llo_original>
